<compile_context>
chip_gen: v5e
topology: v5e:2x2
jax: 0.10.0
libtpu: 0.0.40
codegen_flags: <defaults>
</compile_context>

<pallas_src>
import functools

import jax
import jax.numpy as jnp
from jax.experimental import pallas as pl
from jax.experimental.pallas import tpu as pltpu


LEAKY_SLOPE = 0.01  # nn.LeakyReLU default
IN_EPS = 1e-5       # nn.InstanceNorm2d default


def _round_up(x, m):
    return ((x + m - 1) // m) * m


# ---------------------------------------------------------------------------
# Tiled conv-as-matmul kernel: patches(M,K) @ w(K,OC) + bias [+ LeakyReLU]
# ---------------------------------------------------------------------------
def _conv_mm_kernel(p_ref, w_ref, b_ref, o_ref, acc_ref, *, act):
    k = pl.program_id(2)

    @pl.when(k == 0)
    def _():
        acc_ref[...] = jnp.zeros_like(acc_ref)

    acc_ref[...] += jnp.dot(p_ref[...], w_ref[...],
                            preferred_element_type=jnp.float32)

    @pl.when(k == pl.num_programs(2) - 1)
    def _():
        out = acc_ref[...] + b_ref[...]
        if act:
            out = jnp.where(out >= 0.0, out, LEAKY_SLOPE * out)
        o_ref[...] = out.astype(o_ref.dtype)


def conv_matmul(patches, w2d, bias, act):
    """patches: (M, K) f32/bf16, w2d: (K, OC), bias: (OC,). Returns (M, OC) f32."""
    M, K = patches.shape
    _, OC = w2d.shape

    # Tile sizes: lane-dense output (tn multiple of 128), sublane-aligned M,
    # K tiles <= 512; all padded dims sliced away afterwards.
    tm = min(256, _round_up(M, 8))
    Mp = _round_up(M, tm)
    tn = min(256, _round_up(OC, 128))
    OCp = _round_up(OC, tn)
    tk = min(512, _round_up(K, 128))
    Kp = _round_up(K, tk)

    p = jnp.pad(patches, ((0, Mp - M), (0, Kp - K))).astype(jnp.bfloat16)
    w = jnp.pad(w2d, ((0, Kp - K), (0, OCp - OC))).astype(jnp.bfloat16)
    b = jnp.pad(bias.astype(jnp.float32), (0, OCp - OC)).reshape(1, OCp)

    grid = (Mp // tm, OCp // tn, Kp // tk)
    kernel = functools.partial(_conv_mm_kernel, act=act)

    out = pl.pallas_call(
        kernel,
        out_shape=jax.ShapeDtypeStruct((Mp, OCp), jnp.float32),
        grid_spec=pltpu.PrefetchScalarGridSpec(
            num_scalar_prefetch=0,
            grid=grid,
            in_specs=[
                pl.BlockSpec((tm, tk), lambda i, j, k: (i, k)),
                pl.BlockSpec((tk, tn), lambda i, j, k: (k, j)),
                pl.BlockSpec((1, tn), lambda i, j, k: (0, j)),
            ],
            out_specs=pl.BlockSpec((tm, tn), lambda i, j, k: (i, j)),
            scratch_shapes=[pltpu.VMEM((tm, tn), jnp.float32)],
        ),
        compiler_params=pltpu.CompilerParams(
            dimension_semantics=("parallel", "parallel", "arbitrary")),
    )(p, w, b)
    return out[:M, :OC]


# ---------------------------------------------------------------------------
# Fused InstanceNorm2d(affine=False) + LeakyReLU kernel
# ---------------------------------------------------------------------------
def _in_lrelu_kernel(x_ref, o_ref):
    # x: (1, HW, 128) f32 -- one sample, full spatial extent, 128-lane channel tile.
    x = x_ref[...]
    inv_hw = 1.0 / x.shape[1]
    s = jnp.sum(x, axis=1, keepdims=True)           # single pass: sum
    ss = jnp.sum(x * x, axis=1, keepdims=True)      # and sum of squares
    mean = s * inv_hw
    var = ss * inv_hw - mean * mean                 # biased variance (PyTorch IN)
    y = (x - mean) * jax.lax.rsqrt(var + IN_EPS)    # rsqrt -> EUP slot
    o_ref[...] = jnp.where(y >= 0.0, y, LEAKY_SLOPE * y)


def instance_norm_lrelu(x_nlc):
    N, HW, C = x_nlc.shape
    tc = 128
    Cp = _round_up(C, tc)
    xp = jnp.pad(x_nlc, ((0, 0), (0, 0), (0, Cp - C)))

    out = pl.pallas_call(
        _in_lrelu_kernel,
        out_shape=jax.ShapeDtypeStruct((N, HW, Cp), jnp.float32),
        grid=(N, Cp // tc),
        in_specs=[pl.BlockSpec((1, HW, tc), lambda n, c: (n, 0, c))],
        out_specs=pl.BlockSpec((1, HW, tc), lambda n, c: (n, 0, c)),
        compiler_params=pltpu.CompilerParams(
            dimension_semantics=("parallel", "parallel")),
    )(xp)
    return out[:, :, :C]


# ---------------------------------------------------------------------------
# Conv2d = im2col (glue) + Pallas tiled matmul
# ---------------------------------------------------------------------------
def _extract_patches(x_nhwc, k, stride, pad):
    # TODO(synk): replace materialized im2col with an in-kernel 4x4-tap accumulation
    # from a VMEM-resident input tile to remove the 4-16x HBM patch inflation.
    N, H, W, C = x_nhwc.shape
    xp = jnp.pad(x_nhwc, ((0, 0), (pad, pad), (pad, pad), (0, 0)))
    Hp, Wp = H + 2 * pad, W + 2 * pad
    OH = (Hp - k) // stride + 1
    OW = (Wp - k) // stride + 1
    cols = []
    for i in range(k):
        for j in range(k):
            cols.append(xp[:, i:i + stride * OH:stride, j:j + stride * OW:stride, :])
    p = jnp.stack(cols, axis=3)                      # (N, OH, OW, k*k, C)
    return p.reshape(N * OH * OW, k * k * C), (N, OH, OW)


def conv2d(x_nhwc, w_oihw, bias, stride, act):
    OC, IC, KH, KW = w_oihw.shape
    # match patch ordering (kh, kw, c):
    w2d = jnp.transpose(w_oihw, (2, 3, 1, 0)).reshape(KH * KW * IC, OC)
    patches, (N, OH, OW) = _extract_patches(x_nhwc, KH, stride, pad=1)
    out = conv_matmul(patches, w2d, bias, act)
    return out.reshape(N, OH, OW, OC)


# ---------------------------------------------------------------------------
# Discriminator forward
# ---------------------------------------------------------------------------
def init_params(channels, key):
    shapes = [
        (32, channels, 4, 4),
        (64, 32, 4, 4),
        (128, 64, 4, 4),
        (256, 128, 4, 4),
        (1, 256, 4, 4),
    ]
    params = {}
    for idx, s in enumerate(shapes, start=1):
        key, kw, kb = jax.random.split(key, 3)
        fan_in = s[1] * s[2] * s[3]
        bound = 1.0 / jnp.sqrt(fan_in)
        params[f"w{idx}"] = jax.random.uniform(kw, s, jnp.float32, -bound, bound)
        params[f"b{idx}"] = jax.random.uniform(kb, (s[0],), jnp.float32, -bound, bound)
    return params


def _in_block(x_nhwc):
    N, H, W, C = x_nhwc.shape
    y = instance_norm_lrelu(x_nhwc.reshape(N, H * W, C))
    return y.reshape(N, H, W, C)


@jax.jit
def discriminator_forward(x_nchw, params):
    x = jnp.transpose(x_nchw, (0, 2, 3, 1)).astype(jnp.float32)   # NCHW -> NHWC
    # layer 1: conv s2 (no norm) + LeakyReLU fused into matmul epilogue
    x = conv2d(x, params["w1"], params["b1"], stride=2, act=True)
    # layer 2: conv s2 + InstanceNorm + LeakyReLU
    x = conv2d(x, params["w2"], params["b2"], stride=2, act=False)
    x = _in_block(x)
    # layer 3: conv s2 + InstanceNorm + LeakyReLU
    x = conv2d(x, params["w3"], params["b3"], stride=2, act=False)
    x = _in_block(x)
    # layer 4: conv s1 + InstanceNorm + LeakyReLU
    x = conv2d(x, params["w4"], params["b4"], stride=1, act=False)
    x = _in_block(x)
    # final: conv s1 -> 1 channel, no activation (lane-padded to 128 in-kernel)
    x = conv2d(x, params["w5"], params["b5"], stride=1, act=False)
    return jnp.transpose(x, (0, 3, 1, 2))                          # NHWC -> NCHW


if __name__ == "__main__":
    key = jax.random.PRNGKey(0)
    kx, kp = jax.random.split(key)
    # 3-channel 32x32 images, batch 2 (smallest spatial that survives 5 conv layers)
    x = jax.random.normal(kx, (2, 3, 32, 32), dtype=jnp.float32)
    params = init_params(channels=3, key=kp)

    out = discriminator_forward(x, params)
    out = jax.block_until_ready(out)
    assert out.shape == (2, 1, 2, 2), out.shape
    print("KERNEL_OK")
</pallas_src>

<mosaic_0001>
module attributes {stable_mosaic.version = 11 : i64} {
  func.func @_conv_mm_kernel(%arg0: i32, %arg1: i32, %arg2: i32, %arg3: memref<256x128xbf16, #tpu.memory_space<vmem>>, %arg4: memref<128x128xbf16, #tpu.memory_space<vmem>>, %arg5: memref<1x128xf32, #tpu.memory_space<vmem>>, %arg6: memref<256x128xf32, #tpu.memory_space<vmem>>, %arg7: memref<256x128xf32, #tpu.memory_space<vmem>>) attributes {dimension_semantics = [#tpu.dimension_semantics<parallel>, #tpu.dimension_semantics<parallel>, #tpu.dimension_semantics<arbitrary>], iteration_bounds = array<i64: 2, 1, 1>, scalar_prefetch = 0 : i64, scratch_operands = 1 : i64, tpu.core_type = #tpu.core_type<tc>, window_params = [{transform_indices = @transform_0, window_bounds = array<i64: 256, 128>}, {transform_indices = @transform_1, window_bounds = array<i64: 128, 128>}, {transform_indices = @transform_2, window_bounds = array<i64: 1, 128>}, {transform_indices = @transform_3, window_bounds = array<i64: 256, 128>}]} {
    %c0_i32 = arith.constant 0 : i32
    %0 = arith.cmpi eq, %arg2, %c0_i32 : i32
    %1 = arith.extui %0 : i1 to i32
    %c0_i32_0 = arith.constant 0 : i32
    %2 = arith.cmpi ne, %1, %c0_i32_0 : i32
    scf.if %2 {
      %cst_10 = arith.constant 0.000000e+00 : f32
      %12 = vector.broadcast %cst_10 : f32 to vector<256x128xf32>
      %c0_11 = arith.constant 0 : index
      %c0_12 = arith.constant 0 : index
      %13 = vector.load %arg7[%c0_11, %c0_12] : memref<256x128xf32, #tpu.memory_space<vmem>>, vector<256x128xf32>
      tpu.vector_store %arg7[%c0_11, %c0_12], %12 {strides = array<i32>} : memref<256x128xf32, #tpu.memory_space<vmem>>, vector<256x128xf32>,
    } else {
    }
    %c0 = arith.constant 0 : index
    %c0_1 = arith.constant 0 : index
    %3 = vector.load %arg7[%c0, %c0_1] : memref<256x128xf32, #tpu.memory_space<vmem>>, vector<256x128xf32>
    %c0_2 = arith.constant 0 : index
    %c0_3 = arith.constant 0 : index
    %4 = vector.load %arg3[%c0_2, %c0_3] : memref<256x128xbf16, #tpu.memory_space<vmem>>, vector<256x128xbf16>
    %c0_4 = arith.constant 0 : index
    %c0_5 = arith.constant 0 : index
    %5 = vector.load %arg4[%c0_4, %c0_5] : memref<128x128xbf16, #tpu.memory_space<vmem>>, vector<128x128xbf16>
    %cst = arith.constant dense<0.000000e+00> : vector<256x128xf32>
    %6 = tpu.matmul %4, %5, %cst {dimension_numbers = #tpu.dot_dimension_numbers<[1], [0], [0], [1], [0, 0, 1, 1], [], []>} : vector<256x128xbf16>, vector<128x128xbf16>, vector<256x128xf32> -> vector<256x128xf32>
    %7 = arith.addf %3, %6 : vector<256x128xf32>
    %c0_6 = arith.constant 0 : index
    %c0_7 = arith.constant 0 : index
    %8 = vector.load %arg7[%c0_6, %c0_7] : memref<256x128xf32, #tpu.memory_space<vmem>>, vector<256x128xf32>
    tpu.vector_store %arg7[%c0_6, %c0_7], %7 {strides = array<i32>} : memref<256x128xf32, #tpu.memory_space<vmem>>, vector<256x128xf32>,
    %c0_i32_8 = arith.constant 0 : i32
    %9 = arith.cmpi eq, %arg2, %c0_i32_8 : i32
    %10 = arith.extui %9 : i1 to i32
    %c0_i32_9 = arith.constant 0 : i32
    %11 = arith.cmpi ne, %10, %c0_i32_9 : i32
    scf.if %11 {
      %c0_10 = arith.constant 0 : index
      %c0_11 = arith.constant 0 : index
      %12 = vector.load %arg7[%c0_10, %c0_11] : memref<256x128xf32, #tpu.memory_space<vmem>>, vector<256x128xf32>
      %c0_12 = arith.constant 0 : index
      %c0_13 = arith.constant 0 : index
      %13 = vector.load %arg5[%c0_12, %c0_13] : memref<1x128xf32, #tpu.memory_space<vmem>>, vector<1x128xf32>
      %14 = vector.broadcast %13 : vector<1x128xf32> to vector<256x128xf32>
      %15 = arith.addf %12, %14 : vector<256x128xf32>
      %cst_14 = arith.constant 0.000000e+00 : f32
      %16 = vector.broadcast %cst_14 : f32 to vector<256x128xf32>
      %17 = arith.cmpf oge, %15, %16 : vector<256x128xf32>
      %cst_15 = arith.constant 0.00999999977 : f32
      %18 = vector.broadcast %cst_15 : f32 to vector<256x128xf32>
      %19 = arith.mulf %18, %15 : vector<256x128xf32>
      %20 = arith.select %17, %15, %19 : vector<256x128xi1>, vector<256x128xf32>
      %c0_16 = arith.constant 0 : index
      %c0_17 = arith.constant 0 : index
      %21 = vector.load %arg6[%c0_16, %c0_17] : memref<256x128xf32, #tpu.memory_space<vmem>>, vector<256x128xf32>
      tpu.vector_store %arg6[%c0_16, %c0_17], %20 {strides = array<i32>} : memref<256x128xf32, #tpu.memory_space<vmem>>, vector<256x128xf32>,
    } else {
    }
    return
  }
  func.func @transform_0(%arg0: i32, %arg1: i32, %arg2: i32) -> (i32, i32) {
    %c0_i32 = arith.constant 0 : i32
    return %arg0, %arg2 : i32, i32
  }
  func.func @transform_1(%arg0: i32, %arg1: i32, %arg2: i32) -> (i32, i32) {
    %c0_i32 = arith.constant 0 : i32
    return %arg2, %arg1 : i32, i32
  }
  func.func @transform_2(%arg0: i32, %arg1: i32, %arg2: i32) -> (i32, i32) {
    %c0_i32 = arith.constant 0 : i32
    %c0_i32_0 = arith.constant 0 : i32
    return %c0_i32, %arg1 : i32, i32
  }
  func.func @transform_3(%arg0: i32, %arg1: i32, %arg2: i32) -> (i32, i32) {
    %c0_i32 = arith.constant 0 : i32
    return %arg0, %arg1 : i32, i32
  }
}

module attributes {stable_mosaic.version = 11 : i64} {
  func.func @_conv_mm_kernel(%arg0: i32, %arg1: i32, %arg2: i32, %arg3: memref<128x512xbf16, #tpu.memory_space<vmem>>, %arg4: memref<512x128xbf16, #tpu.memory_space<vmem>>, %arg5: memref<1x128xf32, #tpu.memory_space<vmem>>, %arg6: memref<128x128xf32, #tpu.memory_space<vmem>>, %arg7: memref<128x128xf32, #tpu.memory_space<vmem>>) attributes {dimension_semantics = [#tpu.dimension_semantics<parallel>, #tpu.dimension_semantics<parallel>, #tpu.dimension_semantics<arbitrary>], iteration_bounds = array<i64: 1, 1, 1>, scalar_prefetch = 0 : i64, scratch_operands = 1 : i64, tpu.core_type = #tpu.core_type<tc>, window_params = [{transform_indices = @transform_0, window_bounds = array<i64: 128, 512>}, {transform_indices = @transform_1, window_bounds = array<i64: 512, 128>}, {transform_indices = @transform_2, window_bounds = array<i64: 1, 128>}, {transform_indices = @transform_3, window_bounds = array<i64: 128, 128>}]} {
    %c0_i32 = arith.constant 0 : i32
    %0 = arith.cmpi eq, %arg2, %c0_i32 : i32
    %1 = arith.extui %0 : i1 to i32
    %c0_i32_0 = arith.constant 0 : i32
    %2 = arith.cmpi ne, %1, %c0_i32_0 : i32
    scf.if %2 {
      %cst_10 = arith.constant 0.000000e+00 : f32
      %12 = vector.broadcast %cst_10 : f32 to vector<128x128xf32>
      %c0_11 = arith.constant 0 : index
      %c0_12 = arith.constant 0 : index
      %13 = vector.load %arg7[%c0_11, %c0_12] : memref<128x128xf32, #tpu.memory_space<vmem>>, vector<128x128xf32>
      tpu.vector_store %arg7[%c0_11, %c0_12], %12 {strides = array<i32>} : memref<128x128xf32, #tpu.memory_space<vmem>>, vector<128x128xf32>,
    } else {
    }
    %c0 = arith.constant 0 : index
    %c0_1 = arith.constant 0 : index
    %3 = vector.load %arg7[%c0, %c0_1] : memref<128x128xf32, #tpu.memory_space<vmem>>, vector<128x128xf32>
    %c0_2 = arith.constant 0 : index
    %c0_3 = arith.constant 0 : index
    %4 = vector.load %arg3[%c0_2, %c0_3] : memref<128x512xbf16, #tpu.memory_space<vmem>>, vector<128x512xbf16>
    %c0_4 = arith.constant 0 : index
    %c0_5 = arith.constant 0 : index
    %5 = vector.load %arg4[%c0_4, %c0_5] : memref<512x128xbf16, #tpu.memory_space<vmem>>, vector<512x128xbf16>
    %cst = arith.constant dense<0.000000e+00> : vector<128x128xf32>
    %6 = tpu.matmul %4, %5, %cst {dimension_numbers = #tpu.dot_dimension_numbers<[1], [0], [0], [1], [0, 0, 1, 1], [], []>} : vector<128x512xbf16>, vector<512x128xbf16>, vector<128x128xf32> -> vector<128x128xf32>
    %7 = arith.addf %3, %6 : vector<128x128xf32>
    %c0_6 = arith.constant 0 : index
    %c0_7 = arith.constant 0 : index
    %8 = vector.load %arg7[%c0_6, %c0_7] : memref<128x128xf32, #tpu.memory_space<vmem>>, vector<128x128xf32>
    tpu.vector_store %arg7[%c0_6, %c0_7], %7 {strides = array<i32>} : memref<128x128xf32, #tpu.memory_space<vmem>>, vector<128x128xf32>,
    %c0_i32_8 = arith.constant 0 : i32
    %9 = arith.cmpi eq, %arg2, %c0_i32_8 : i32
    %10 = arith.extui %9 : i1 to i32
    %c0_i32_9 = arith.constant 0 : i32
    %11 = arith.cmpi ne, %10, %c0_i32_9 : i32
    scf.if %11 {
      %c0_10 = arith.constant 0 : index
      %c0_11 = arith.constant 0 : index
      %12 = vector.load %arg7[%c0_10, %c0_11] : memref<128x128xf32, #tpu.memory_space<vmem>>, vector<128x128xf32>
      %c0_12 = arith.constant 0 : index
      %c0_13 = arith.constant 0 : index
      %13 = vector.load %arg5[%c0_12, %c0_13] : memref<1x128xf32, #tpu.memory_space<vmem>>, vector<1x128xf32>
      %14 = vector.broadcast %13 : vector<1x128xf32> to vector<128x128xf32>
      %15 = arith.addf %12, %14 : vector<128x128xf32>
      %c0_14 = arith.constant 0 : index
      %c0_15 = arith.constant 0 : index
      %16 = vector.load %arg6[%c0_14, %c0_15] : memref<128x128xf32, #tpu.memory_space<vmem>>, vector<128x128xf32>
      tpu.vector_store %arg6[%c0_14, %c0_15], %15 {strides = array<i32>} : memref<128x128xf32, #tpu.memory_space<vmem>>, vector<128x128xf32>,
    } else {
    }
    return
  }
  func.func @transform_0(%arg0: i32, %arg1: i32, %arg2: i32) -> (i32, i32) {
    %c0_i32 = arith.constant 0 : i32
    return %arg0, %arg2 : i32, i32
  }
  func.func @transform_1(%arg0: i32, %arg1: i32, %arg2: i32) -> (i32, i32) {
    %c0_i32 = arith.constant 0 : i32
    return %arg2, %arg1 : i32, i32
  }
  func.func @transform_2(%arg0: i32, %arg1: i32, %arg2: i32) -> (i32, i32) {
    %c0_i32 = arith.constant 0 : i32
    %c0_i32_0 = arith.constant 0 : i32
    return %c0_i32, %arg1 : i32, i32
  }
  func.func @transform_3(%arg0: i32, %arg1: i32, %arg2: i32) -> (i32, i32) {
    %c0_i32 = arith.constant 0 : i32
    return %arg0, %arg1 : i32, i32
  }
}

module attributes {stable_mosaic.version = 11 : i64} {
  func.func @_in_lrelu_kernel(%arg0: i32, %arg1: i32, %arg2: memref<1x64x128xf32, #tpu.memory_space<vmem>>, %arg3: memref<1x64x128xf32, #tpu.memory_space<vmem>>) attributes {dimension_semantics = [#tpu.dimension_semantics<parallel>, #tpu.dimension_semantics<parallel>], iteration_bounds = array<i64: 2, 1>, scalar_prefetch = 0 : i64, scratch_operands = 0 : i64, tpu.core_type = #tpu.core_type<tc>, window_params = [{transform_indices = @transform_0, window_bounds = array<i64: 1, 64, 128>}, {transform_indices = @transform_1, window_bounds = array<i64: 1, 64, 128>}]} {
    %c0 = arith.constant 0 : index
    %c0_0 = arith.constant 0 : index
    %c0_1 = arith.constant 0 : index
    %0 = vector.load %arg2[%c0, %c0_0, %c0_1] : memref<1x64x128xf32, #tpu.memory_space<vmem>>, vector<1x64x128xf32>
    %cst = arith.constant dense<0.000000e+00> : vector<1x128xf32>
    %1 = vector.multi_reduction <add>, %0, %cst [1] : vector<1x64x128xf32> to vector<1x128xf32>
    %2 = vector.shape_cast %1 : vector<1x128xf32> to vector<1x1x128xf32>
    %3 = arith.mulf %0, %0 : vector<1x64x128xf32>
    %cst_2 = arith.constant dense<0.000000e+00> : vector<1x128xf32>
    %4 = vector.multi_reduction <add>, %3, %cst_2 [1] : vector<1x64x128xf32> to vector<1x128xf32>
    %5 = vector.shape_cast %4 : vector<1x128xf32> to vector<1x1x128xf32>
    %cst_3 = arith.constant 1.562500e-02 : f32
    %6 = vector.broadcast %cst_3 : f32 to vector<1x1x128xf32>
    %7 = arith.mulf %2, %6 : vector<1x1x128xf32>
    %cst_4 = arith.constant 1.562500e-02 : f32
    %8 = vector.broadcast %cst_4 : f32 to vector<1x1x128xf32>
    %9 = arith.mulf %5, %8 : vector<1x1x128xf32>
    %10 = arith.mulf %7, %7 : vector<1x1x128xf32>
    %11 = arith.subf %9, %10 : vector<1x1x128xf32>
    %12 = vector.broadcast %7 : vector<1x1x128xf32> to vector<1x64x128xf32>
    %13 = arith.subf %0, %12 : vector<1x64x128xf32>
    %cst_5 = arith.constant 9.99999974E-6 : f32
    %14 = vector.broadcast %cst_5 : f32 to vector<1x1x128xf32>
    %15 = arith.addf %11, %14 : vector<1x1x128xf32>
    %16 = math.rsqrt %15 : vector<1x1x128xf32>
    %17 = vector.broadcast %16 : vector<1x1x128xf32> to vector<1x64x128xf32>
    %18 = arith.mulf %13, %17 : vector<1x64x128xf32>
    %cst_6 = arith.constant 0.000000e+00 : f32
    %19 = vector.broadcast %cst_6 : f32 to vector<1x64x128xf32>
    %20 = arith.cmpf oge, %18, %19 : vector<1x64x128xf32>
    %cst_7 = arith.constant 0.00999999977 : f32
    %21 = vector.broadcast %cst_7 : f32 to vector<1x64x128xf32>
    %22 = arith.mulf %21, %18 : vector<1x64x128xf32>
    %23 = arith.select %20, %18, %22 : vector<1x64x128xi1>, vector<1x64x128xf32>
    %c0_8 = arith.constant 0 : index
    %c0_9 = arith.constant 0 : index
    %c0_10 = arith.constant 0 : index
    %24 = vector.load %arg3[%c0_8, %c0_9, %c0_10] : memref<1x64x128xf32, #tpu.memory_space<vmem>>, vector<1x64x128xf32>
    tpu.vector_store %arg3[%c0_8, %c0_9, %c0_10], %23 {strides = array<i32>} : memref<1x64x128xf32, #tpu.memory_space<vmem>>, vector<1x64x128xf32>,
    return
  }
  func.func @transform_0(%arg0: i32, %arg1: i32) -> (i32, i32, i32) {
    %c0_i32 = arith.constant 0 : i32
    %c0_i32_0 = arith.constant 0 : i32
    return %arg0, %c0_i32, %arg1 : i32, i32, i32
  }
  func.func @transform_1(%arg0: i32, %arg1: i32) -> (i32, i32, i32) {
    %c0_i32 = arith.constant 0 : i32
    %c0_i32_0 = arith.constant 0 : i32
    return %arg0, %c0_i32, %arg1 : i32, i32, i32
  }
}

module attributes {stable_mosaic.version = 11 : i64} {
  func.func @_conv_mm_kernel(%arg0: i32, %arg1: i32, %arg2: i32, %arg3: memref<32x512xbf16, #tpu.memory_space<vmem>>, %arg4: memref<512x128xbf16, #tpu.memory_space<vmem>>, %arg5: memref<1x128xf32, #tpu.memory_space<vmem>>, %arg6: memref<32x128xf32, #tpu.memory_space<vmem>>, %arg7: memref<32x128xf32, #tpu.memory_space<vmem>>) attributes {dimension_semantics = [#tpu.dimension_semantics<parallel>, #tpu.dimension_semantics<parallel>, #tpu.dimension_semantics<arbitrary>], iteration_bounds = array<i64: 1, 1, 2>, scalar_prefetch = 0 : i64, scratch_operands = 1 : i64, tpu.core_type = #tpu.core_type<tc>, window_params = [{transform_indices = @transform_0, window_bounds = array<i64: 32, 512>}, {transform_indices = @transform_1, window_bounds = array<i64: 512, 128>}, {transform_indices = @transform_2, window_bounds = array<i64: 1, 128>}, {transform_indices = @transform_3, window_bounds = array<i64: 32, 128>}]} {
    %c0_i32 = arith.constant 0 : i32
    %0 = arith.cmpi eq, %arg2, %c0_i32 : i32
    %1 = arith.extui %0 : i1 to i32
    %c0_i32_0 = arith.constant 0 : i32
    %2 = arith.cmpi ne, %1, %c0_i32_0 : i32
    scf.if %2 {
      %cst_9 = arith.constant 0.000000e+00 : f32
      %12 = vector.broadcast %cst_9 : f32 to vector<32x128xf32>
      %c0_10 = arith.constant 0 : index
      %c0_11 = arith.constant 0 : index
      %13 = vector.load %arg7[%c0_10, %c0_11] : memref<32x128xf32, #tpu.memory_space<vmem>>, vector<32x128xf32>
      tpu.vector_store %arg7[%c0_10, %c0_11], %12 {strides = array<i32>} : memref<32x128xf32, #tpu.memory_space<vmem>>, vector<32x128xf32>,
    } else {
    }
    %c0 = arith.constant 0 : index
    %c0_1 = arith.constant 0 : index
    %3 = vector.load %arg7[%c0, %c0_1] : memref<32x128xf32, #tpu.memory_space<vmem>>, vector<32x128xf32>
    %c0_2 = arith.constant 0 : index
    %c0_3 = arith.constant 0 : index
    %4 = vector.load %arg3[%c0_2, %c0_3] : memref<32x512xbf16, #tpu.memory_space<vmem>>, vector<32x512xbf16>
    %c0_4 = arith.constant 0 : index
    %c0_5 = arith.constant 0 : index
    %5 = vector.load %arg4[%c0_4, %c0_5] : memref<512x128xbf16, #tpu.memory_space<vmem>>, vector<512x128xbf16>
    %cst = arith.constant dense<0.000000e+00> : vector<32x128xf32>
    %6 = tpu.matmul %4, %5, %cst {dimension_numbers = #tpu.dot_dimension_numbers<[1], [0], [0], [1], [0, 0, 1, 1], [], []>} : vector<32x512xbf16>, vector<512x128xbf16>, vector<32x128xf32> -> vector<32x128xf32>
    %7 = arith.addf %3, %6 : vector<32x128xf32>
    %c0_6 = arith.constant 0 : index
    %c0_7 = arith.constant 0 : index
    %8 = vector.load %arg7[%c0_6, %c0_7] : memref<32x128xf32, #tpu.memory_space<vmem>>, vector<32x128xf32>
    tpu.vector_store %arg7[%c0_6, %c0_7], %7 {strides = array<i32>} : memref<32x128xf32, #tpu.memory_space<vmem>>, vector<32x128xf32>,
    %c1_i32 = arith.constant 1 : i32
    %9 = arith.cmpi eq, %arg2, %c1_i32 : i32
    %10 = arith.extui %9 : i1 to i32
    %c0_i32_8 = arith.constant 0 : i32
    %11 = arith.cmpi ne, %10, %c0_i32_8 : i32
    scf.if %11 {
      %c0_9 = arith.constant 0 : index
      %c0_10 = arith.constant 0 : index
      %12 = vector.load %arg7[%c0_9, %c0_10] : memref<32x128xf32, #tpu.memory_space<vmem>>, vector<32x128xf32>
      %c0_11 = arith.constant 0 : index
      %c0_12 = arith.constant 0 : index
      %13 = vector.load %arg5[%c0_11, %c0_12] : memref<1x128xf32, #tpu.memory_space<vmem>>, vector<1x128xf32>
      %14 = vector.broadcast %13 : vector<1x128xf32> to vector<32x128xf32>
      %15 = arith.addf %12, %14 : vector<32x128xf32>
      %c0_13 = arith.constant 0 : index
      %c0_14 = arith.constant 0 : index
      %16 = vector.load %arg6[%c0_13, %c0_14] : memref<32x128xf32, #tpu.memory_space<vmem>>, vector<32x128xf32>
      tpu.vector_store %arg6[%c0_13, %c0_14], %15 {strides = array<i32>} : memref<32x128xf32, #tpu.memory_space<vmem>>, vector<32x128xf32>,
    } else {
    }
    return
  }
  func.func @transform_0(%arg0: i32, %arg1: i32, %arg2: i32) -> (i32, i32) {
    %c0_i32 = arith.constant 0 : i32
    return %arg0, %arg2 : i32, i32
  }
  func.func @transform_1(%arg0: i32, %arg1: i32, %arg2: i32) -> (i32, i32) {
    %c0_i32 = arith.constant 0 : i32
    return %arg2, %arg1 : i32, i32
  }
  func.func @transform_2(%arg0: i32, %arg1: i32, %arg2: i32) -> (i32, i32) {
    %c0_i32 = arith.constant 0 : i32
    %c0_i32_0 = arith.constant 0 : i32
    return %c0_i32, %arg1 : i32, i32
  }
  func.func @transform_3(%arg0: i32, %arg1: i32, %arg2: i32) -> (i32, i32) {
    %c0_i32 = arith.constant 0 : i32
    return %arg0, %arg1 : i32, i32
  }
}

module attributes {stable_mosaic.version = 11 : i64} {
  func.func @_in_lrelu_kernel(%arg0: i32, %arg1: i32, %arg2: memref<1x16x128xf32, #tpu.memory_space<vmem>>, %arg3: memref<1x16x128xf32, #tpu.memory_space<vmem>>) attributes {dimension_semantics = [#tpu.dimension_semantics<parallel>, #tpu.dimension_semantics<parallel>], iteration_bounds = array<i64: 2, 1>, scalar_prefetch = 0 : i64, scratch_operands = 0 : i64, tpu.core_type = #tpu.core_type<tc>, window_params = [{transform_indices = @transform_0, window_bounds = array<i64: 1, 16, 128>}, {transform_indices = @transform_1, window_bounds = array<i64: 1, 16, 128>}]} {
    %c0 = arith.constant 0 : index
    %c0_0 = arith.constant 0 : index
    %c0_1 = arith.constant 0 : index
    %0 = vector.load %arg2[%c0, %c0_0, %c0_1] : memref<1x16x128xf32, #tpu.memory_space<vmem>>, vector<1x16x128xf32>
    %cst = arith.constant dense<0.000000e+00> : vector<1x128xf32>
    %1 = vector.multi_reduction <add>, %0, %cst [1] : vector<1x16x128xf32> to vector<1x128xf32>
    %2 = vector.shape_cast %1 : vector<1x128xf32> to vector<1x1x128xf32>
    %3 = arith.mulf %0, %0 : vector<1x16x128xf32>
    %cst_2 = arith.constant dense<0.000000e+00> : vector<1x128xf32>
    %4 = vector.multi_reduction <add>, %3, %cst_2 [1] : vector<1x16x128xf32> to vector<1x128xf32>
    %5 = vector.shape_cast %4 : vector<1x128xf32> to vector<1x1x128xf32>
    %cst_3 = arith.constant 6.250000e-02 : f32
    %6 = vector.broadcast %cst_3 : f32 to vector<1x1x128xf32>
    %7 = arith.mulf %2, %6 : vector<1x1x128xf32>
    %cst_4 = arith.constant 6.250000e-02 : f32
    %8 = vector.broadcast %cst_4 : f32 to vector<1x1x128xf32>
    %9 = arith.mulf %5, %8 : vector<1x1x128xf32>
    %10 = arith.mulf %7, %7 : vector<1x1x128xf32>
    %11 = arith.subf %9, %10 : vector<1x1x128xf32>
    %12 = vector.broadcast %7 : vector<1x1x128xf32> to vector<1x16x128xf32>
    %13 = arith.subf %0, %12 : vector<1x16x128xf32>
    %cst_5 = arith.constant 9.99999974E-6 : f32
    %14 = vector.broadcast %cst_5 : f32 to vector<1x1x128xf32>
    %15 = arith.addf %11, %14 : vector<1x1x128xf32>
    %16 = math.rsqrt %15 : vector<1x1x128xf32>
    %17 = vector.broadcast %16 : vector<1x1x128xf32> to vector<1x16x128xf32>
    %18 = arith.mulf %13, %17 : vector<1x16x128xf32>
    %cst_6 = arith.constant 0.000000e+00 : f32
    %19 = vector.broadcast %cst_6 : f32 to vector<1x16x128xf32>
    %20 = arith.cmpf oge, %18, %19 : vector<1x16x128xf32>
    %cst_7 = arith.constant 0.00999999977 : f32
    %21 = vector.broadcast %cst_7 : f32 to vector<1x16x128xf32>
    %22 = arith.mulf %21, %18 : vector<1x16x128xf32>
    %23 = arith.select %20, %18, %22 : vector<1x16x128xi1>, vector<1x16x128xf32>
    %c0_8 = arith.constant 0 : index
    %c0_9 = arith.constant 0 : index
    %c0_10 = arith.constant 0 : index
    %24 = vector.load %arg3[%c0_8, %c0_9, %c0_10] : memref<1x16x128xf32, #tpu.memory_space<vmem>>, vector<1x16x128xf32>
    tpu.vector_store %arg3[%c0_8, %c0_9, %c0_10], %23 {strides = array<i32>} : memref<1x16x128xf32, #tpu.memory_space<vmem>>, vector<1x16x128xf32>,
    return
  }
  func.func @transform_0(%arg0: i32, %arg1: i32) -> (i32, i32, i32) {
    %c0_i32 = arith.constant 0 : i32
    %c0_i32_0 = arith.constant 0 : i32
    return %arg0, %c0_i32, %arg1 : i32, i32, i32
  }
  func.func @transform_1(%arg0: i32, %arg1: i32) -> (i32, i32, i32) {
    %c0_i32 = arith.constant 0 : i32
    %c0_i32_0 = arith.constant 0 : i32
    return %arg0, %c0_i32, %arg1 : i32, i32, i32
  }
}

module attributes {stable_mosaic.version = 11 : i64} {
  func.func @_conv_mm_kernel(%arg0: i32, %arg1: i32, %arg2: i32, %arg3: memref<24x512xbf16, #tpu.memory_space<vmem>>, %arg4: memref<512x256xbf16, #tpu.memory_space<vmem>>, %arg5: memref<1x256xf32, #tpu.memory_space<vmem>>, %arg6: memref<24x256xf32, #tpu.memory_space<vmem>>, %arg7: memref<24x256xf32, #tpu.memory_space<vmem>>) attributes {dimension_semantics = [#tpu.dimension_semantics<parallel>, #tpu.dimension_semantics<parallel>, #tpu.dimension_semantics<arbitrary>], iteration_bounds = array<i64: 1, 1, 4>, scalar_prefetch = 0 : i64, scratch_operands = 1 : i64, tpu.core_type = #tpu.core_type<tc>, window_params = [{transform_indices = @transform_0, window_bounds = array<i64: 24, 512>}, {transform_indices = @transform_1, window_bounds = array<i64: 512, 256>}, {transform_indices = @transform_2, window_bounds = array<i64: 1, 256>}, {transform_indices = @transform_3, window_bounds = array<i64: 24, 256>}]} {
    %c0_i32 = arith.constant 0 : i32
    %0 = arith.cmpi eq, %arg2, %c0_i32 : i32
    %1 = arith.extui %0 : i1 to i32
    %c0_i32_0 = arith.constant 0 : i32
    %2 = arith.cmpi ne, %1, %c0_i32_0 : i32
    scf.if %2 {
      %cst_9 = arith.constant 0.000000e+00 : f32
      %12 = vector.broadcast %cst_9 : f32 to vector<24x256xf32>
      %c0_10 = arith.constant 0 : index
      %c0_11 = arith.constant 0 : index
      %13 = vector.load %arg7[%c0_10, %c0_11] : memref<24x256xf32, #tpu.memory_space<vmem>>, vector<24x256xf32>
      tpu.vector_store %arg7[%c0_10, %c0_11], %12 {strides = array<i32>} : memref<24x256xf32, #tpu.memory_space<vmem>>, vector<24x256xf32>,
    } else {
    }
    %c0 = arith.constant 0 : index
    %c0_1 = arith.constant 0 : index
    %3 = vector.load %arg7[%c0, %c0_1] : memref<24x256xf32, #tpu.memory_space<vmem>>, vector<24x256xf32>
    %c0_2 = arith.constant 0 : index
    %c0_3 = arith.constant 0 : index
    %4 = vector.load %arg3[%c0_2, %c0_3] : memref<24x512xbf16, #tpu.memory_space<vmem>>, vector<24x512xbf16>
    %c0_4 = arith.constant 0 : index
    %c0_5 = arith.constant 0 : index
    %5 = vector.load %arg4[%c0_4, %c0_5] : memref<512x256xbf16, #tpu.memory_space<vmem>>, vector<512x256xbf16>
    %cst = arith.constant dense<0.000000e+00> : vector<24x256xf32>
    %6 = tpu.matmul %4, %5, %cst {dimension_numbers = #tpu.dot_dimension_numbers<[1], [0], [0], [1], [0, 0, 1, 1], [], []>} : vector<24x512xbf16>, vector<512x256xbf16>, vector<24x256xf32> -> vector<24x256xf32>
    %7 = arith.addf %3, %6 : vector<24x256xf32>
    %c0_6 = arith.constant 0 : index
    %c0_7 = arith.constant 0 : index
    %8 = vector.load %arg7[%c0_6, %c0_7] : memref<24x256xf32, #tpu.memory_space<vmem>>, vector<24x256xf32>
    tpu.vector_store %arg7[%c0_6, %c0_7], %7 {strides = array<i32>} : memref<24x256xf32, #tpu.memory_space<vmem>>, vector<24x256xf32>,
    %c3_i32 = arith.constant 3 : i32
    %9 = arith.cmpi eq, %arg2, %c3_i32 : i32
    %10 = arith.extui %9 : i1 to i32
    %c0_i32_8 = arith.constant 0 : i32
    %11 = arith.cmpi ne, %10, %c0_i32_8 : i32
    scf.if %11 {
      %c0_9 = arith.constant 0 : index
      %c0_10 = arith.constant 0 : index
      %12 = vector.load %arg7[%c0_9, %c0_10] : memref<24x256xf32, #tpu.memory_space<vmem>>, vector<24x256xf32>
      %c0_11 = arith.constant 0 : index
      %c0_12 = arith.constant 0 : index
      %13 = vector.load %arg5[%c0_11, %c0_12] : memref<1x256xf32, #tpu.memory_space<vmem>>, vector<1x256xf32>
      %14 = vector.broadcast %13 : vector<1x256xf32> to vector<24x256xf32>
      %15 = arith.addf %12, %14 : vector<24x256xf32>
      %c0_13 = arith.constant 0 : index
      %c0_14 = arith.constant 0 : index
      %16 = vector.load %arg6[%c0_13, %c0_14] : memref<24x256xf32, #tpu.memory_space<vmem>>, vector<24x256xf32>
      tpu.vector_store %arg6[%c0_13, %c0_14], %15 {strides = array<i32>} : memref<24x256xf32, #tpu.memory_space<vmem>>, vector<24x256xf32>,
    } else {
    }
    return
  }
  func.func @transform_0(%arg0: i32, %arg1: i32, %arg2: i32) -> (i32, i32) {
    %c0_i32 = arith.constant 0 : i32
    return %arg0, %arg2 : i32, i32
  }
  func.func @transform_1(%arg0: i32, %arg1: i32, %arg2: i32) -> (i32, i32) {
    %c0_i32 = arith.constant 0 : i32
    return %arg2, %arg1 : i32, i32
  }
  func.func @transform_2(%arg0: i32, %arg1: i32, %arg2: i32) -> (i32, i32) {
    %c0_i32 = arith.constant 0 : i32
    %c0_i32_0 = arith.constant 0 : i32
    return %c0_i32, %arg1 : i32, i32
  }
  func.func @transform_3(%arg0: i32, %arg1: i32, %arg2: i32) -> (i32, i32) {
    %c0_i32 = arith.constant 0 : i32
    return %arg0, %arg1 : i32, i32
  }
}

module attributes {stable_mosaic.version = 11 : i64} {
  func.func @_in_lrelu_kernel(%arg0: i32, %arg1: i32, %arg2: memref<1x9x128xf32, #tpu.memory_space<vmem>>, %arg3: memref<1x9x128xf32, #tpu.memory_space<vmem>>) attributes {dimension_semantics = [#tpu.dimension_semantics<parallel>, #tpu.dimension_semantics<parallel>], iteration_bounds = array<i64: 2, 2>, scalar_prefetch = 0 : i64, scratch_operands = 0 : i64, tpu.core_type = #tpu.core_type<tc>, window_params = [{transform_indices = @transform_0, window_bounds = array<i64: 1, 9, 128>}, {transform_indices = @transform_1, window_bounds = array<i64: 1, 9, 128>}]} {
    %c0 = arith.constant 0 : index
    %c0_0 = arith.constant 0 : index
    %c0_1 = arith.constant 0 : index
    %0 = vector.load %arg2[%c0, %c0_0, %c0_1] : memref<1x9x128xf32, #tpu.memory_space<vmem>>, vector<1x9x128xf32>
    %cst = arith.constant dense<0.000000e+00> : vector<1x128xf32>
    %1 = vector.multi_reduction <add>, %0, %cst [1] : vector<1x9x128xf32> to vector<1x128xf32>
    %2 = vector.shape_cast %1 : vector<1x128xf32> to vector<1x1x128xf32>
    %3 = arith.mulf %0, %0 : vector<1x9x128xf32>
    %cst_2 = arith.constant dense<0.000000e+00> : vector<1x128xf32>
    %4 = vector.multi_reduction <add>, %3, %cst_2 [1] : vector<1x9x128xf32> to vector<1x128xf32>
    %5 = vector.shape_cast %4 : vector<1x128xf32> to vector<1x1x128xf32>
    %cst_3 = arith.constant 0.111111112 : f32
    %6 = vector.broadcast %cst_3 : f32 to vector<1x1x128xf32>
    %7 = arith.mulf %2, %6 : vector<1x1x128xf32>
    %cst_4 = arith.constant 0.111111112 : f32
    %8 = vector.broadcast %cst_4 : f32 to vector<1x1x128xf32>
    %9 = arith.mulf %5, %8 : vector<1x1x128xf32>
    %10 = arith.mulf %7, %7 : vector<1x1x128xf32>
    %11 = arith.subf %9, %10 : vector<1x1x128xf32>
    %12 = vector.broadcast %7 : vector<1x1x128xf32> to vector<1x9x128xf32>
    %13 = arith.subf %0, %12 : vector<1x9x128xf32>
    %cst_5 = arith.constant 9.99999974E-6 : f32
    %14 = vector.broadcast %cst_5 : f32 to vector<1x1x128xf32>
    %15 = arith.addf %11, %14 : vector<1x1x128xf32>
    %16 = math.rsqrt %15 : vector<1x1x128xf32>
    %17 = vector.broadcast %16 : vector<1x1x128xf32> to vector<1x9x128xf32>
    %18 = arith.mulf %13, %17 : vector<1x9x128xf32>
    %cst_6 = arith.constant 0.000000e+00 : f32
    %19 = vector.broadcast %cst_6 : f32 to vector<1x9x128xf32>
    %20 = arith.cmpf oge, %18, %19 : vector<1x9x128xf32>
    %cst_7 = arith.constant 0.00999999977 : f32
    %21 = vector.broadcast %cst_7 : f32 to vector<1x9x128xf32>
    %22 = arith.mulf %21, %18 : vector<1x9x128xf32>
    %23 = arith.select %20, %18, %22 : vector<1x9x128xi1>, vector<1x9x128xf32>
    %c0_8 = arith.constant 0 : index
    %c0_9 = arith.constant 0 : index
    %c0_10 = arith.constant 0 : index
    %24 = vector.load %arg3[%c0_8, %c0_9, %c0_10] : memref<1x9x128xf32, #tpu.memory_space<vmem>>, vector<1x9x128xf32>
    tpu.vector_store %arg3[%c0_8, %c0_9, %c0_10], %23 {strides = array<i32>} : memref<1x9x128xf32, #tpu.memory_space<vmem>>, vector<1x9x128xf32>,
    return
  }
  func.func @transform_0(%arg0: i32, %arg1: i32) -> (i32, i32, i32) {
    %c0_i32 = arith.constant 0 : i32
    %c0_i32_0 = arith.constant 0 : i32
    return %arg0, %c0_i32, %arg1 : i32, i32, i32
  }
  func.func @transform_1(%arg0: i32, %arg1: i32) -> (i32, i32, i32) {
    %c0_i32 = arith.constant 0 : i32
    %c0_i32_0 = arith.constant 0 : i32
    return %arg0, %c0_i32, %arg1 : i32, i32, i32
  }
}

module attributes {stable_mosaic.version = 11 : i64} {
  func.func @_conv_mm_kernel(%arg0: i32, %arg1: i32, %arg2: i32, %arg3: memref<8x512xbf16, #tpu.memory_space<vmem>>, %arg4: memref<512x128xbf16, #tpu.memory_space<vmem>>, %arg5: memref<1x128xf32, #tpu.memory_space<vmem>>, %arg6: memref<8x128xf32, #tpu.memory_space<vmem>>, %arg7: memref<8x128xf32, #tpu.memory_space<vmem>>) attributes {dimension_semantics = [#tpu.dimension_semantics<parallel>, #tpu.dimension_semantics<parallel>, #tpu.dimension_semantics<arbitrary>], iteration_bounds = array<i64: 1, 1, 8>, scalar_prefetch = 0 : i64, scratch_operands = 1 : i64, tpu.core_type = #tpu.core_type<tc>, window_params = [{transform_indices = @transform_0, window_bounds = array<i64: 8, 512>}, {transform_indices = @transform_1, window_bounds = array<i64: 512, 128>}, {transform_indices = @transform_2, window_bounds = array<i64: 1, 128>}, {transform_indices = @transform_3, window_bounds = array<i64: 8, 128>}]} {
    %c0_i32 = arith.constant 0 : i32
    %0 = arith.cmpi eq, %arg2, %c0_i32 : i32
    %1 = arith.extui %0 : i1 to i32
    %c0_i32_0 = arith.constant 0 : i32
    %2 = arith.cmpi ne, %1, %c0_i32_0 : i32
    scf.if %2 {
      %cst_9 = arith.constant 0.000000e+00 : f32
      %12 = vector.broadcast %cst_9 : f32 to vector<8x128xf32>
      %c0_10 = arith.constant 0 : index
      %c0_11 = arith.constant 0 : index
      %13 = vector.load %arg7[%c0_10, %c0_11] : memref<8x128xf32, #tpu.memory_space<vmem>>, vector<8x128xf32>
      tpu.vector_store %arg7[%c0_10, %c0_11], %12 {strides = array<i32>} : memref<8x128xf32, #tpu.memory_space<vmem>>, vector<8x128xf32>,
    } else {
    }
    %c0 = arith.constant 0 : index
    %c0_1 = arith.constant 0 : index
    %3 = vector.load %arg7[%c0, %c0_1] : memref<8x128xf32, #tpu.memory_space<vmem>>, vector<8x128xf32>
    %c0_2 = arith.constant 0 : index
    %c0_3 = arith.constant 0 : index
    %4 = vector.load %arg3[%c0_2, %c0_3] : memref<8x512xbf16, #tpu.memory_space<vmem>>, vector<8x512xbf16>
    %c0_4 = arith.constant 0 : index
    %c0_5 = arith.constant 0 : index
    %5 = vector.load %arg4[%c0_4, %c0_5] : memref<512x128xbf16, #tpu.memory_space<vmem>>, vector<512x128xbf16>
    %cst = arith.constant dense<0.000000e+00> : vector<8x128xf32>
    %6 = tpu.matmul %4, %5, %cst {dimension_numbers = #tpu.dot_dimension_numbers<[1], [0], [0], [1], [0, 0, 1, 1], [], []>} : vector<8x512xbf16>, vector<512x128xbf16>, vector<8x128xf32> -> vector<8x128xf32>
    %7 = arith.addf %3, %6 : vector<8x128xf32>
    %c0_6 = arith.constant 0 : index
    %c0_7 = arith.constant 0 : index
    %8 = vector.load %arg7[%c0_6, %c0_7] : memref<8x128xf32, #tpu.memory_space<vmem>>, vector<8x128xf32>
    tpu.vector_store %arg7[%c0_6, %c0_7], %7 {strides = array<i32>} : memref<8x128xf32, #tpu.memory_space<vmem>>, vector<8x128xf32>,
    %c7_i32 = arith.constant 7 : i32
    %9 = arith.cmpi eq, %arg2, %c7_i32 : i32
    %10 = arith.extui %9 : i1 to i32
    %c0_i32_8 = arith.constant 0 : i32
    %11 = arith.cmpi ne, %10, %c0_i32_8 : i32
    scf.if %11 {
      %c0_9 = arith.constant 0 : index
      %c0_10 = arith.constant 0 : index
      %12 = vector.load %arg7[%c0_9, %c0_10] : memref<8x128xf32, #tpu.memory_space<vmem>>, vector<8x128xf32>
      %c0_11 = arith.constant 0 : index
      %c0_12 = arith.constant 0 : index
      %13 = vector.load %arg5[%c0_11, %c0_12] : memref<1x128xf32, #tpu.memory_space<vmem>>, vector<1x128xf32>
      %14 = vector.broadcast %13 : vector<1x128xf32> to vector<8x128xf32>
      %15 = arith.addf %12, %14 : vector<8x128xf32>
      %c0_13 = arith.constant 0 : index
      %c0_14 = arith.constant 0 : index
      %16 = vector.load %arg6[%c0_13, %c0_14] : memref<8x128xf32, #tpu.memory_space<vmem>>, vector<8x128xf32>
      tpu.vector_store %arg6[%c0_13, %c0_14], %15 {strides = array<i32>} : memref<8x128xf32, #tpu.memory_space<vmem>>, vector<8x128xf32>,
    } else {
    }
    return
  }
  func.func @transform_0(%arg0: i32, %arg1: i32, %arg2: i32) -> (i32, i32) {
    %c0_i32 = arith.constant 0 : i32
    return %arg0, %arg2 : i32, i32
  }
  func.func @transform_1(%arg0: i32, %arg1: i32, %arg2: i32) -> (i32, i32) {
    %c0_i32 = arith.constant 0 : i32
    return %arg2, %arg1 : i32, i32
  }
  func.func @transform_2(%arg0: i32, %arg1: i32, %arg2: i32) -> (i32, i32) {
    %c0_i32 = arith.constant 0 : i32
    %c0_i32_0 = arith.constant 0 : i32
    return %c0_i32, %arg1 : i32, i32
  }
  func.func @transform_3(%arg0: i32, %arg1: i32, %arg2: i32) -> (i32, i32) {
    %c0_i32 = arith.constant 0 : i32
    return %arg0, %arg1 : i32, i32
  }
}

</mosaic_0001>

<llo_original>
// kernel: discriminator_forward.8
$region0: #{discriminator_forward.8}
  #allocation0 [shape = 'u32[]', space=smem, size = 0x4, offset = 0x4, fixed_abs, tag = 'smem constant byte address 0x4 - core index']
  #allocation1 [shape = 'u32[72,128]{1,0:T(1,128)}', space=vmem, size = 0x9000, scoped, tag = 'internal scratch']
  #allocation2 [shape = 'f32[256,128]{1,0:T(8,128)}', space=vmem, size = 0x20000, scoped, tag = 'scratch operand']
  %s0 = inlined_call_operand.vmem [shape: bf16[512,128], index: 0, kind: input, shape index: {}]
  %s1 = inlined_call_operand.vmem [shape: bf16[128,128], index: 1, kind: input, shape index: {}]
  %s2 = inlined_call_operand.vmem [shape: f32[1,128], index: 2, kind: input, shape index: {}]
  %s3 = inlined_call_operand.vmem [shape: f32[512,128], index: 3, kind: output, shape index: {}]
  %s4 = sld [smem:[#allocation0]]
  $region53: #{discriminator_forward.8} parent=0
    _
  %s6 = ssub.s32 1, %s4
  %s7 = scalar_select 0, %s6, %s4
  loop: start=0, step=1, limit=4
  $region2: #{discriminator_forward.8} parent=0 // loop_pre_header
    _
  $region3: #{discriminator_forward.8} parent=0 // loop_header
    %s9 = sphi 0, %s13
    %p10 = scmp.ge.s32.totalorder %s9, 4
    %s16 = sphi 0, %s35
    %s17 = sphi 0, %s31
    %s18 = sphi 0, %s27
    %s19 = sphi 0, %s16
    %s20 = sphi 0, %s17
    %s21 = sphi 0, %s18
    %s22 = sphi 0, %s19
    %s23 = sphi 0, %s20
    %s24 = sphi 0, %s21
    %s40 = sphi 0, %s42
    %s43 = sphi 0, %s40
    %s44 = sphi 0, %s43
    %s60 = sphi 0, %s44
    %s68 = sphi 0, %s70
    %s71 = sphi 0, %s68
    %s72 = sphi 0, %s71
    %s88 = sphi 0, %s72
    %s94 = sphi 0, %s96
    %s97 = sphi 0, %s94
    %s98 = sphi 0, %s97
    %s114 = sphi 0, %s98
    %s122 = sphi 0, %s124
    %s125 = sphi 0, %s122
    %s126 = sphi 0, %s125
    %s142 = sphi 0, %s126
  $region4: #{discriminator_forward.8} parent=0 // loop_header_branch
    %12 = sbr.rel (%p10) target = $region8
  $region5: #{discriminator_forward.8} parent=0 // loop_body
    %s14 = ssub.s32 %s9, 1
    %s15 = ssub.s32 %s9, 2
    %s25 = sadd.s32 1, %s18
    %p26 = scmp.ge.s32.totalorder %s25, 1
    %s27 = scalar_select %p26, 0, %s25
    %s28 = sadd.s32 1, %s17
    %s29 = scalar_select %p26, %s28, %s17
    %p30 = scmp.ge.s32.totalorder %s29, 1
    %s31 = scalar_select %p30, 0, %s29
    %s32 = sadd.s32 1, %s16
    %s33 = scalar_select %p30, %s32, %s16
    %p34 = scmp.ge.s32.totalorder %s33, 2
    %s35 = scalar_select %p34, 0, %s33
    %s36 = ssub.s32 %s16, %s35
    %s37 = ssub.s32 %s18, %s27
    %s38 = sor.u32 %s36, %s37
    %p39 = scmp.eq.s32.totalorder %s38, 0
    %s41 = sadd.s32 %s40, 1
    %s42 = scalar_select %p39, %s40, %s41
    %p45 = pneg %p39
    %p46 = scmp.eq.s32.totalorder %s9, 1
    %p47 = por %p45, %p46
    %p48 = scmp.ne.s32.totalorder %s40, %s43
    %p49 = scmp.eq.s32.totalorder %s9, 0
    %p50 = por %p48, %p49
    %p51 = scmp.ne.s32.totalorder %s40, %s43
    %p52 = scmp.eq.s32.totalorder %s14, 1
    %p53 = por %p51, %p52
    %p54 = scmp.ne.s32.totalorder %s43, %s44
    %p55 = scmp.eq.s32.totalorder %s14, 0
    %p56 = por %p54, %p55
    %p57 = scmp.ne.s32.totalorder %s43, %s44
    %p58 = scmp.eq.s32.totalorder %s15, 1
    %p59 = por %p57, %p58
    %p61 = scmp.ne.s32.totalorder %s44, %s60
    %p62 = scmp.eq.s32.totalorder %s15, 0
    %p63 = por %p61, %p62
    %s64 = ssub.s32 %s18, %s27
    %s65 = ssub.s32 %s17, %s31
    %s66 = sor.u32 %s64, %s65
    %p67 = scmp.eq.s32.totalorder %s66, 0
    %s69 = sadd.s32 %s68, 1
    %s70 = scalar_select %p67, %s68, %s69
    %p73 = pneg %p67
    %p74 = scmp.eq.s32.totalorder %s9, 1
    %p75 = por %p73, %p74
    %p76 = scmp.ne.s32.totalorder %s68, %s71
    %p77 = scmp.eq.s32.totalorder %s9, 0
    %p78 = por %p76, %p77
    %p79 = scmp.ne.s32.totalorder %s68, %s71
    %p80 = scmp.eq.s32.totalorder %s14, 1
    %p81 = por %p79, %p80
    %p82 = scmp.ne.s32.totalorder %s71, %s72
    %p83 = scmp.eq.s32.totalorder %s14, 0
    %p84 = por %p82, %p83
    %p85 = scmp.ne.s32.totalorder %s71, %s72
    %p86 = scmp.eq.s32.totalorder %s15, 1
    %p87 = por %p85, %p86
    %p89 = scmp.ne.s32.totalorder %s72, %s88
    %p90 = scmp.eq.s32.totalorder %s15, 0
    %p91 = por %p89, %p90
    %s92 = ssub.s32 %s17, %s31
    %p93 = scmp.eq.s32.totalorder %s92, 0
    %s95 = sadd.s32 %s94, 1
    %s96 = scalar_select %p93, %s94, %s95
    %p99 = pneg %p93
    %p100 = scmp.eq.s32.totalorder %s9, 1
    %p101 = por %p99, %p100
    %p102 = scmp.ne.s32.totalorder %s94, %s97
    %p103 = scmp.eq.s32.totalorder %s9, 0
    %p104 = por %p102, %p103
    %p105 = scmp.ne.s32.totalorder %s94, %s97
    %p106 = scmp.eq.s32.totalorder %s14, 1
    %p107 = por %p105, %p106
    %p108 = scmp.ne.s32.totalorder %s97, %s98
    %p109 = scmp.eq.s32.totalorder %s14, 0
    %p110 = por %p108, %p109
    %p111 = scmp.ne.s32.totalorder %s97, %s98
    %p112 = scmp.eq.s32.totalorder %s15, 1
    %p113 = por %p111, %p112
    %p115 = scmp.ne.s32.totalorder %s98, %s114
    %p116 = scmp.eq.s32.totalorder %s15, 0
    %p117 = por %p115, %p116
    %s118 = ssub.s32 %s16, %s35
    %s119 = ssub.s32 %s17, %s31
    %s120 = sor.u32 %s118, %s119
    %p121 = scmp.eq.s32.totalorder %s120, 0
    %s123 = sadd.s32 %s122, 1
    %s124 = scalar_select %p121, %s122, %s123
    %p127 = pneg %p121
    %p128 = scmp.eq.s32.totalorder %s9, 1
    %p129 = por %p127, %p128
    %p130 = scmp.ne.s32.totalorder %s122, %s125
    %p131 = scmp.eq.s32.totalorder %s9, 0
    %p132 = por %p130, %p131
    %p133 = scmp.ne.s32.totalorder %s122, %s125
    %p134 = scmp.eq.s32.totalorder %s14, 1
    %p135 = por %p133, %p134
    %p136 = scmp.ne.s32.totalorder %s125, %s126
    %p137 = scmp.eq.s32.totalorder %s14, 0
    %p138 = por %p136, %p137
    %p139 = scmp.ne.s32.totalorder %s125, %s126
    %p140 = scmp.eq.s32.totalorder %s15, 1
    %p141 = por %p139, %p140
    %p143 = scmp.ne.s32.totalorder %s126, %s142
    %p144 = scmp.eq.s32.totalorder %s15, 0
    %p145 = por %p143, %p144
    %p146 = scmp.le.s32.totalorder 1, %s9
    %p147 = scmp.lt.s32.totalorder %s9, 3
    %p148 = pnand %p146, %p147
    %p149 = pneg %p148
    // Predicated region
    $region9: #{discriminator_forward.8} parent=5 // pred_check
      _
    $region10: #{discriminator_forward.8} parent=5 // pred_check_branch
      %151 = sbr.rel (%p148) target = $region12
    $region11: #{discriminator_forward.8} parent=5 // pred_region
      %s152 = ssub.s32 %s9, 1
      // Predicated region
      $region13: #{discriminator_forward.8} parent=11 // pred_check
        %p153 = pneg %p84
      $region14: #{discriminator_forward.8} parent=11 // pred_check_branch
        %155 = sbr.rel (%p153) target = $region16
      $region15: #{discriminator_forward.8} parent=11 // pred_region
        %s156 = smul.u32 16, %s21
        %p157 = scmp.lt.s32.totalorder %s156, 15
        %s158 = scalar_select %p157, %s156, 15
        %p159 = scmp.lt.s32.totalorder %s20, 0
        %s160 = scalar_select %p159, %s20, 0
        %s161 = sadd.s32 %s160, %s158
        %s162 = smul.addr %s161, 4
        %s163 = scalar_lea.vmem %s1, %s162
        %s164 = smul.u32 16, %s21
      $region16: #{discriminator_forward.8} parent=11 // pred_fallthru
        _
      // Predicated region
      $region17: #{discriminator_forward.8} parent=11 // pred_check
        %p165 = pneg %p110
      $region18: #{discriminator_forward.8} parent=11 // pred_check_branch
        %167 = sbr.rel (%p165) target = $region20
      $region19: #{discriminator_forward.8} parent=11 // pred_region
        %p168 = scmp.lt.s32.totalorder %s20, 0
        %s169 = scalar_select %p168, %s20, 0
        %s170 = scalar_lea.vmem %s2, %s169
      $region20: #{discriminator_forward.8} parent=11 // pred_fallthru
        _
    $region12: #{discriminator_forward.8} parent=5 // pred_fallthru
      _
    %p171 = scmp.lt.s32.totalorder %s9, 2
    // Predicated region
    $region21: #{discriminator_forward.8} parent=5 // pred_check
      %p172 = pneg %p171
    $region22: #{discriminator_forward.8} parent=5 // pred_check_branch
      %174 = sbr.rel (%p172) target = $region24
    $region23: #{discriminator_forward.8} parent=5 // pred_region
      // Predicated region
      $region25: #{discriminator_forward.8} parent=23 // pred_check
        %p175 = pneg %p50
      $region26: #{discriminator_forward.8} parent=23 // pred_check_branch
        %177 = sbr.rel (%p175) target = $region28
      $region27: #{discriminator_forward.8} parent=23 // pred_region
        %s178 = smul.u32 32, %s16
        %p179 = scmp.lt.s32.totalorder %s178, 63
        %s180 = scalar_select %p179, %s178, 63
        %p181 = scmp.lt.s32.totalorder %s18, 0
        %s182 = scalar_select %p181, %s18, 0
        %s183 = sadd.s32 %s182, %s180
        %s184 = smul.addr %s183, 4
        %s185 = scalar_lea.vmem %s0, %s184
        %s186 = smul.u32 32, %s16
      $region28: #{discriminator_forward.8} parent=23 // pred_fallthru
        _
    $region24: #{discriminator_forward.8} parent=5 // pred_fallthru
      _
    %p187 = scmp.le.s32.totalorder 1, %s9
    %p188 = scmp.lt.s32.totalorder %s9, 3
    %p189 = pnand %p187, %p188
    %p190 = pneg %p189
    // Predicated region
    $region29: #{discriminator_forward.8} parent=5 // pred_check
      _
    $region30: #{discriminator_forward.8} parent=5 // pred_check_branch
      %192 = sbr.rel (%p189) target = $region32
    $region31: #{discriminator_forward.8} parent=5 // pred_region
      %s193 = ssub.s32 %s9, 1
      %s194 = smul.u32 32, %s19
      %p195 = scmp.lt.s32.totalorder %s194, 63
      %s196 = scalar_select %p195, %s194, 63
      %p197 = scmp.lt.s32.totalorder %s21, 0
      %s198 = scalar_select %p197, %s21, 0
      %s199 = sadd.s32 %s198, %s196
      %s200 = smul.addr %s199, 4
      %s201 = scalar_lea.vmem %s0, %s200
      %p202 = pneg %p56
      %p203 = pneg %p53
      %s204 = smul.u32 16, %s21
      %p205 = scmp.lt.s32.totalorder %s204, 15
      %s206 = scalar_select %p205, %s204, 15
      %p207 = scmp.lt.s32.totalorder %s20, 0
      %s208 = scalar_select %p207, %s20, 0
      %s209 = sadd.s32 %s208, %s206
      %s210 = smul.addr %s209, 4
      %s211 = scalar_lea.vmem %s1, %s210
      %p212 = pneg %p84
      %p213 = pneg %p81
      %p214 = scmp.lt.s32.totalorder %s20, 0
      %s215 = scalar_select %p214, %s20, 0
      %s216 = scalar_lea.vmem %s2, %s215
      %p217 = pneg %p110
      %p218 = pneg %p107
      %p219 = pneg %p138
      %p220 = pneg %p135
      %s221 = smul.u32 32, %s19
      %p222 = scmp.lt.s32.totalorder %s221, 63
      %s223 = scalar_select %p222, %s221, 63
      %p224 = scmp.lt.s32.totalorder %s20, 0
      %s225 = scalar_select %p224, %s20, 0
      %s226 = sadd.s32 %s225, %s223
      %s227 = smul.addr %s226, 8
      %s228 = scalar_lea.vmem %s3, %s227
      %s229 = smul.u32 32, %s19
      %p230 = scmp.lt.s32.totalorder %s229, 63
      %s231 = scalar_select %p230, %s229, 63
      %p232 = scmp.lt.s32.totalorder %s21, 0
      %s233 = scalar_select %p232, %s21, 0
      %s234 = sadd.s32 %s233, %s231
      %s235 = smul.addr %s234, 4
      %s236 = scalar_lea.vmem %s0, %s235
      %s237 = smul.u32 32, %s19
      %s238 = smul.u32 16, %s21
      %p239 = scmp.lt.s32.totalorder %s238, 15
      %s240 = scalar_select %p239, %s238, 15
      %p241 = scmp.lt.s32.totalorder %s20, 0
      %s242 = scalar_select %p241, %s20, 0
      %s243 = sadd.s32 %s242, %s240
      %s244 = smul.addr %s243, 4
      %s245 = scalar_lea.vmem %s1, %s244
      %s246 = smul.u32 16, %s21
      %p247 = scmp.lt.s32.totalorder %s20, 0
      %s248 = scalar_select %p247, %s20, 0
      %s249 = scalar_lea.vmem %s2, %s248
      %s250 = smul.u32 32, %s19
      %p251 = scmp.lt.s32.totalorder %s250, 63
      %s252 = scalar_select %p251, %s250, 63
      %p253 = scmp.lt.s32.totalorder %s20, 0
      %s254 = scalar_select %p253, %s20, 0
      %s255 = sadd.s32 %s254, %s252
      %s256 = smul.addr %s255, 8
      %s257 = scalar_lea.vmem %s3, %s256
      %s258 = smul.u32 32, %s19
      %p259 = scmp.eq.s32.totalorder %s21, 0
      // Predicated region
      $region33: #{discriminator_forward.8} parent=31 // pred_check
        %p260 = pneg %p259
      $region34: #{discriminator_forward.8} parent=31 // pred_check_branch
        %262 = sbr.rel (%p260) target = $region36
      $region35: #{discriminator_forward.8} parent=31 // pred_region
        %263 = vst [vmem:[#allocation2] sm:$0xff] 0.0
        %264 = vst [vmem:[#allocation2 + $0x8] sm:$0xff] 0.0
        %265 = vst [vmem:[#allocation2 + $0x10] sm:$0xff] 0.0
        %266 = vst [vmem:[#allocation2 + $0x18] sm:$0xff] 0.0
        %267 = vst [vmem:[#allocation2 + $0x20] sm:$0xff] 0.0
        %268 = vst [vmem:[#allocation2 + $0x28] sm:$0xff] 0.0
        %269 = vst [vmem:[#allocation2 + $0x30] sm:$0xff] 0.0
        %270 = vst [vmem:[#allocation2 + $0x38] sm:$0xff] 0.0
        %271 = vst [vmem:[#allocation2 + $0x40] sm:$0xff] 0.0
        %272 = vst [vmem:[#allocation2 + $0x48] sm:$0xff] 0.0
        %273 = vst [vmem:[#allocation2 + $0x50] sm:$0xff] 0.0
        %274 = vst [vmem:[#allocation2 + $0x58] sm:$0xff] 0.0
        %275 = vst [vmem:[#allocation2 + $0x60] sm:$0xff] 0.0
        %276 = vst [vmem:[#allocation2 + $0x68] sm:$0xff] 0.0
        %277 = vst [vmem:[#allocation2 + $0x70] sm:$0xff] 0.0
        %278 = vst [vmem:[#allocation2 + $0x78] sm:$0xff] 0.0
        %279 = vst [vmem:[#allocation2 + $0x80] sm:$0xff] 0.0
        %280 = vst [vmem:[#allocation2 + $0x88] sm:$0xff] 0.0
        %281 = vst [vmem:[#allocation2 + $0x90] sm:$0xff] 0.0
        %282 = vst [vmem:[#allocation2 + $0x98] sm:$0xff] 0.0
        %283 = vst [vmem:[#allocation2 + $0xa0] sm:$0xff] 0.0
        %284 = vst [vmem:[#allocation2 + $0xa8] sm:$0xff] 0.0
        %285 = vst [vmem:[#allocation2 + $0xb0] sm:$0xff] 0.0
        %286 = vst [vmem:[#allocation2 + $0xb8] sm:$0xff] 0.0
        %287 = vst [vmem:[#allocation2 + $0xc0] sm:$0xff] 0.0
        %288 = vst [vmem:[#allocation2 + $0xc8] sm:$0xff] 0.0
        %289 = vst [vmem:[#allocation2 + $0xd0] sm:$0xff] 0.0
        %290 = vst [vmem:[#allocation2 + $0xd8] sm:$0xff] 0.0
        %291 = vst [vmem:[#allocation2 + $0xe0] sm:$0xff] 0.0
        %292 = vst [vmem:[#allocation2 + $0xe8] sm:$0xff] 0.0
        %293 = vst [vmem:[#allocation2 + $0xf0] sm:$0xff] 0.0
        %294 = vst [vmem:[#allocation2 + $0xf8] sm:$0xff] 0.0
      $region36: #{discriminator_forward.8} parent=31 // pred_fallthru
        _
      %v295 = vld [vmem:[#allocation2] sm:$0xff]
      %v296 = vld [vmem:[#allocation2 + $0x8] sm:$0xff]
      %v297 = vld [vmem:[#allocation2 + $0x10] sm:$0xff]
      %v298 = vld [vmem:[#allocation2 + $0x18] sm:$0xff]
      %v299 = vld [vmem:[#allocation2 + $0x20] sm:$0xff]
      %v300 = vld [vmem:[#allocation2 + $0x28] sm:$0xff]
      %v301 = vld [vmem:[#allocation2 + $0x30] sm:$0xff]
      %v302 = vld [vmem:[#allocation2 + $0x38] sm:$0xff]
      %v303 = vld [vmem:[#allocation2 + $0x40] sm:$0xff]
      %v304 = vld [vmem:[#allocation2 + $0x48] sm:$0xff]
      %v305 = vld [vmem:[#allocation2 + $0x50] sm:$0xff]
      %v306 = vld [vmem:[#allocation2 + $0x58] sm:$0xff]
      %v307 = vld [vmem:[#allocation2 + $0x60] sm:$0xff]
      %v308 = vld [vmem:[#allocation2 + $0x68] sm:$0xff]
      %v309 = vld [vmem:[#allocation2 + $0x70] sm:$0xff]
      %v310 = vld [vmem:[#allocation2 + $0x78] sm:$0xff]
      %v311 = vld [vmem:[#allocation2 + $0x80] sm:$0xff]
      %v312 = vld [vmem:[#allocation2 + $0x88] sm:$0xff]
      %v313 = vld [vmem:[#allocation2 + $0x90] sm:$0xff]
      %v314 = vld [vmem:[#allocation2 + $0x98] sm:$0xff]
      %v315 = vld [vmem:[#allocation2 + $0xa0] sm:$0xff]
      %v316 = vld [vmem:[#allocation2 + $0xa8] sm:$0xff]
      %v317 = vld [vmem:[#allocation2 + $0xb0] sm:$0xff]
      %v318 = vld [vmem:[#allocation2 + $0xb8] sm:$0xff]
      %v319 = vld [vmem:[#allocation2 + $0xc0] sm:$0xff]
      %v320 = vld [vmem:[#allocation2 + $0xc8] sm:$0xff]
      %v321 = vld [vmem:[#allocation2 + $0xd0] sm:$0xff]
      %v322 = vld [vmem:[#allocation2 + $0xd8] sm:$0xff]
      %v323 = vld [vmem:[#allocation2 + $0xe0] sm:$0xff]
      %v324 = vld [vmem:[#allocation2 + $0xe8] sm:$0xff]
      %v325 = vld [vmem:[#allocation2 + $0xf0] sm:$0xff]
      %v326 = vld [vmem:[#allocation2 + $0xf8] sm:$0xff]
      %v327 = vld [vmem:[%s236] sm:$0xf]
      %v328 = vld [vmem:[%s236 + $0x4] sm:$0xf]
      %v329 = vld [vmem:[%s236 + $0x8] sm:$0xf]
      %v330 = vld [vmem:[%s236 + $0xc] sm:$0xf]
      %v331 = vld [vmem:[%s236 + $0x10] sm:$0xf]
      %v332 = vld [vmem:[%s236 + $0x14] sm:$0xf]
      %v333 = vld [vmem:[%s236 + $0x18] sm:$0xf]
      %v334 = vld [vmem:[%s236 + $0x1c] sm:$0xf]
      %v335 = vld [vmem:[%s236 + $0x20] sm:$0xf]
      %v336 = vld [vmem:[%s236 + $0x24] sm:$0xf]
      %v337 = vld [vmem:[%s236 + $0x28] sm:$0xf]
      %v338 = vld [vmem:[%s236 + $0x2c] sm:$0xf]
      %v339 = vld [vmem:[%s236 + $0x30] sm:$0xf]
      %v340 = vld [vmem:[%s236 + $0x34] sm:$0xf]
      %v341 = vld [vmem:[%s236 + $0x38] sm:$0xf]
      %v342 = vld [vmem:[%s236 + $0x3c] sm:$0xf]
      %v343 = vld [vmem:[%s236 + $0x40] sm:$0xf]
      %v344 = vld [vmem:[%s236 + $0x44] sm:$0xf]
      %v345 = vld [vmem:[%s236 + $0x48] sm:$0xf]
      %v346 = vld [vmem:[%s236 + $0x4c] sm:$0xf]
      %v347 = vld [vmem:[%s236 + $0x50] sm:$0xf]
      %v348 = vld [vmem:[%s236 + $0x54] sm:$0xf]
      %v349 = vld [vmem:[%s236 + $0x58] sm:$0xf]
      %v350 = vld [vmem:[%s236 + $0x5c] sm:$0xf]
      %v351 = vld [vmem:[%s236 + $0x60] sm:$0xf]
      %v352 = vld [vmem:[%s236 + $0x64] sm:$0xf]
      %v353 = vld [vmem:[%s236 + $0x68] sm:$0xf]
      %v354 = vld [vmem:[%s236 + $0x6c] sm:$0xf]
      %v355 = vld [vmem:[%s236 + $0x70] sm:$0xf]
      %v356 = vld [vmem:[%s236 + $0x74] sm:$0xf]
      %v357 = vld [vmem:[%s236 + $0x78] sm:$0xf]
      %v358 = vld [vmem:[%s236 + $0x7c] sm:$0xf]
      %v359 = vld [vmem:[%s245] sm:$0xf]
      %v360 = vld [vmem:[%s245 + $0x4] sm:$0xf]
      %v361 = vld [vmem:[%s245 + $0x8] sm:$0xf]
      %v362 = vld [vmem:[%s245 + $0xc] sm:$0xf]
      %v363 = vld [vmem:[%s245 + $0x10] sm:$0xf]
      %v364 = vld [vmem:[%s245 + $0x14] sm:$0xf]
      %v365 = vld [vmem:[%s245 + $0x18] sm:$0xf]
      %v366 = vld [vmem:[%s245 + $0x1c] sm:$0xf]
      %v367 = vld [vmem:[%s245 + $0x20] sm:$0xf]
      %v368 = vld [vmem:[%s245 + $0x24] sm:$0xf]
      %v369 = vld [vmem:[%s245 + $0x28] sm:$0xf]
      %v370 = vld [vmem:[%s245 + $0x2c] sm:$0xf]
      %v371 = vld [vmem:[%s245 + $0x30] sm:$0xf]
      %v372 = vld [vmem:[%s245 + $0x34] sm:$0xf]
      %v373 = vld [vmem:[%s245 + $0x38] sm:$0xf]
      %v374 = vld [vmem:[%s245 + $0x3c] sm:$0xf]
      %v407 = vunpack.c.l.b16 %v327
      %v408 = vunpack.c.l.b16 %v328
      %v409 = vunpack.c.l.b16 %v329
      %v410 = vunpack.c.l.b16 %v330
      %v411 = vunpack.c.l.b16 %v331
      %v412 = vunpack.c.l.b16 %v332
      %v413 = vunpack.c.l.b16 %v333
      %v414 = vunpack.c.l.b16 %v334
      %v415 = vunpack.c.l.b16 %v335
      %v416 = vunpack.c.l.b16 %v336
      %v417 = vunpack.c.l.b16 %v337
      %v418 = vunpack.c.l.b16 %v338
      %v419 = vunpack.c.l.b16 %v339
      %v420 = vunpack.c.l.b16 %v340
      %v421 = vunpack.c.l.b16 %v341
      %v422 = vunpack.c.l.b16 %v342
      %v423 = vunpack.c.l.b16 %v343
      %v424 = vunpack.c.l.b16 %v344
      %v425 = vunpack.c.l.b16 %v345
      %v426 = vunpack.c.l.b16 %v346
      %v427 = vunpack.c.l.b16 %v347
      %v428 = vunpack.c.l.b16 %v348
      %v429 = vunpack.c.l.b16 %v349
      %v430 = vunpack.c.l.b16 %v350
      %v431 = vunpack.c.l.b16 %v351
      %v432 = vunpack.c.l.b16 %v352
      %v433 = vunpack.c.l.b16 %v353
      %v434 = vunpack.c.l.b16 %v354
      %v435 = vunpack.c.l.b16 %v355
      %v436 = vunpack.c.l.b16 %v356
      %v437 = vunpack.c.l.b16 %v357
      %v438 = vunpack.c.l.b16 %v358
      %v439 = vpack.c.b16 %v408, %v407
      %v440 = vpack.c.b16 %v410, %v409
      %v441 = vpack.c.b16 %v412, %v411
      %v442 = vpack.c.b16 %v414, %v413
      %v443 = vpack.c.b16 %v416, %v415
      %v444 = vpack.c.b16 %v418, %v417
      %v445 = vpack.c.b16 %v420, %v419
      %v446 = vpack.c.b16 %v422, %v421
      %v447 = vpack.c.b16 %v424, %v423
      %v448 = vpack.c.b16 %v426, %v425
      %v449 = vpack.c.b16 %v428, %v427
      %v450 = vpack.c.b16 %v430, %v429
      %v451 = vpack.c.b16 %v432, %v431
      %v452 = vpack.c.b16 %v434, %v433
      %v453 = vpack.c.b16 %v436, %v435
      %v454 = vpack.c.b16 %v438, %v437
      %v487 = vunpack.c.l.b16 %v359
      %v488 = vunpack.c.l.b16 %v360
      %v489 = vunpack.c.l.b16 %v361
      %v490 = vunpack.c.l.b16 %v362
      %v491 = vunpack.c.l.b16 %v363
      %v492 = vunpack.c.l.b16 %v364
      %v493 = vunpack.c.l.b16 %v365
      %v494 = vunpack.c.l.b16 %v366
      %v495 = vunpack.c.l.b16 %v367
      %v496 = vunpack.c.l.b16 %v368
      %v497 = vunpack.c.l.b16 %v369
      %v498 = vunpack.c.l.b16 %v370
      %v499 = vunpack.c.l.b16 %v371
      %v500 = vunpack.c.l.b16 %v372
      %v501 = vunpack.c.l.b16 %v373
      %v502 = vunpack.c.l.b16 %v374
      %v503 = vpack.c.b16 %v488, %v487
      %v504 = vpack.c.b16 %v490, %v489
      %v505 = vpack.c.b16 %v492, %v491
      %v506 = vpack.c.b16 %v494, %v493
      %v507 = vpack.c.b16 %v496, %v495
      %v508 = vpack.c.b16 %v498, %v497
      %v509 = vpack.c.b16 %v500, %v499
      %v510 = vpack.c.b16 %v502, %v501
      %519 = vmatpush.bf16.msra.mxu0 %v510
      %520 = vmatpush.bf16.msra.mxu0 %v509
      %521 = vmatpush.bf16.msra.mxu0 %v508
      %522 = vmatpush.bf16.msra.mxu0 %v507
      %523 = vmatpush.bf16.msra.mxu0 %v506
      %524 = vmatpush.bf16.msra.mxu0 %v505
      %525 = vmatpush.bf16.msra.mxu0 %v504
      %526 = vmatpush.bf16.msra.mxu0 %v503
      %527 = vmatmul.bf16.gmra.mxu0 %v439
      %v528 = vpop.f32.mrf.mxu0
      %v529 = vadd.f32 0.0, %v528
      %v530 = vpop.f32.mrf.mxu0
      %v531 = vadd.f32 0.0, %v530
      %532 = vmatmul.bf16.gmra.mxu0 %v440
      %v533 = vpop.f32.mrf.mxu0
      %v534 = vadd.f32 0.0, %v533
      %v535 = vpop.f32.mrf.mxu0
      %v536 = vadd.f32 0.0, %v535
      %537 = vmatmul.bf16.gmra.mxu0 %v441
      %v538 = vpop.f32.mrf.mxu0
      %v539 = vadd.f32 0.0, %v538
      %v540 = vpop.f32.mrf.mxu0
      %v541 = vadd.f32 0.0, %v540
      %542 = vmatmul.bf16.gmra.mxu0 %v442
      %v543 = vpop.f32.mrf.mxu0
      %v544 = vadd.f32 0.0, %v543
      %v545 = vpop.f32.mrf.mxu0
      %v546 = vadd.f32 0.0, %v545
      %547 = vmatmul.bf16.gmra.mxu0 %v443
      %v548 = vpop.f32.mrf.mxu0
      %v549 = vadd.f32 0.0, %v548
      %v550 = vpop.f32.mrf.mxu0
      %v551 = vadd.f32 0.0, %v550
      %552 = vmatmul.bf16.gmra.mxu0 %v444
      %v553 = vpop.f32.mrf.mxu0
      %v554 = vadd.f32 0.0, %v553
      %v555 = vpop.f32.mrf.mxu0
      %v556 = vadd.f32 0.0, %v555
      %557 = vmatmul.bf16.gmra.mxu0 %v445
      %v558 = vpop.f32.mrf.mxu0
      %v559 = vadd.f32 0.0, %v558
      %v560 = vpop.f32.mrf.mxu0
      %v561 = vadd.f32 0.0, %v560
      %562 = vmatmul.bf16.gmra.mxu0 %v446
      %v563 = vpop.f32.mrf.mxu0
      %v564 = vadd.f32 0.0, %v563
      %v565 = vpop.f32.mrf.mxu0
      %v566 = vadd.f32 0.0, %v565
      %567 = vmatmul.bf16.gmra.mxu0 %v447
      %v568 = vpop.f32.mrf.mxu0
      %v569 = vadd.f32 0.0, %v568
      %v570 = vpop.f32.mrf.mxu0
      %v571 = vadd.f32 0.0, %v570
      %572 = vmatmul.bf16.gmra.mxu0 %v448
      %v573 = vpop.f32.mrf.mxu0
      %v574 = vadd.f32 0.0, %v573
      %v575 = vpop.f32.mrf.mxu0
      %v576 = vadd.f32 0.0, %v575
      %577 = vmatmul.bf16.gmra.mxu0 %v449
      %v578 = vpop.f32.mrf.mxu0
      %v579 = vadd.f32 0.0, %v578
      %v580 = vpop.f32.mrf.mxu0
      %v581 = vadd.f32 0.0, %v580
      %582 = vmatmul.bf16.gmra.mxu0 %v450
      %v583 = vpop.f32.mrf.mxu0
      %v584 = vadd.f32 0.0, %v583
      %v585 = vpop.f32.mrf.mxu0
      %v586 = vadd.f32 0.0, %v585
      %587 = vmatmul.bf16.gmra.mxu0 %v451
      %v588 = vpop.f32.mrf.mxu0
      %v589 = vadd.f32 0.0, %v588
      %v590 = vpop.f32.mrf.mxu0
      %v591 = vadd.f32 0.0, %v590
      %592 = vmatmul.bf16.gmra.mxu0 %v452
      %v593 = vpop.f32.mrf.mxu0
      %v594 = vadd.f32 0.0, %v593
      %v595 = vpop.f32.mrf.mxu0
      %v596 = vadd.f32 0.0, %v595
      %597 = vmatmul.bf16.gmra.mxu0 %v453
      %v598 = vpop.f32.mrf.mxu0
      %v599 = vadd.f32 0.0, %v598
      %v600 = vpop.f32.mrf.mxu0
      %v601 = vadd.f32 0.0, %v600
      %602 = vmatmul.bf16.gmra.mxu0 %v454
      %v603 = vpop.f32.mrf.mxu0
      %v604 = vadd.f32 0.0, %v603
      %v605 = vpop.f32.mrf.mxu0
      %v606 = vadd.f32 0.0, %v605
      %607 = vdwg.mxu0
      %v608 = vadd.f32 %v295, %v529
      %v609 = vadd.f32 %v296, %v531
      %v610 = vadd.f32 %v297, %v534
      %v611 = vadd.f32 %v298, %v536
      %v612 = vadd.f32 %v299, %v539
      %v613 = vadd.f32 %v300, %v541
      %v614 = vadd.f32 %v301, %v544
      %v615 = vadd.f32 %v302, %v546
      %v616 = vadd.f32 %v303, %v549
      %v617 = vadd.f32 %v304, %v551
      %v618 = vadd.f32 %v305, %v554
      %v619 = vadd.f32 %v306, %v556
      %v620 = vadd.f32 %v307, %v559
      %v621 = vadd.f32 %v308, %v561
      %v622 = vadd.f32 %v309, %v564
      %v623 = vadd.f32 %v310, %v566
      %v624 = vadd.f32 %v311, %v569
      %v625 = vadd.f32 %v312, %v571
      %v626 = vadd.f32 %v313, %v574
      %v627 = vadd.f32 %v314, %v576
      %v628 = vadd.f32 %v315, %v579
      %v629 = vadd.f32 %v316, %v581
      %v630 = vadd.f32 %v317, %v584
      %v631 = vadd.f32 %v318, %v586
      %v632 = vadd.f32 %v319, %v589
      %v633 = vadd.f32 %v320, %v591
      %v634 = vadd.f32 %v321, %v594
      %v635 = vadd.f32 %v322, %v596
      %v636 = vadd.f32 %v323, %v599
      %v637 = vadd.f32 %v324, %v601
      %v638 = vadd.f32 %v325, %v604
      %v639 = vadd.f32 %v326, %v606
      %640 = vst [vmem:[#allocation2] sm:$0xff] %v608
      %641 = vst [vmem:[#allocation2 + $0x8] sm:$0xff] %v609
      %642 = vst [vmem:[#allocation2 + $0x10] sm:$0xff] %v610
      %643 = vst [vmem:[#allocation2 + $0x18] sm:$0xff] %v611
      %644 = vst [vmem:[#allocation2 + $0x20] sm:$0xff] %v612
      %645 = vst [vmem:[#allocation2 + $0x28] sm:$0xff] %v613
      %646 = vst [vmem:[#allocation2 + $0x30] sm:$0xff] %v614
      %647 = vst [vmem:[#allocation2 + $0x38] sm:$0xff] %v615
      %648 = vst [vmem:[#allocation2 + $0x40] sm:$0xff] %v616
      %649 = vst [vmem:[#allocation2 + $0x48] sm:$0xff] %v617
      %650 = vst [vmem:[#allocation2 + $0x50] sm:$0xff] %v618
      %651 = vst [vmem:[#allocation2 + $0x58] sm:$0xff] %v619
      %652 = vst [vmem:[#allocation2 + $0x60] sm:$0xff] %v620
      %653 = vst [vmem:[#allocation2 + $0x68] sm:$0xff] %v621
      %654 = vst [vmem:[#allocation2 + $0x70] sm:$0xff] %v622
      %655 = vst [vmem:[#allocation2 + $0x78] sm:$0xff] %v623
      %656 = vst [vmem:[#allocation2 + $0x80] sm:$0xff] %v624
      %657 = vst [vmem:[#allocation2 + $0x88] sm:$0xff] %v625
      %658 = vst [vmem:[#allocation2 + $0x90] sm:$0xff] %v626
      %659 = vst [vmem:[#allocation2 + $0x98] sm:$0xff] %v627
      %660 = vst [vmem:[#allocation2 + $0xa0] sm:$0xff] %v628
      %661 = vst [vmem:[#allocation2 + $0xa8] sm:$0xff] %v629
      %662 = vst [vmem:[#allocation2 + $0xb0] sm:$0xff] %v630
      %663 = vst [vmem:[#allocation2 + $0xb8] sm:$0xff] %v631
      %664 = vst [vmem:[#allocation2 + $0xc0] sm:$0xff] %v632
      %665 = vst [vmem:[#allocation2 + $0xc8] sm:$0xff] %v633
      %666 = vst [vmem:[#allocation2 + $0xd0] sm:$0xff] %v634
      %667 = vst [vmem:[#allocation2 + $0xd8] sm:$0xff] %v635
      %668 = vst [vmem:[#allocation2 + $0xe0] sm:$0xff] %v636
      %669 = vst [vmem:[#allocation2 + $0xe8] sm:$0xff] %v637
      %670 = vst [vmem:[#allocation2 + $0xf0] sm:$0xff] %v638
      %671 = vst [vmem:[#allocation2 + $0xf8] sm:$0xff] %v639
      // Predicated region
      $region37: #{discriminator_forward.8} parent=31 // pred_check
        %p672 = pneg %p259
      $region38: #{discriminator_forward.8} parent=31 // pred_check_branch
        %674 = sbr.rel (%p672) target = $region40
      $region39: #{discriminator_forward.8} parent=31 // pred_region
        %v675 = vld [vmem:[#allocation2] sm:$0xff]
        %v676 = vld [vmem:[#allocation2 + $0x8] sm:$0xff]
        %v677 = vld [vmem:[#allocation2 + $0x10] sm:$0xff]
        %v678 = vld [vmem:[#allocation2 + $0x18] sm:$0xff]
        %v679 = vld [vmem:[#allocation2 + $0x20] sm:$0xff]
        %v680 = vld [vmem:[#allocation2 + $0x28] sm:$0xff]
        %v681 = vld [vmem:[#allocation2 + $0x30] sm:$0xff]
        %v682 = vld [vmem:[#allocation2 + $0x38] sm:$0xff]
        %v683 = vld [vmem:[#allocation2 + $0x40] sm:$0xff]
        %v684 = vld [vmem:[#allocation2 + $0x48] sm:$0xff]
        %v685 = vld [vmem:[#allocation2 + $0x50] sm:$0xff]
        %v686 = vld [vmem:[#allocation2 + $0x58] sm:$0xff]
        %v687 = vld [vmem:[#allocation2 + $0x60] sm:$0xff]
        %v688 = vld [vmem:[#allocation2 + $0x68] sm:$0xff]
        %v689 = vld [vmem:[#allocation2 + $0x70] sm:$0xff]
        %v690 = vld [vmem:[#allocation2 + $0x78] sm:$0xff]
        %v691 = vld [vmem:[#allocation2 + $0x80] sm:$0xff]
        %v692 = vld [vmem:[#allocation2 + $0x88] sm:$0xff]
        %v693 = vld [vmem:[#allocation2 + $0x90] sm:$0xff]
        %v694 = vld [vmem:[#allocation2 + $0x98] sm:$0xff]
        %v695 = vld [vmem:[#allocation2 + $0xa0] sm:$0xff]
        %v696 = vld [vmem:[#allocation2 + $0xa8] sm:$0xff]
        %v697 = vld [vmem:[#allocation2 + $0xb0] sm:$0xff]
        %v698 = vld [vmem:[#allocation2 + $0xb8] sm:$0xff]
        %v699 = vld [vmem:[#allocation2 + $0xc0] sm:$0xff]
        %v700 = vld [vmem:[#allocation2 + $0xc8] sm:$0xff]
        %v701 = vld [vmem:[#allocation2 + $0xd0] sm:$0xff]
        %v702 = vld [vmem:[#allocation2 + $0xd8] sm:$0xff]
        %v703 = vld [vmem:[#allocation2 + $0xe0] sm:$0xff]
        %v704 = vld [vmem:[#allocation2 + $0xe8] sm:$0xff]
        %v705 = vld [vmem:[#allocation2 + $0xf0] sm:$0xff]
        %v706 = vld [vmem:[#allocation2 + $0xf8] sm:$0xff]
        %v707 = vld [vmem:[%s249] sm:$0x1]
        %v709 = vperm.slane %v707, 0
        %v711 = vadd.f32 %v675, %v709
        %v712 = vadd.f32 %v676, %v709
        %v713 = vadd.f32 %v677, %v709
        %v714 = vadd.f32 %v678, %v709
        %v715 = vadd.f32 %v679, %v709
        %v716 = vadd.f32 %v680, %v709
        %v717 = vadd.f32 %v681, %v709
        %v718 = vadd.f32 %v682, %v709
        %v719 = vadd.f32 %v683, %v709
        %v720 = vadd.f32 %v684, %v709
        %v721 = vadd.f32 %v685, %v709
        %v722 = vadd.f32 %v686, %v709
        %v723 = vadd.f32 %v687, %v709
        %v724 = vadd.f32 %v688, %v709
        %v725 = vadd.f32 %v689, %v709
        %v726 = vadd.f32 %v690, %v709
        %v727 = vadd.f32 %v691, %v709
        %v728 = vadd.f32 %v692, %v709
        %v729 = vadd.f32 %v693, %v709
        %v730 = vadd.f32 %v694, %v709
        %v731 = vadd.f32 %v695, %v709
        %v732 = vadd.f32 %v696, %v709
        %v733 = vadd.f32 %v697, %v709
        %v734 = vadd.f32 %v698, %v709
        %v735 = vadd.f32 %v699, %v709
        %v736 = vadd.f32 %v700, %v709
        %v737 = vadd.f32 %v701, %v709
        %v738 = vadd.f32 %v702, %v709
        %v739 = vadd.f32 %v703, %v709
        %v740 = vadd.f32 %v704, %v709
        %v741 = vadd.f32 %v705, %v709
        %v742 = vadd.f32 %v706, %v709
        %vm743 = vcmp.ge.f32.partialorder %v711, 0.0
        %vm744 = vcmp.ge.f32.partialorder %v712, 0.0
        %vm745 = vcmp.ge.f32.partialorder %v713, 0.0
        %vm746 = vcmp.ge.f32.partialorder %v714, 0.0
        %vm747 = vcmp.ge.f32.partialorder %v715, 0.0
        %vm748 = vcmp.ge.f32.partialorder %v716, 0.0
        %vm749 = vcmp.ge.f32.partialorder %v717, 0.0
        %vm750 = vcmp.ge.f32.partialorder %v718, 0.0
        %vm751 = vcmp.ge.f32.partialorder %v719, 0.0
        %vm752 = vcmp.ge.f32.partialorder %v720, 0.0
        %vm753 = vcmp.ge.f32.partialorder %v721, 0.0
        %vm754 = vcmp.ge.f32.partialorder %v722, 0.0
        %vm755 = vcmp.ge.f32.partialorder %v723, 0.0
        %vm756 = vcmp.ge.f32.partialorder %v724, 0.0
        %vm757 = vcmp.ge.f32.partialorder %v725, 0.0
        %vm758 = vcmp.ge.f32.partialorder %v726, 0.0
        %vm759 = vcmp.ge.f32.partialorder %v727, 0.0
        %vm760 = vcmp.ge.f32.partialorder %v728, 0.0
        %vm761 = vcmp.ge.f32.partialorder %v729, 0.0
        %vm762 = vcmp.ge.f32.partialorder %v730, 0.0
        %vm763 = vcmp.ge.f32.partialorder %v731, 0.0
        %vm764 = vcmp.ge.f32.partialorder %v732, 0.0
        %vm765 = vcmp.ge.f32.partialorder %v733, 0.0
        %vm766 = vcmp.ge.f32.partialorder %v734, 0.0
        %vm767 = vcmp.ge.f32.partialorder %v735, 0.0
        %vm768 = vcmp.ge.f32.partialorder %v736, 0.0
        %vm769 = vcmp.ge.f32.partialorder %v737, 0.0
        %vm770 = vcmp.ge.f32.partialorder %v738, 0.0
        %vm771 = vcmp.ge.f32.partialorder %v739, 0.0
        %vm772 = vcmp.ge.f32.partialorder %v740, 0.0
        %vm773 = vcmp.ge.f32.partialorder %v741, 0.0
        %vm774 = vcmp.ge.f32.partialorder %v742, 0.0
        %v775 = vmul.f32 %v711, 0.01
        %v776 = vmul.f32 %v712, 0.01
        %v777 = vmul.f32 %v713, 0.01
        %v778 = vmul.f32 %v714, 0.01
        %v779 = vmul.f32 %v715, 0.01
        %v780 = vmul.f32 %v716, 0.01
        %v781 = vmul.f32 %v717, 0.01
        %v782 = vmul.f32 %v718, 0.01
        %v783 = vmul.f32 %v719, 0.01
        %v784 = vmul.f32 %v720, 0.01
        %v785 = vmul.f32 %v721, 0.01
        %v786 = vmul.f32 %v722, 0.01
        %v787 = vmul.f32 %v723, 0.01
        %v788 = vmul.f32 %v724, 0.01
        %v789 = vmul.f32 %v725, 0.01
        %v790 = vmul.f32 %v726, 0.01
        %v791 = vmul.f32 %v727, 0.01
        %v792 = vmul.f32 %v728, 0.01
        %v793 = vmul.f32 %v729, 0.01
        %v794 = vmul.f32 %v730, 0.01
        %v795 = vmul.f32 %v731, 0.01
        %v796 = vmul.f32 %v732, 0.01
        %v797 = vmul.f32 %v733, 0.01
        %v798 = vmul.f32 %v734, 0.01
        %v799 = vmul.f32 %v735, 0.01
        %v800 = vmul.f32 %v736, 0.01
        %v801 = vmul.f32 %v737, 0.01
        %v802 = vmul.f32 %v738, 0.01
        %v803 = vmul.f32 %v739, 0.01
        %v804 = vmul.f32 %v740, 0.01
        %v805 = vmul.f32 %v741, 0.01
        %v806 = vmul.f32 %v742, 0.01
        %v807 = vsel %vm743, %v711, %v775
        %v808 = vsel %vm744, %v712, %v776
        %v809 = vsel %vm745, %v713, %v777
        %v810 = vsel %vm746, %v714, %v778
        %v811 = vsel %vm747, %v715, %v779
        %v812 = vsel %vm748, %v716, %v780
        %v813 = vsel %vm749, %v717, %v781
        %v814 = vsel %vm750, %v718, %v782
        %v815 = vsel %vm751, %v719, %v783
        %v816 = vsel %vm752, %v720, %v784
        %v817 = vsel %vm753, %v721, %v785
        %v818 = vsel %vm754, %v722, %v786
        %v819 = vsel %vm755, %v723, %v787
        %v820 = vsel %vm756, %v724, %v788
        %v821 = vsel %vm757, %v725, %v789
        %v822 = vsel %vm758, %v726, %v790
        %v823 = vsel %vm759, %v727, %v791
        %v824 = vsel %vm760, %v728, %v792
        %v825 = vsel %vm761, %v729, %v793
        %v826 = vsel %vm762, %v730, %v794
        %v827 = vsel %vm763, %v731, %v795
        %v828 = vsel %vm764, %v732, %v796
        %v829 = vsel %vm765, %v733, %v797
        %v830 = vsel %vm766, %v734, %v798
        %v831 = vsel %vm767, %v735, %v799
        %v832 = vsel %vm768, %v736, %v800
        %v833 = vsel %vm769, %v737, %v801
        %v834 = vsel %vm770, %v738, %v802
        %v835 = vsel %vm771, %v739, %v803
        %v836 = vsel %vm772, %v740, %v804
        %v837 = vsel %vm773, %v741, %v805
        %v838 = vsel %vm774, %v742, %v806
        %839 = vst [vmem:[%s257] sm:$0xff] %v807
        %840 = vst [vmem:[%s257 + $0x8] sm:$0xff] %v808
        %841 = vst [vmem:[%s257 + $0x10] sm:$0xff] %v809
        %842 = vst [vmem:[%s257 + $0x18] sm:$0xff] %v810
        %843 = vst [vmem:[%s257 + $0x20] sm:$0xff] %v811
        %844 = vst [vmem:[%s257 + $0x28] sm:$0xff] %v812
        %845 = vst [vmem:[%s257 + $0x30] sm:$0xff] %v813
        %846 = vst [vmem:[%s257 + $0x38] sm:$0xff] %v814
        %847 = vst [vmem:[%s257 + $0x40] sm:$0xff] %v815
        %848 = vst [vmem:[%s257 + $0x48] sm:$0xff] %v816
        %849 = vst [vmem:[%s257 + $0x50] sm:$0xff] %v817
        %850 = vst [vmem:[%s257 + $0x58] sm:$0xff] %v818
        %851 = vst [vmem:[%s257 + $0x60] sm:$0xff] %v819
        %852 = vst [vmem:[%s257 + $0x68] sm:$0xff] %v820
        %853 = vst [vmem:[%s257 + $0x70] sm:$0xff] %v821
        %854 = vst [vmem:[%s257 + $0x78] sm:$0xff] %v822
        %855 = vst [vmem:[%s257 + $0x80] sm:$0xff] %v823
        %856 = vst [vmem:[%s257 + $0x88] sm:$0xff] %v824
        %857 = vst [vmem:[%s257 + $0x90] sm:$0xff] %v825
        %858 = vst [vmem:[%s257 + $0x98] sm:$0xff] %v826
        %859 = vst [vmem:[%s257 + $0xa0] sm:$0xff] %v827
        %860 = vst [vmem:[%s257 + $0xa8] sm:$0xff] %v828
        %861 = vst [vmem:[%s257 + $0xb0] sm:$0xff] %v829
        %862 = vst [vmem:[%s257 + $0xb8] sm:$0xff] %v830
        %863 = vst [vmem:[%s257 + $0xc0] sm:$0xff] %v831
        %864 = vst [vmem:[%s257 + $0xc8] sm:$0xff] %v832
        %865 = vst [vmem:[%s257 + $0xd0] sm:$0xff] %v833
        %866 = vst [vmem:[%s257 + $0xd8] sm:$0xff] %v834
        %867 = vst [vmem:[%s257 + $0xe0] sm:$0xff] %v835
        %868 = vst [vmem:[%s257 + $0xe8] sm:$0xff] %v836
        %869 = vst [vmem:[%s257 + $0xf0] sm:$0xff] %v837
        %870 = vst [vmem:[%s257 + $0xf8] sm:$0xff] %v838
      $region40: #{discriminator_forward.8} parent=31 // pred_fallthru
        _
      %s871 = smul.u32 32, %s19
      %p872 = scmp.lt.s32.totalorder %s871, 63
      %s873 = scalar_select %p872, %s871, 63
      %p874 = scmp.lt.s32.totalorder %s20, 0
      %s875 = scalar_select %p874, %s20, 0
      %s876 = sadd.s32 %s875, %s873
      %s877 = smul.addr %s876, 8
      %s878 = scalar_lea.vmem %s3, %s877
      // Predicated region
      $region41: #{discriminator_forward.8} parent=31 // pred_check
        %p879 = pneg %p135
      $region42: #{discriminator_forward.8} parent=31 // pred_check_branch
        %881 = sbr.rel (%p879) target = $region44
      $region43: #{discriminator_forward.8} parent=31 // pred_region
        %s882 = smul.u32 32, %s19
      $region44: #{discriminator_forward.8} parent=31 // pred_fallthru
        _
    $region32: #{discriminator_forward.8} parent=5 // pred_fallthru
      _
    %p883 = scmp.le.s32.totalorder 2, %s9
    // Predicated region
    $region45: #{discriminator_forward.8} parent=5 // pred_check
      %p884 = pneg %p883
    $region46: #{discriminator_forward.8} parent=5 // pred_check_branch
      %886 = sbr.rel (%p884) target = $region48
    $region47: #{discriminator_forward.8} parent=5 // pred_region
      %s887 = ssub.s32 %s9, 2
      // Predicated region
      $region49: #{discriminator_forward.8} parent=47 // pred_check
        %p888 = pneg %p141
      $region50: #{discriminator_forward.8} parent=47 // pred_check_branch
        %890 = sbr.rel (%p888) target = $region52
      $region51: #{discriminator_forward.8} parent=47 // pred_region
        %s891 = smul.u32 32, %s22
        %p892 = scmp.lt.s32.totalorder %s891, 63
        %s893 = scalar_select %p892, %s891, 63
        %p894 = scmp.lt.s32.totalorder %s23, 0
        %s895 = scalar_select %p894, %s23, 0
        %s896 = sadd.s32 %s895, %s893
        %s897 = smul.addr %s896, 8
        %s898 = scalar_lea.vmem %s3, %s897
      $region52: #{discriminator_forward.8} parent=47 // pred_fallthru
        _
    $region48: #{discriminator_forward.8} parent=5 // pred_fallthru
      _
  $region6: #{discriminator_forward.8} parent=0 // loop_footer
    %s13 = sadd.s32 1, %s9
  $region7: #{discriminator_forward.8} parent=0 // loop_footer_branch
    %8 = sbr.rel target = $region3
  $region8: #{discriminator_forward.8} parent=0 // loop_exit
    _

// kernel: discriminator_forward.10
$region0: #{discriminator_forward.10}
  #allocation0 [shape = 'u32[]', space=smem, size = 0x4, offset = 0x4, fixed_abs, tag = 'smem constant byte address 0x4 - core index']
  #allocation1 [shape = 'u32[72,128]{1,0:T(1,128)}', space=vmem, size = 0x9000, scoped, tag = 'internal scratch']
  %s0 = inlined_call_operand.vmem [shape: f32[2,64,128], index: 0, kind: input, shape index: {}]
  %s1 = inlined_call_operand.vmem [shape: f32[2,64,128], index: 1, kind: output, shape index: {}]
  %s2 = sld [smem:[#allocation0]]
  $region37: #{discriminator_forward.10} parent=0
    _
  %s4 = ssub.s32 1, %s2
  %s5 = scalar_select 0, %s4, %s2
  loop: start=0, step=1, limit=4
  $region2: #{discriminator_forward.10} parent=0 // loop_pre_header
    _
  $region3: #{discriminator_forward.10} parent=0 // loop_header
    %s7 = sphi 0, %s11
    %p8 = scmp.ge.s32.totalorder %s7, 4
    %s14 = sphi 0, %s26
    %s15 = sphi 0, %s22
    %s16 = sphi 0, %s14
    %s17 = sphi 0, %s15
    %s18 = sphi 0, %s16
    %s19 = sphi 0, %s17
    %s31 = sphi 0, %s33
    %s34 = sphi 0, %s31
    %s35 = sphi 0, %s34
    %s51 = sphi 0, %s35
    %s59 = sphi 0, %s61
    %s62 = sphi 0, %s59
    %s63 = sphi 0, %s62
    %s79 = sphi 0, %s63
  $region4: #{discriminator_forward.10} parent=0 // loop_header_branch
    %10 = sbr.rel (%p8) target = $region8
  $region5: #{discriminator_forward.10} parent=0 // loop_body
    %s12 = ssub.s32 %s7, 1
    %s13 = ssub.s32 %s7, 2
    %s20 = sadd.s32 1, %s15
    %p21 = scmp.ge.s32.totalorder %s20, 1
    %s22 = scalar_select %p21, 0, %s20
    %s23 = sadd.s32 1, %s14
    %s24 = scalar_select %p21, %s23, %s14
    %p25 = scmp.ge.s32.totalorder %s24, 2
    %s26 = scalar_select %p25, 0, %s24
    %s27 = ssub.s32 %s14, %s26
    %s28 = ssub.s32 %s15, %s22
    %s29 = sor.u32 %s27, %s28
    %p30 = scmp.eq.s32.totalorder %s29, 0
    %s32 = sadd.s32 %s31, 1
    %s33 = scalar_select %p30, %s31, %s32
    %p36 = pneg %p30
    %p37 = scmp.eq.s32.totalorder %s7, 1
    %p38 = por %p36, %p37
    %p39 = scmp.ne.s32.totalorder %s31, %s34
    %p40 = scmp.eq.s32.totalorder %s7, 0
    %p41 = por %p39, %p40
    %p42 = scmp.ne.s32.totalorder %s31, %s34
    %p43 = scmp.eq.s32.totalorder %s12, 1
    %p44 = por %p42, %p43
    %p45 = scmp.ne.s32.totalorder %s34, %s35
    %p46 = scmp.eq.s32.totalorder %s12, 0
    %p47 = por %p45, %p46
    %p48 = scmp.ne.s32.totalorder %s34, %s35
    %p49 = scmp.eq.s32.totalorder %s13, 1
    %p50 = por %p48, %p49
    %p52 = scmp.ne.s32.totalorder %s35, %s51
    %p53 = scmp.eq.s32.totalorder %s13, 0
    %p54 = por %p52, %p53
    %s55 = ssub.s32 %s14, %s26
    %s56 = ssub.s32 %s15, %s22
    %s57 = sor.u32 %s55, %s56
    %p58 = scmp.eq.s32.totalorder %s57, 0
    %s60 = sadd.s32 %s59, 1
    %s61 = scalar_select %p58, %s59, %s60
    %p64 = pneg %p58
    %p65 = scmp.eq.s32.totalorder %s7, 1
    %p66 = por %p64, %p65
    %p67 = scmp.ne.s32.totalorder %s59, %s62
    %p68 = scmp.eq.s32.totalorder %s7, 0
    %p69 = por %p67, %p68
    %p70 = scmp.ne.s32.totalorder %s59, %s62
    %p71 = scmp.eq.s32.totalorder %s12, 1
    %p72 = por %p70, %p71
    %p73 = scmp.ne.s32.totalorder %s62, %s63
    %p74 = scmp.eq.s32.totalorder %s12, 0
    %p75 = por %p73, %p74
    %p76 = scmp.ne.s32.totalorder %s62, %s63
    %p77 = scmp.eq.s32.totalorder %s13, 1
    %p78 = por %p76, %p77
    %p80 = scmp.ne.s32.totalorder %s63, %s79
    %p81 = scmp.eq.s32.totalorder %s13, 0
    %p82 = por %p80, %p81
    %p83 = scmp.le.s32.totalorder 1, %s7
    %p84 = scmp.lt.s32.totalorder %s7, 3
    %p85 = pnand %p83, %p84
    %p86 = pneg %p85
    // Predicated region
    $region9: #{discriminator_forward.10} parent=5 // pred_check
      _
    $region10: #{discriminator_forward.10} parent=5 // pred_check_branch
      %88 = sbr.rel (%p85) target = $region12
    $region11: #{discriminator_forward.10} parent=5 // pred_region
      %s89 = ssub.s32 %s7, 1
    $region12: #{discriminator_forward.10} parent=5 // pred_fallthru
      _
    %p90 = scmp.lt.s32.totalorder %s7, 2
    // Predicated region
    $region13: #{discriminator_forward.10} parent=5 // pred_check
      %p91 = pneg %p90
    $region14: #{discriminator_forward.10} parent=5 // pred_check_branch
      %93 = sbr.rel (%p91) target = $region16
    $region15: #{discriminator_forward.10} parent=5 // pred_region
      // Predicated region
      $region17: #{discriminator_forward.10} parent=15 // pred_check
        %p94 = pneg %p41
      $region18: #{discriminator_forward.10} parent=15 // pred_check_branch
        %96 = sbr.rel (%p94) target = $region20
      $region19: #{discriminator_forward.10} parent=15 // pred_region
        %p97 = scmp.lt.s32.totalorder %s14, 1
        %s98 = scalar_select %p97, %s14, 1
        %p99 = scmp.lt.s32.totalorder %s15, 0
        %s100 = scalar_select %p99, %s15, 0
        %s101 = smul.addr %s98, 8
        %s102 = sadd.s32 %s100, %s101
        %s103 = smul.addr %s102, 8
        %s104 = scalar_lea.vmem %s0, %s103
      $region20: #{discriminator_forward.10} parent=15 // pred_fallthru
        _
    $region16: #{discriminator_forward.10} parent=5 // pred_fallthru
      _
    %p105 = scmp.le.s32.totalorder 1, %s7
    %p106 = scmp.lt.s32.totalorder %s7, 3
    %p107 = pnand %p105, %p106
    %p108 = pneg %p107
    // Predicated region
    $region21: #{discriminator_forward.10} parent=5 // pred_check
      _
    $region22: #{discriminator_forward.10} parent=5 // pred_check_branch
      %110 = sbr.rel (%p107) target = $region24
    $region23: #{discriminator_forward.10} parent=5 // pred_region
      %s111 = ssub.s32 %s7, 1
      %p112 = scmp.lt.s32.totalorder %s16, 1
      %s113 = scalar_select %p112, %s16, 1
      %p114 = scmp.lt.s32.totalorder %s17, 0
      %s115 = scalar_select %p114, %s17, 0
      %s116 = smul.addr %s113, 8
      %s117 = sadd.s32 %s115, %s116
      %s118 = smul.addr %s117, 8
      %s119 = scalar_lea.vmem %s0, %s118
      %p120 = pneg %p47
      %p121 = pneg %p44
      %p122 = pneg %p75
      %p123 = pneg %p72
      %p124 = scmp.lt.s32.totalorder %s16, 1
      %s125 = scalar_select %p124, %s16, 1
      %p126 = scmp.lt.s32.totalorder %s17, 0
      %s127 = scalar_select %p126, %s17, 0
      %s128 = smul.addr %s125, 8
      %s129 = sadd.s32 %s127, %s128
      %s130 = smul.addr %s129, 8
      %s131 = scalar_lea.vmem %s1, %s130
      %p132 = scmp.lt.s32.totalorder %s16, 1
      %s133 = scalar_select %p132, %s16, 1
      %p134 = scmp.lt.s32.totalorder %s17, 0
      %s135 = scalar_select %p134, %s17, 0
      %s136 = smul.addr %s133, 8
      %s137 = sadd.s32 %s135, %s136
      %s138 = smul.addr %s137, 8
      %s139 = scalar_lea.vmem %s0, %s138
      %p140 = scmp.lt.s32.totalorder %s16, 1
      %s141 = scalar_select %p140, %s16, 1
      %p142 = scmp.lt.s32.totalorder %s17, 0
      %s143 = scalar_select %p142, %s17, 0
      %s144 = smul.addr %s141, 8
      %s145 = sadd.s32 %s143, %s144
      %s146 = smul.addr %s145, 8
      %s147 = scalar_lea.vmem %s1, %s146
      %v148 = vld [vmem:[%s139] sm:$0xff]
      %v149 = vld [vmem:[%s139 + $0x8] sm:$0xff]
      %v150 = vld [vmem:[%s139 + $0x10] sm:$0xff]
      %v151 = vld [vmem:[%s139 + $0x18] sm:$0xff]
      %v152 = vld [vmem:[%s139 + $0x20] sm:$0xff]
      %v153 = vld [vmem:[%s139 + $0x28] sm:$0xff]
      %v154 = vld [vmem:[%s139 + $0x30] sm:$0xff]
      %v155 = vld [vmem:[%s139 + $0x38] sm:$0xff]
      %v156 = vadd.f32 %v148, %v149
      %v157 = vadd.f32 %v156, %v150
      %v158 = vadd.f32 %v157, %v151
      %v159 = vadd.f32 %v158, %v152
      %v160 = vadd.f32 %v159, %v153
      %v161 = vadd.f32 %v160, %v154
      %v162 = vadd.f32 %v161, %v155
      %v163 = vrot.slane %v162, 4
      %v164 = vadd.f32 %v162, %v163
      %v165 = vrot.slane %v164, 2
      %v166 = vadd.f32 %v164, %v165
      %v167 = vrot.slane %v166, 1
      %v168 = vadd.f32 %v166, %v167
      %v169 = vmul.f32 %v148, %v148
      %v170 = vmul.f32 %v149, %v149
      %v171 = vmul.f32 %v150, %v150
      %v172 = vmul.f32 %v151, %v151
      %v173 = vmul.f32 %v152, %v152
      %v174 = vmul.f32 %v153, %v153
      %v175 = vmul.f32 %v154, %v154
      %v176 = vmul.f32 %v155, %v155
      %v177 = vadd.f32 %v169, %v170
      %v178 = vadd.f32 %v177, %v171
      %v179 = vadd.f32 %v178, %v172
      %v180 = vadd.f32 %v179, %v173
      %v181 = vadd.f32 %v180, %v174
      %v182 = vadd.f32 %v181, %v175
      %v183 = vadd.f32 %v182, %v176
      %v184 = vrot.slane %v183, 4
      %v185 = vadd.f32 %v183, %v184
      %v186 = vrot.slane %v185, 2
      %v187 = vadd.f32 %v185, %v186
      %v188 = vrot.slane %v187, 1
      %v189 = vadd.f32 %v187, %v188
      %v190 = vmul.f32 %v168, 0.015625
      %v191 = vmul.f32 %v189, 0.015625
      %v192 = vmul.f32 %v190, %v190
      %v193 = vsub.f32 %v191, %v192
      %v194 = vsub.f32 %v148, %v190
      %v195 = vsub.f32 %v149, %v190
      %v196 = vsub.f32 %v150, %v190
      %v197 = vsub.f32 %v151, %v190
      %v198 = vsub.f32 %v152, %v190
      %v199 = vsub.f32 %v153, %v190
      %v200 = vsub.f32 %v154, %v190
      %v201 = vsub.f32 %v155, %v190
      %v202 = vadd.f32 %v193, 1e-05
      %v203 = vrsqrt.pop %v202
      %v204 = vmul.f32 %v203, %v202
      %v205 = vmul.f32 %v204, %v203
      %v206 = vmul.f32 0.5, %v205
      %v207 = vsub.f32 1.5, %v206
      %v208 = vmul.f32 %v203, %v207
      %vm209 = vweird.f32 %v202
      %vm210 = vweird.f32 %v203
      %vm211 = vmor %vm209, %vm210
      %v212 = vsel %vm211, %v203, %v208
      %v213 = vmul.f32 %v194, %v212
      %v214 = vmul.f32 %v195, %v212
      %v215 = vmul.f32 %v196, %v212
      %v216 = vmul.f32 %v197, %v212
      %v217 = vmul.f32 %v198, %v212
      %v218 = vmul.f32 %v199, %v212
      %v219 = vmul.f32 %v200, %v212
      %v220 = vmul.f32 %v201, %v212
      %vm221 = vcmp.ge.f32.partialorder %v213, 0.0
      %vm222 = vcmp.ge.f32.partialorder %v214, 0.0
      %vm223 = vcmp.ge.f32.partialorder %v215, 0.0
      %vm224 = vcmp.ge.f32.partialorder %v216, 0.0
      %vm225 = vcmp.ge.f32.partialorder %v217, 0.0
      %vm226 = vcmp.ge.f32.partialorder %v218, 0.0
      %vm227 = vcmp.ge.f32.partialorder %v219, 0.0
      %vm228 = vcmp.ge.f32.partialorder %v220, 0.0
      %v229 = vmul.f32 %v213, 0.01
      %v230 = vmul.f32 %v214, 0.01
      %v231 = vmul.f32 %v215, 0.01
      %v232 = vmul.f32 %v216, 0.01
      %v233 = vmul.f32 %v217, 0.01
      %v234 = vmul.f32 %v218, 0.01
      %v235 = vmul.f32 %v219, 0.01
      %v236 = vmul.f32 %v220, 0.01
      %v237 = vsel %vm221, %v213, %v229
      %v238 = vsel %vm222, %v214, %v230
      %v239 = vsel %vm223, %v215, %v231
      %v240 = vsel %vm224, %v216, %v232
      %v241 = vsel %vm225, %v217, %v233
      %v242 = vsel %vm226, %v218, %v234
      %v243 = vsel %vm227, %v219, %v235
      %v244 = vsel %vm228, %v220, %v236
      %245 = vst [vmem:[%s147] sm:$0xff] %v237
      %246 = vst [vmem:[%s147 + $0x8] sm:$0xff] %v238
      %247 = vst [vmem:[%s147 + $0x10] sm:$0xff] %v239
      %248 = vst [vmem:[%s147 + $0x18] sm:$0xff] %v240
      %249 = vst [vmem:[%s147 + $0x20] sm:$0xff] %v241
      %250 = vst [vmem:[%s147 + $0x28] sm:$0xff] %v242
      %251 = vst [vmem:[%s147 + $0x30] sm:$0xff] %v243
      %252 = vst [vmem:[%s147 + $0x38] sm:$0xff] %v244
      %p253 = scmp.lt.s32.totalorder %s16, 1
      %s254 = scalar_select %p253, %s16, 1
      %p255 = scmp.lt.s32.totalorder %s17, 0
      %s256 = scalar_select %p255, %s17, 0
      %s257 = smul.addr %s254, 8
      %s258 = sadd.s32 %s256, %s257
      %s259 = smul.addr %s258, 8
      %s260 = scalar_lea.vmem %s1, %s259
      // Predicated region
      $region25: #{discriminator_forward.10} parent=23 // pred_check
        %p261 = pneg %p72
      $region26: #{discriminator_forward.10} parent=23 // pred_check_branch
        %263 = sbr.rel (%p261) target = $region28
      $region27: #{discriminator_forward.10} parent=23 // pred_region
        _
      $region28: #{discriminator_forward.10} parent=23 // pred_fallthru
        _
    $region24: #{discriminator_forward.10} parent=5 // pred_fallthru
      _
    %p264 = scmp.le.s32.totalorder 2, %s7
    // Predicated region
    $region29: #{discriminator_forward.10} parent=5 // pred_check
      %p265 = pneg %p264
    $region30: #{discriminator_forward.10} parent=5 // pred_check_branch
      %267 = sbr.rel (%p265) target = $region32
    $region31: #{discriminator_forward.10} parent=5 // pred_region
      %s268 = ssub.s32 %s7, 2
      // Predicated region
      $region33: #{discriminator_forward.10} parent=31 // pred_check
        %p269 = pneg %p78
      $region34: #{discriminator_forward.10} parent=31 // pred_check_branch
        %271 = sbr.rel (%p269) target = $region36
      $region35: #{discriminator_forward.10} parent=31 // pred_region
        %p272 = scmp.lt.s32.totalorder %s18, 1
        %s273 = scalar_select %p272, %s18, 1
        %p274 = scmp.lt.s32.totalorder %s19, 0
        %s275 = scalar_select %p274, %s19, 0
        %s276 = smul.addr %s273, 8
        %s277 = sadd.s32 %s275, %s276
        %s278 = smul.addr %s277, 8
        %s279 = scalar_lea.vmem %s1, %s278
      $region36: #{discriminator_forward.10} parent=31 // pred_fallthru
        _
    $region32: #{discriminator_forward.10} parent=5 // pred_fallthru
      _
  $region6: #{discriminator_forward.10} parent=0 // loop_footer
    %s11 = sadd.s32 1, %s7
  $region7: #{discriminator_forward.10} parent=0 // loop_footer_branch
    %6 = sbr.rel target = $region3
  $region8: #{discriminator_forward.10} parent=0 // loop_exit
    _

// kernel: discriminator_forward.9
$region0: #{discriminator_forward.9}
  #allocation0 [shape = 'u32[]', space=smem, size = 0x4, offset = 0x4, fixed_abs, tag = 'smem constant byte address 0x4 - core index']
  #allocation1 [shape = 'u32[72,128]{1,0:T(1,128)}', space=vmem, size = 0x9000, scoped, tag = 'internal scratch']
  #allocation2 [shape = 'f32[128,128]{1,0:T(8,128)}', space=vmem, size = 0x10000, scoped, tag = 'scratch operand']
  %s0 = inlined_call_operand.vmem [shape: bf16[128,512], index: 0, kind: input, shape index: {}]
  %s1 = inlined_call_operand.vmem [shape: bf16[512,128], index: 1, kind: input, shape index: {}]
  %s2 = inlined_call_operand.vmem [shape: f32[1,128], index: 2, kind: input, shape index: {}]
  %s3 = inlined_call_operand.vmem [shape: f32[128,128], index: 3, kind: output, shape index: {}]
  %s4 = sld [smem:[#allocation0]]
  $region30: #{discriminator_forward.9} parent=0
    _
  %s6 = ssub.s32 1, %s4
  %s7 = scalar_select 0, %s6, %s4
  // Predicated region
  $region2: #{discriminator_forward.9} parent=0 // pred_check
    _
  $region3: #{discriminator_forward.9} parent=0 // pred_check_branch
    %9 = sbr.rel (0) target = $region5
  $region4: #{discriminator_forward.9} parent=0 // pred_region
    _
  $region5: #{discriminator_forward.9} parent=0 // pred_fallthru
    _
  // Predicated region
  $region6: #{discriminator_forward.9} parent=0 // pred_check
    _
  $region7: #{discriminator_forward.9} parent=0 // pred_check_branch
    %11 = sbr.rel (0) target = $region9
  $region8: #{discriminator_forward.9} parent=0 // pred_region
    _
  $region9: #{discriminator_forward.9} parent=0 // pred_fallthru
    _
  // Predicated region
  $region10: #{discriminator_forward.9} parent=0 // pred_check
    _
  $region11: #{discriminator_forward.9} parent=0 // pred_check_branch
    %13 = sbr.rel (0) target = $region13
  $region12: #{discriminator_forward.9} parent=0 // pred_region
    _
  $region13: #{discriminator_forward.9} parent=0 // pred_fallthru
    _
  %p14 = scmp.eq.s32.totalorder 0, 0
  // Predicated region
  $region14: #{discriminator_forward.9} parent=0 // pred_check
    %p15 = pneg %p14
  $region15: #{discriminator_forward.9} parent=0 // pred_check_branch
    %17 = sbr.rel (%p15) target = $region17
  $region16: #{discriminator_forward.9} parent=0 // pred_region
    %18 = vst [vmem:[#allocation2] sm:$0xff] 0.0
    %19 = vst [vmem:[#allocation2 + $0x8] sm:$0xff] 0.0
    %20 = vst [vmem:[#allocation2 + $0x10] sm:$0xff] 0.0
    %21 = vst [vmem:[#allocation2 + $0x18] sm:$0xff] 0.0
    %22 = vst [vmem:[#allocation2 + $0x20] sm:$0xff] 0.0
    %23 = vst [vmem:[#allocation2 + $0x28] sm:$0xff] 0.0
    %24 = vst [vmem:[#allocation2 + $0x30] sm:$0xff] 0.0
    %25 = vst [vmem:[#allocation2 + $0x38] sm:$0xff] 0.0
    %26 = vst [vmem:[#allocation2 + $0x40] sm:$0xff] 0.0
    %27 = vst [vmem:[#allocation2 + $0x48] sm:$0xff] 0.0
    %28 = vst [vmem:[#allocation2 + $0x50] sm:$0xff] 0.0
    %29 = vst [vmem:[#allocation2 + $0x58] sm:$0xff] 0.0
    %30 = vst [vmem:[#allocation2 + $0x60] sm:$0xff] 0.0
    %31 = vst [vmem:[#allocation2 + $0x68] sm:$0xff] 0.0
    %32 = vst [vmem:[#allocation2 + $0x70] sm:$0xff] 0.0
    %33 = vst [vmem:[#allocation2 + $0x78] sm:$0xff] 0.0
  $region17: #{discriminator_forward.9} parent=0 // pred_fallthru
    _
  %v34 = vld [vmem:[#allocation2] sm:$0xff]
  %v35 = vld [vmem:[#allocation2 + $0x8] sm:$0xff]
  %v36 = vld [vmem:[#allocation2 + $0x10] sm:$0xff]
  %v37 = vld [vmem:[#allocation2 + $0x18] sm:$0xff]
  %v38 = vld [vmem:[#allocation2 + $0x20] sm:$0xff]
  %v39 = vld [vmem:[#allocation2 + $0x28] sm:$0xff]
  %v40 = vld [vmem:[#allocation2 + $0x30] sm:$0xff]
  %v41 = vld [vmem:[#allocation2 + $0x38] sm:$0xff]
  %v42 = vld [vmem:[#allocation2 + $0x40] sm:$0xff]
  %v43 = vld [vmem:[#allocation2 + $0x48] sm:$0xff]
  %v44 = vld [vmem:[#allocation2 + $0x50] sm:$0xff]
  %v45 = vld [vmem:[#allocation2 + $0x58] sm:$0xff]
  %v46 = vld [vmem:[#allocation2 + $0x60] sm:$0xff]
  %v47 = vld [vmem:[#allocation2 + $0x68] sm:$0xff]
  %v48 = vld [vmem:[#allocation2 + $0x70] sm:$0xff]
  %v49 = vld [vmem:[#allocation2 + $0x78] sm:$0xff]
  %v50 = vld [vmem:[%s0] sm:$0xff]
  %v51 = vld [vmem:[%s0 + $0x8] sm:$0xff]
  %v52 = vld [vmem:[%s0 + $0x10] sm:$0xff]
  %v53 = vld [vmem:[%s0 + $0x18] sm:$0xff]
  %v54 = vld [vmem:[%s0 + $0x20] sm:$0xff]
  %v55 = vld [vmem:[%s0 + $0x28] sm:$0xff]
  %v56 = vld [vmem:[%s0 + $0x30] sm:$0xff]
  %v57 = vld [vmem:[%s0 + $0x38] sm:$0xff]
  %v58 = vld [vmem:[%s0 + $0x40] sm:$0xff]
  %v59 = vld [vmem:[%s0 + $0x48] sm:$0xff]
  %v60 = vld [vmem:[%s0 + $0x50] sm:$0xff]
  %v61 = vld [vmem:[%s0 + $0x58] sm:$0xff]
  %v62 = vld [vmem:[%s0 + $0x60] sm:$0xff]
  %v63 = vld [vmem:[%s0 + $0x68] sm:$0xff]
  %v64 = vld [vmem:[%s0 + $0x70] sm:$0xff]
  %v65 = vld [vmem:[%s0 + $0x78] sm:$0xff]
  %v66 = vld [vmem:[%s0 + $0x80] sm:$0xff]
  %v67 = vld [vmem:[%s0 + $0x88] sm:$0xff]
  %v68 = vld [vmem:[%s0 + $0x90] sm:$0xff]
  %v69 = vld [vmem:[%s0 + $0x98] sm:$0xff]
  %v70 = vld [vmem:[%s0 + $0xa0] sm:$0xff]
  %v71 = vld [vmem:[%s0 + $0xa8] sm:$0xff]
  %v72 = vld [vmem:[%s0 + $0xb0] sm:$0xff]
  %v73 = vld [vmem:[%s0 + $0xb8] sm:$0xff]
  %v74 = vld [vmem:[%s0 + $0xc0] sm:$0xff]
  %v75 = vld [vmem:[%s0 + $0xc8] sm:$0xff]
  %v76 = vld [vmem:[%s0 + $0xd0] sm:$0xff]
  %v77 = vld [vmem:[%s0 + $0xd8] sm:$0xff]
  %v78 = vld [vmem:[%s0 + $0xe0] sm:$0xff]
  %v79 = vld [vmem:[%s0 + $0xe8] sm:$0xff]
  %v80 = vld [vmem:[%s0 + $0xf0] sm:$0xff]
  %v81 = vld [vmem:[%s0 + $0xf8] sm:$0xff]
  %v82 = vld [vmem:[%s1] sm:$0xf]
  %v83 = vld [vmem:[%s1 + $0x4] sm:$0xf]
  %v84 = vld [vmem:[%s1 + $0x8] sm:$0xf]
  %v85 = vld [vmem:[%s1 + $0xc] sm:$0xf]
  %v86 = vld [vmem:[%s1 + $0x10] sm:$0xf]
  %v87 = vld [vmem:[%s1 + $0x14] sm:$0xf]
  %v88 = vld [vmem:[%s1 + $0x18] sm:$0xf]
  %v89 = vld [vmem:[%s1 + $0x1c] sm:$0xf]
  %v90 = vld [vmem:[%s1 + $0x20] sm:$0xf]
  %v91 = vld [vmem:[%s1 + $0x24] sm:$0xf]
  %v92 = vld [vmem:[%s1 + $0x28] sm:$0xf]
  %v93 = vld [vmem:[%s1 + $0x2c] sm:$0xf]
  %v94 = vld [vmem:[%s1 + $0x30] sm:$0xf]
  %v95 = vld [vmem:[%s1 + $0x34] sm:$0xf]
  %v96 = vld [vmem:[%s1 + $0x38] sm:$0xf]
  %v97 = vld [vmem:[%s1 + $0x3c] sm:$0xf]
  %v98 = vld [vmem:[%s1 + $0x40] sm:$0xf]
  %v99 = vld [vmem:[%s1 + $0x44] sm:$0xf]
  %v100 = vld [vmem:[%s1 + $0x48] sm:$0xf]
  %v101 = vld [vmem:[%s1 + $0x4c] sm:$0xf]
  %v102 = vld [vmem:[%s1 + $0x50] sm:$0xf]
  %v103 = vld [vmem:[%s1 + $0x54] sm:$0xf]
  %v104 = vld [vmem:[%s1 + $0x58] sm:$0xf]
  %v105 = vld [vmem:[%s1 + $0x5c] sm:$0xf]
  %v106 = vld [vmem:[%s1 + $0x60] sm:$0xf]
  %v107 = vld [vmem:[%s1 + $0x64] sm:$0xf]
  %v108 = vld [vmem:[%s1 + $0x68] sm:$0xf]
  %v109 = vld [vmem:[%s1 + $0x6c] sm:$0xf]
  %v110 = vld [vmem:[%s1 + $0x70] sm:$0xf]
  %v111 = vld [vmem:[%s1 + $0x74] sm:$0xf]
  %v112 = vld [vmem:[%s1 + $0x78] sm:$0xf]
  %v113 = vld [vmem:[%s1 + $0x7c] sm:$0xf]
  %v114 = vld [vmem:[%s1 + $0x80] sm:$0xf]
  %v115 = vld [vmem:[%s1 + $0x84] sm:$0xf]
  %v116 = vld [vmem:[%s1 + $0x88] sm:$0xf]
  %v117 = vld [vmem:[%s1 + $0x8c] sm:$0xf]
  %v118 = vld [vmem:[%s1 + $0x90] sm:$0xf]
  %v119 = vld [vmem:[%s1 + $0x94] sm:$0xf]
  %v120 = vld [vmem:[%s1 + $0x98] sm:$0xf]
  %v121 = vld [vmem:[%s1 + $0x9c] sm:$0xf]
  %v122 = vld [vmem:[%s1 + $0xa0] sm:$0xf]
  %v123 = vld [vmem:[%s1 + $0xa4] sm:$0xf]
  %v124 = vld [vmem:[%s1 + $0xa8] sm:$0xf]
  %v125 = vld [vmem:[%s1 + $0xac] sm:$0xf]
  %v126 = vld [vmem:[%s1 + $0xb0] sm:$0xf]
  %v127 = vld [vmem:[%s1 + $0xb4] sm:$0xf]
  %v128 = vld [vmem:[%s1 + $0xb8] sm:$0xf]
  %v129 = vld [vmem:[%s1 + $0xbc] sm:$0xf]
  %v130 = vld [vmem:[%s1 + $0xc0] sm:$0xf]
  %v131 = vld [vmem:[%s1 + $0xc4] sm:$0xf]
  %v132 = vld [vmem:[%s1 + $0xc8] sm:$0xf]
  %v133 = vld [vmem:[%s1 + $0xcc] sm:$0xf]
  %v134 = vld [vmem:[%s1 + $0xd0] sm:$0xf]
  %v135 = vld [vmem:[%s1 + $0xd4] sm:$0xf]
  %v136 = vld [vmem:[%s1 + $0xd8] sm:$0xf]
  %v137 = vld [vmem:[%s1 + $0xdc] sm:$0xf]
  %v138 = vld [vmem:[%s1 + $0xe0] sm:$0xf]
  %v139 = vld [vmem:[%s1 + $0xe4] sm:$0xf]
  %v140 = vld [vmem:[%s1 + $0xe8] sm:$0xf]
  %v141 = vld [vmem:[%s1 + $0xec] sm:$0xf]
  %v142 = vld [vmem:[%s1 + $0xf0] sm:$0xf]
  %v143 = vld [vmem:[%s1 + $0xf4] sm:$0xf]
  %v144 = vld [vmem:[%s1 + $0xf8] sm:$0xf]
  %v145 = vld [vmem:[%s1 + $0xfc] sm:$0xf]
  %v178 = vunpack.c.l.b16 %v50
  %v179 = vunpack.c.h.b16 %v50
  %v180 = vunpack.c.l.b16 %v51
  %v181 = vunpack.c.h.b16 %v51
  %v182 = vunpack.c.l.b16 %v52
  %v183 = vunpack.c.h.b16 %v52
  %v184 = vunpack.c.l.b16 %v53
  %v185 = vunpack.c.h.b16 %v53
  %v186 = vunpack.c.l.b16 %v54
  %v187 = vunpack.c.h.b16 %v54
  %v188 = vunpack.c.l.b16 %v55
  %v189 = vunpack.c.h.b16 %v55
  %v190 = vunpack.c.l.b16 %v56
  %v191 = vunpack.c.h.b16 %v56
  %v192 = vunpack.c.l.b16 %v57
  %v193 = vunpack.c.h.b16 %v57
  %v194 = vunpack.c.l.b16 %v58
  %v195 = vunpack.c.h.b16 %v58
  %v196 = vunpack.c.l.b16 %v59
  %v197 = vunpack.c.h.b16 %v59
  %v198 = vunpack.c.l.b16 %v60
  %v199 = vunpack.c.h.b16 %v60
  %v200 = vunpack.c.l.b16 %v61
  %v201 = vunpack.c.h.b16 %v61
  %v202 = vunpack.c.l.b16 %v62
  %v203 = vunpack.c.h.b16 %v62
  %v204 = vunpack.c.l.b16 %v63
  %v205 = vunpack.c.h.b16 %v63
  %v206 = vunpack.c.l.b16 %v64
  %v207 = vunpack.c.h.b16 %v64
  %v208 = vunpack.c.l.b16 %v65
  %v209 = vunpack.c.h.b16 %v65
  %v210 = vunpack.c.l.b16 %v66
  %v211 = vunpack.c.h.b16 %v66
  %v212 = vunpack.c.l.b16 %v67
  %v213 = vunpack.c.h.b16 %v67
  %v214 = vunpack.c.l.b16 %v68
  %v215 = vunpack.c.h.b16 %v68
  %v216 = vunpack.c.l.b16 %v69
  %v217 = vunpack.c.h.b16 %v69
  %v218 = vunpack.c.l.b16 %v70
  %v219 = vunpack.c.h.b16 %v70
  %v220 = vunpack.c.l.b16 %v71
  %v221 = vunpack.c.h.b16 %v71
  %v222 = vunpack.c.l.b16 %v72
  %v223 = vunpack.c.h.b16 %v72
  %v224 = vunpack.c.l.b16 %v73
  %v225 = vunpack.c.h.b16 %v73
  %v226 = vunpack.c.l.b16 %v74
  %v227 = vunpack.c.h.b16 %v74
  %v228 = vunpack.c.l.b16 %v75
  %v229 = vunpack.c.h.b16 %v75
  %v230 = vunpack.c.l.b16 %v76
  %v231 = vunpack.c.h.b16 %v76
  %v232 = vunpack.c.l.b16 %v77
  %v233 = vunpack.c.h.b16 %v77
  %v234 = vunpack.c.l.b16 %v78
  %v235 = vunpack.c.h.b16 %v78
  %v236 = vunpack.c.l.b16 %v79
  %v237 = vunpack.c.h.b16 %v79
  %v238 = vunpack.c.l.b16 %v80
  %v239 = vunpack.c.h.b16 %v80
  %v240 = vunpack.c.l.b16 %v81
  %v241 = vunpack.c.h.b16 %v81
  %v242 = vpack.c.b16 %v182, %v178
  %v243 = vpack.c.b16 %v183, %v179
  %v244 = vpack.c.b16 %v184, %v180
  %v245 = vpack.c.b16 %v185, %v181
  %v246 = vpack.c.b16 %v190, %v186
  %v247 = vpack.c.b16 %v191, %v187
  %v248 = vpack.c.b16 %v192, %v188
  %v249 = vpack.c.b16 %v193, %v189
  %v250 = vpack.c.b16 %v198, %v194
  %v251 = vpack.c.b16 %v199, %v195
  %v252 = vpack.c.b16 %v200, %v196
  %v253 = vpack.c.b16 %v201, %v197
  %v254 = vpack.c.b16 %v206, %v202
  %v255 = vpack.c.b16 %v207, %v203
  %v256 = vpack.c.b16 %v208, %v204
  %v257 = vpack.c.b16 %v209, %v205
  %v258 = vpack.c.b16 %v214, %v210
  %v259 = vpack.c.b16 %v215, %v211
  %v260 = vpack.c.b16 %v216, %v212
  %v261 = vpack.c.b16 %v217, %v213
  %v262 = vpack.c.b16 %v222, %v218
  %v263 = vpack.c.b16 %v223, %v219
  %v264 = vpack.c.b16 %v224, %v220
  %v265 = vpack.c.b16 %v225, %v221
  %v266 = vpack.c.b16 %v230, %v226
  %v267 = vpack.c.b16 %v231, %v227
  %v268 = vpack.c.b16 %v232, %v228
  %v269 = vpack.c.b16 %v233, %v229
  %v270 = vpack.c.b16 %v238, %v234
  %v271 = vpack.c.b16 %v239, %v235
  %v272 = vpack.c.b16 %v240, %v236
  %v273 = vpack.c.b16 %v241, %v237
  %v370 = vunpack.c.l.b16 %v82
  %v371 = vunpack.c.l.b16 %v83
  %v372 = vunpack.c.l.b16 %v84
  %v373 = vunpack.c.l.b16 %v85
  %v374 = vunpack.c.l.b16 %v86
  %v375 = vunpack.c.l.b16 %v87
  %v376 = vunpack.c.l.b16 %v88
  %v377 = vunpack.c.l.b16 %v89
  %v378 = vunpack.c.l.b16 %v90
  %v379 = vunpack.c.l.b16 %v91
  %v380 = vunpack.c.l.b16 %v92
  %v381 = vunpack.c.l.b16 %v93
  %v382 = vunpack.c.l.b16 %v94
  %v383 = vunpack.c.l.b16 %v95
  %v384 = vunpack.c.l.b16 %v96
  %v385 = vunpack.c.l.b16 %v97
  %v386 = vunpack.c.l.b16 %v98
  %v387 = vunpack.c.l.b16 %v99
  %v388 = vunpack.c.l.b16 %v100
  %v389 = vunpack.c.l.b16 %v101
  %v390 = vunpack.c.l.b16 %v102
  %v391 = vunpack.c.l.b16 %v103
  %v392 = vunpack.c.l.b16 %v104
  %v393 = vunpack.c.l.b16 %v105
  %v394 = vunpack.c.l.b16 %v106
  %v395 = vunpack.c.l.b16 %v107
  %v396 = vunpack.c.l.b16 %v108
  %v397 = vunpack.c.l.b16 %v109
  %v398 = vunpack.c.l.b16 %v110
  %v399 = vunpack.c.l.b16 %v111
  %v400 = vunpack.c.l.b16 %v112
  %v401 = vunpack.c.l.b16 %v113
  %v402 = vunpack.c.l.b16 %v114
  %v403 = vunpack.c.l.b16 %v115
  %v404 = vunpack.c.l.b16 %v116
  %v405 = vunpack.c.l.b16 %v117
  %v406 = vunpack.c.l.b16 %v118
  %v407 = vunpack.c.l.b16 %v119
  %v408 = vunpack.c.l.b16 %v120
  %v409 = vunpack.c.l.b16 %v121
  %v410 = vunpack.c.l.b16 %v122
  %v411 = vunpack.c.l.b16 %v123
  %v412 = vunpack.c.l.b16 %v124
  %v413 = vunpack.c.l.b16 %v125
  %v414 = vunpack.c.l.b16 %v126
  %v415 = vunpack.c.l.b16 %v127
  %v416 = vunpack.c.l.b16 %v128
  %v417 = vunpack.c.l.b16 %v129
  %v418 = vunpack.c.l.b16 %v130
  %v419 = vunpack.c.l.b16 %v131
  %v420 = vunpack.c.l.b16 %v132
  %v421 = vunpack.c.l.b16 %v133
  %v422 = vunpack.c.l.b16 %v134
  %v423 = vunpack.c.l.b16 %v135
  %v424 = vunpack.c.l.b16 %v136
  %v425 = vunpack.c.l.b16 %v137
  %v426 = vunpack.c.l.b16 %v138
  %v427 = vunpack.c.l.b16 %v139
  %v428 = vunpack.c.l.b16 %v140
  %v429 = vunpack.c.l.b16 %v141
  %v430 = vunpack.c.l.b16 %v142
  %v431 = vunpack.c.l.b16 %v143
  %v432 = vunpack.c.l.b16 %v144
  %v433 = vunpack.c.l.b16 %v145
  %v434 = vpack.c.b16 %v371, %v370
  %v435 = vpack.c.b16 %v373, %v372
  %v436 = vpack.c.b16 %v375, %v374
  %v437 = vpack.c.b16 %v377, %v376
  %v438 = vpack.c.b16 %v379, %v378
  %v439 = vpack.c.b16 %v381, %v380
  %v440 = vpack.c.b16 %v383, %v382
  %v441 = vpack.c.b16 %v385, %v384
  %v442 = vpack.c.b16 %v387, %v386
  %v443 = vpack.c.b16 %v389, %v388
  %v444 = vpack.c.b16 %v391, %v390
  %v445 = vpack.c.b16 %v393, %v392
  %v446 = vpack.c.b16 %v395, %v394
  %v447 = vpack.c.b16 %v397, %v396
  %v448 = vpack.c.b16 %v399, %v398
  %v449 = vpack.c.b16 %v401, %v400
  %v450 = vpack.c.b16 %v403, %v402
  %v451 = vpack.c.b16 %v405, %v404
  %v452 = vpack.c.b16 %v407, %v406
  %v453 = vpack.c.b16 %v409, %v408
  %v454 = vpack.c.b16 %v411, %v410
  %v455 = vpack.c.b16 %v413, %v412
  %v456 = vpack.c.b16 %v415, %v414
  %v457 = vpack.c.b16 %v417, %v416
  %v458 = vpack.c.b16 %v419, %v418
  %v459 = vpack.c.b16 %v421, %v420
  %v460 = vpack.c.b16 %v423, %v422
  %v461 = vpack.c.b16 %v425, %v424
  %v462 = vpack.c.b16 %v427, %v426
  %v463 = vpack.c.b16 %v429, %v428
  %v464 = vpack.c.b16 %v431, %v430
  %v465 = vpack.c.b16 %v433, %v432
  %498 = vmatpush.bf16.msra.mxu0 %v441
  %499 = vmatpush.bf16.msra.mxu0 %v440
  %500 = vmatpush.bf16.msra.mxu0 %v439
  %501 = vmatpush.bf16.msra.mxu0 %v438
  %502 = vmatpush.bf16.msra.mxu0 %v437
  %503 = vmatpush.bf16.msra.mxu0 %v436
  %504 = vmatpush.bf16.msra.mxu0 %v435
  %505 = vmatpush.bf16.msra.mxu0 %v434
  %506 = vmatmul.bf16.gmra.mxu0 %v242
  %v507 = vpop.f32.mrf.mxu0
  %v508 = vadd.f32 0.0, %v507
  %v509 = vpop.f32.mrf.mxu0
  %v510 = vadd.f32 0.0, %v509
  %511 = vmatmul.bf16.gmra.mxu0 %v246
  %v512 = vpop.f32.mrf.mxu0
  %v513 = vadd.f32 0.0, %v512
  %v514 = vpop.f32.mrf.mxu0
  %v515 = vadd.f32 0.0, %v514
  %516 = vmatmul.bf16.gmra.mxu0 %v250
  %v517 = vpop.f32.mrf.mxu0
  %v518 = vadd.f32 0.0, %v517
  %v519 = vpop.f32.mrf.mxu0
  %v520 = vadd.f32 0.0, %v519
  %521 = vmatmul.bf16.gmra.mxu0 %v254
  %v522 = vpop.f32.mrf.mxu0
  %v523 = vadd.f32 0.0, %v522
  %v524 = vpop.f32.mrf.mxu0
  %v525 = vadd.f32 0.0, %v524
  %526 = vmatmul.bf16.gmra.mxu0 %v258
  %v527 = vpop.f32.mrf.mxu0
  %v528 = vadd.f32 0.0, %v527
  %v529 = vpop.f32.mrf.mxu0
  %v530 = vadd.f32 0.0, %v529
  %531 = vmatmul.bf16.gmra.mxu0 %v262
  %v532 = vpop.f32.mrf.mxu0
  %v533 = vadd.f32 0.0, %v532
  %v534 = vpop.f32.mrf.mxu0
  %v535 = vadd.f32 0.0, %v534
  %536 = vmatmul.bf16.gmra.mxu0 %v266
  %v537 = vpop.f32.mrf.mxu0
  %v538 = vadd.f32 0.0, %v537
  %v539 = vpop.f32.mrf.mxu0
  %v540 = vadd.f32 0.0, %v539
  %541 = vmatmul.bf16.gmra.mxu0 %v270
  %v542 = vpop.f32.mrf.mxu0
  %v543 = vadd.f32 0.0, %v542
  %v544 = vpop.f32.mrf.mxu0
  %v545 = vadd.f32 0.0, %v544
  %546 = vdwg.mxu0
  %547 = vmatpush.bf16.msra.mxu0 %v449
  %548 = vmatpush.bf16.msra.mxu0 %v448
  %549 = vmatpush.bf16.msra.mxu0 %v447
  %550 = vmatpush.bf16.msra.mxu0 %v446
  %551 = vmatpush.bf16.msra.mxu0 %v445
  %552 = vmatpush.bf16.msra.mxu0 %v444
  %553 = vmatpush.bf16.msra.mxu0 %v443
  %554 = vmatpush.bf16.msra.mxu0 %v442
  %555 = vmatmul.bf16.gmra.mxu0 %v243
  %v556 = vpop.f32.mrf.mxu0
  %v557 = vadd.f32 %v508, %v556
  %v558 = vpop.f32.mrf.mxu0
  %v559 = vadd.f32 %v510, %v558
  %560 = vmatmul.bf16.gmra.mxu0 %v247
  %v561 = vpop.f32.mrf.mxu0
  %v562 = vadd.f32 %v513, %v561
  %v563 = vpop.f32.mrf.mxu0
  %v564 = vadd.f32 %v515, %v563
  %565 = vmatmul.bf16.gmra.mxu0 %v251
  %v566 = vpop.f32.mrf.mxu0
  %v567 = vadd.f32 %v518, %v566
  %v568 = vpop.f32.mrf.mxu0
  %v569 = vadd.f32 %v520, %v568
  %570 = vmatmul.bf16.gmra.mxu0 %v255
  %v571 = vpop.f32.mrf.mxu0
  %v572 = vadd.f32 %v523, %v571
  %v573 = vpop.f32.mrf.mxu0
  %v574 = vadd.f32 %v525, %v573
  %575 = vmatmul.bf16.gmra.mxu0 %v259
  %v576 = vpop.f32.mrf.mxu0
  %v577 = vadd.f32 %v528, %v576
  %v578 = vpop.f32.mrf.mxu0
  %v579 = vadd.f32 %v530, %v578
  %580 = vmatmul.bf16.gmra.mxu0 %v263
  %v581 = vpop.f32.mrf.mxu0
  %v582 = vadd.f32 %v533, %v581
  %v583 = vpop.f32.mrf.mxu0
  %v584 = vadd.f32 %v535, %v583
  %585 = vmatmul.bf16.gmra.mxu0 %v267
  %v586 = vpop.f32.mrf.mxu0
  %v587 = vadd.f32 %v538, %v586
  %v588 = vpop.f32.mrf.mxu0
  %v589 = vadd.f32 %v540, %v588
  %590 = vmatmul.bf16.gmra.mxu0 %v271
  %v591 = vpop.f32.mrf.mxu0
  %v592 = vadd.f32 %v543, %v591
  %v593 = vpop.f32.mrf.mxu0
  %v594 = vadd.f32 %v545, %v593
  %595 = vdwg.mxu0
  %596 = vmatpush.bf16.msra.mxu0 %v457
  %597 = vmatpush.bf16.msra.mxu0 %v456
  %598 = vmatpush.bf16.msra.mxu0 %v455
  %599 = vmatpush.bf16.msra.mxu0 %v454
  %600 = vmatpush.bf16.msra.mxu0 %v453
  %601 = vmatpush.bf16.msra.mxu0 %v452
  %602 = vmatpush.bf16.msra.mxu0 %v451
  %603 = vmatpush.bf16.msra.mxu0 %v450
  %604 = vmatmul.bf16.gmra.mxu0 %v244
  %v605 = vpop.f32.mrf.mxu0
  %v606 = vadd.f32 %v557, %v605
  %v607 = vpop.f32.mrf.mxu0
  %v608 = vadd.f32 %v559, %v607
  %609 = vmatmul.bf16.gmra.mxu0 %v248
  %v610 = vpop.f32.mrf.mxu0
  %v611 = vadd.f32 %v562, %v610
  %v612 = vpop.f32.mrf.mxu0
  %v613 = vadd.f32 %v564, %v612
  %614 = vmatmul.bf16.gmra.mxu0 %v252
  %v615 = vpop.f32.mrf.mxu0
  %v616 = vadd.f32 %v567, %v615
  %v617 = vpop.f32.mrf.mxu0
  %v618 = vadd.f32 %v569, %v617
  %619 = vmatmul.bf16.gmra.mxu0 %v256
  %v620 = vpop.f32.mrf.mxu0
  %v621 = vadd.f32 %v572, %v620
  %v622 = vpop.f32.mrf.mxu0
  %v623 = vadd.f32 %v574, %v622
  %624 = vmatmul.bf16.gmra.mxu0 %v260
  %v625 = vpop.f32.mrf.mxu0
  %v626 = vadd.f32 %v577, %v625
  %v627 = vpop.f32.mrf.mxu0
  %v628 = vadd.f32 %v579, %v627
  %629 = vmatmul.bf16.gmra.mxu0 %v264
  %v630 = vpop.f32.mrf.mxu0
  %v631 = vadd.f32 %v582, %v630
  %v632 = vpop.f32.mrf.mxu0
  %v633 = vadd.f32 %v584, %v632
  %634 = vmatmul.bf16.gmra.mxu0 %v268
  %v635 = vpop.f32.mrf.mxu0
  %v636 = vadd.f32 %v587, %v635
  %v637 = vpop.f32.mrf.mxu0
  %v638 = vadd.f32 %v589, %v637
  %639 = vmatmul.bf16.gmra.mxu0 %v272
  %v640 = vpop.f32.mrf.mxu0
  %v641 = vadd.f32 %v592, %v640
  %v642 = vpop.f32.mrf.mxu0
  %v643 = vadd.f32 %v594, %v642
  %644 = vdwg.mxu0
  %645 = vmatpush.bf16.msra.mxu0 %v465
  %646 = vmatpush.bf16.msra.mxu0 %v464
  %647 = vmatpush.bf16.msra.mxu0 %v463
  %648 = vmatpush.bf16.msra.mxu0 %v462
  %649 = vmatpush.bf16.msra.mxu0 %v461
  %650 = vmatpush.bf16.msra.mxu0 %v460
  %651 = vmatpush.bf16.msra.mxu0 %v459
  %652 = vmatpush.bf16.msra.mxu0 %v458
  %653 = vmatmul.bf16.gmra.mxu0 %v245
  %v654 = vpop.f32.mrf.mxu0
  %v655 = vadd.f32 %v606, %v654
  %v656 = vpop.f32.mrf.mxu0
  %v657 = vadd.f32 %v608, %v656
  %658 = vmatmul.bf16.gmra.mxu0 %v249
  %v659 = vpop.f32.mrf.mxu0
  %v660 = vadd.f32 %v611, %v659
  %v661 = vpop.f32.mrf.mxu0
  %v662 = vadd.f32 %v613, %v661
  %663 = vmatmul.bf16.gmra.mxu0 %v253
  %v664 = vpop.f32.mrf.mxu0
  %v665 = vadd.f32 %v616, %v664
  %v666 = vpop.f32.mrf.mxu0
  %v667 = vadd.f32 %v618, %v666
  %668 = vmatmul.bf16.gmra.mxu0 %v257
  %v669 = vpop.f32.mrf.mxu0
  %v670 = vadd.f32 %v621, %v669
  %v671 = vpop.f32.mrf.mxu0
  %v672 = vadd.f32 %v623, %v671
  %673 = vmatmul.bf16.gmra.mxu0 %v261
  %v674 = vpop.f32.mrf.mxu0
  %v675 = vadd.f32 %v626, %v674
  %v676 = vpop.f32.mrf.mxu0
  %v677 = vadd.f32 %v628, %v676
  %678 = vmatmul.bf16.gmra.mxu0 %v265
  %v679 = vpop.f32.mrf.mxu0
  %v680 = vadd.f32 %v631, %v679
  %v681 = vpop.f32.mrf.mxu0
  %v682 = vadd.f32 %v633, %v681
  %683 = vmatmul.bf16.gmra.mxu0 %v269
  %v684 = vpop.f32.mrf.mxu0
  %v685 = vadd.f32 %v636, %v684
  %v686 = vpop.f32.mrf.mxu0
  %v687 = vadd.f32 %v638, %v686
  %688 = vmatmul.bf16.gmra.mxu0 %v273
  %v689 = vpop.f32.mrf.mxu0
  %v690 = vadd.f32 %v641, %v689
  %v691 = vpop.f32.mrf.mxu0
  %v692 = vadd.f32 %v643, %v691
  %693 = vdwg.mxu0
  %v694 = vadd.f32 %v34, %v655
  %v695 = vadd.f32 %v35, %v657
  %v696 = vadd.f32 %v36, %v660
  %v697 = vadd.f32 %v37, %v662
  %v698 = vadd.f32 %v38, %v665
  %v699 = vadd.f32 %v39, %v667
  %v700 = vadd.f32 %v40, %v670
  %v701 = vadd.f32 %v41, %v672
  %v702 = vadd.f32 %v42, %v675
  %v703 = vadd.f32 %v43, %v677
  %v704 = vadd.f32 %v44, %v680
  %v705 = vadd.f32 %v45, %v682
  %v706 = vadd.f32 %v46, %v685
  %v707 = vadd.f32 %v47, %v687
  %v708 = vadd.f32 %v48, %v690
  %v709 = vadd.f32 %v49, %v692
  %710 = vst [vmem:[#allocation2] sm:$0xff] %v694
  %711 = vst [vmem:[#allocation2 + $0x8] sm:$0xff] %v695
  %712 = vst [vmem:[#allocation2 + $0x10] sm:$0xff] %v696
  %713 = vst [vmem:[#allocation2 + $0x18] sm:$0xff] %v697
  %714 = vst [vmem:[#allocation2 + $0x20] sm:$0xff] %v698
  %715 = vst [vmem:[#allocation2 + $0x28] sm:$0xff] %v699
  %716 = vst [vmem:[#allocation2 + $0x30] sm:$0xff] %v700
  %717 = vst [vmem:[#allocation2 + $0x38] sm:$0xff] %v701
  %718 = vst [vmem:[#allocation2 + $0x40] sm:$0xff] %v702
  %719 = vst [vmem:[#allocation2 + $0x48] sm:$0xff] %v703
  %720 = vst [vmem:[#allocation2 + $0x50] sm:$0xff] %v704
  %721 = vst [vmem:[#allocation2 + $0x58] sm:$0xff] %v705
  %722 = vst [vmem:[#allocation2 + $0x60] sm:$0xff] %v706
  %723 = vst [vmem:[#allocation2 + $0x68] sm:$0xff] %v707
  %724 = vst [vmem:[#allocation2 + $0x70] sm:$0xff] %v708
  %725 = vst [vmem:[#allocation2 + $0x78] sm:$0xff] %v709
  // Predicated region
  $region18: #{discriminator_forward.9} parent=0 // pred_check
    %p726 = pneg %p14
  $region19: #{discriminator_forward.9} parent=0 // pred_check_branch
    %728 = sbr.rel (%p726) target = $region21
  $region20: #{discriminator_forward.9} parent=0 // pred_region
    %v729 = vld [vmem:[#allocation2] sm:$0xff]
    %v730 = vld [vmem:[#allocation2 + $0x8] sm:$0xff]
    %v731 = vld [vmem:[#allocation2 + $0x10] sm:$0xff]
    %v732 = vld [vmem:[#allocation2 + $0x18] sm:$0xff]
    %v733 = vld [vmem:[#allocation2 + $0x20] sm:$0xff]
    %v734 = vld [vmem:[#allocation2 + $0x28] sm:$0xff]
    %v735 = vld [vmem:[#allocation2 + $0x30] sm:$0xff]
    %v736 = vld [vmem:[#allocation2 + $0x38] sm:$0xff]
    %v737 = vld [vmem:[#allocation2 + $0x40] sm:$0xff]
    %v738 = vld [vmem:[#allocation2 + $0x48] sm:$0xff]
    %v739 = vld [vmem:[#allocation2 + $0x50] sm:$0xff]
    %v740 = vld [vmem:[#allocation2 + $0x58] sm:$0xff]
    %v741 = vld [vmem:[#allocation2 + $0x60] sm:$0xff]
    %v742 = vld [vmem:[#allocation2 + $0x68] sm:$0xff]
    %v743 = vld [vmem:[#allocation2 + $0x70] sm:$0xff]
    %v744 = vld [vmem:[#allocation2 + $0x78] sm:$0xff]
    %v745 = vld [vmem:[%s2] sm:$0x1]
    %v747 = vperm.slane %v745, 0
    %v749 = vadd.f32 %v729, %v747
    %v750 = vadd.f32 %v730, %v747
    %v751 = vadd.f32 %v731, %v747
    %v752 = vadd.f32 %v732, %v747
    %v753 = vadd.f32 %v733, %v747
    %v754 = vadd.f32 %v734, %v747
    %v755 = vadd.f32 %v735, %v747
    %v756 = vadd.f32 %v736, %v747
    %v757 = vadd.f32 %v737, %v747
    %v758 = vadd.f32 %v738, %v747
    %v759 = vadd.f32 %v739, %v747
    %v760 = vadd.f32 %v740, %v747
    %v761 = vadd.f32 %v741, %v747
    %v762 = vadd.f32 %v742, %v747
    %v763 = vadd.f32 %v743, %v747
    %v764 = vadd.f32 %v744, %v747
    %765 = vst [vmem:[%s3] sm:$0xff] %v749
    %766 = vst [vmem:[%s3 + $0x8] sm:$0xff] %v750
    %767 = vst [vmem:[%s3 + $0x10] sm:$0xff] %v751
    %768 = vst [vmem:[%s3 + $0x18] sm:$0xff] %v752
    %769 = vst [vmem:[%s3 + $0x20] sm:$0xff] %v753
    %770 = vst [vmem:[%s3 + $0x28] sm:$0xff] %v754
    %771 = vst [vmem:[%s3 + $0x30] sm:$0xff] %v755
    %772 = vst [vmem:[%s3 + $0x38] sm:$0xff] %v756
    %773 = vst [vmem:[%s3 + $0x40] sm:$0xff] %v757
    %774 = vst [vmem:[%s3 + $0x48] sm:$0xff] %v758
    %775 = vst [vmem:[%s3 + $0x50] sm:$0xff] %v759
    %776 = vst [vmem:[%s3 + $0x58] sm:$0xff] %v760
    %777 = vst [vmem:[%s3 + $0x60] sm:$0xff] %v761
    %778 = vst [vmem:[%s3 + $0x68] sm:$0xff] %v762
    %779 = vst [vmem:[%s3 + $0x70] sm:$0xff] %v763
    %780 = vst [vmem:[%s3 + $0x78] sm:$0xff] %v764
  $region21: #{discriminator_forward.9} parent=0 // pred_fallthru
    _
  // Predicated region
  $region22: #{discriminator_forward.9} parent=0 // pred_check
    _
  $region23: #{discriminator_forward.9} parent=0 // pred_check_branch
    %782 = sbr.rel (0) target = $region25
  $region24: #{discriminator_forward.9} parent=0 // pred_region
    _
  $region25: #{discriminator_forward.9} parent=0 // pred_fallthru
    _
  // Predicated region
  $region26: #{discriminator_forward.9} parent=0 // pred_check
    _
  $region27: #{discriminator_forward.9} parent=0 // pred_check_branch
    %784 = sbr.rel (0) target = $region29
  $region28: #{discriminator_forward.9} parent=0 // pred_region
    _
  $region29: #{discriminator_forward.9} parent=0 // pred_fallthru
    _

// kernel: discriminator_forward.12
$region0: #{discriminator_forward.12}
  #allocation0 [shape = 'u32[]', space=smem, size = 0x4, offset = 0x4, fixed_abs, tag = 'smem constant byte address 0x4 - core index']
  #allocation1 [shape = 'u32[72,128]{1,0:T(1,128)}', space=vmem, size = 0x9000, scoped, tag = 'internal scratch']
  %s0 = inlined_call_operand.vmem [shape: f32[2,16,128], index: 0, kind: input, shape index: {}]
  %s1 = inlined_call_operand.vmem [shape: f32[2,16,128], index: 1, kind: output, shape index: {}]
  %s2 = sld [smem:[#allocation0]]
  $region37: #{discriminator_forward.12} parent=0
    _
  %s4 = ssub.s32 1, %s2
  %s5 = scalar_select 0, %s4, %s2
  loop: start=0, step=1, limit=4
  $region2: #{discriminator_forward.12} parent=0 // loop_pre_header
    _
  $region3: #{discriminator_forward.12} parent=0 // loop_header
    %s7 = sphi 0, %s11
    %p8 = scmp.ge.s32.totalorder %s7, 4
    %s14 = sphi 0, %s26
    %s15 = sphi 0, %s22
    %s16 = sphi 0, %s14
    %s17 = sphi 0, %s15
    %s18 = sphi 0, %s16
    %s19 = sphi 0, %s17
    %s31 = sphi 0, %s33
    %s34 = sphi 0, %s31
    %s35 = sphi 0, %s34
    %s51 = sphi 0, %s35
    %s59 = sphi 0, %s61
    %s62 = sphi 0, %s59
    %s63 = sphi 0, %s62
    %s79 = sphi 0, %s63
  $region4: #{discriminator_forward.12} parent=0 // loop_header_branch
    %10 = sbr.rel (%p8) target = $region8
  $region5: #{discriminator_forward.12} parent=0 // loop_body
    %s12 = ssub.s32 %s7, 1
    %s13 = ssub.s32 %s7, 2
    %s20 = sadd.s32 1, %s15
    %p21 = scmp.ge.s32.totalorder %s20, 1
    %s22 = scalar_select %p21, 0, %s20
    %s23 = sadd.s32 1, %s14
    %s24 = scalar_select %p21, %s23, %s14
    %p25 = scmp.ge.s32.totalorder %s24, 2
    %s26 = scalar_select %p25, 0, %s24
    %s27 = ssub.s32 %s14, %s26
    %s28 = ssub.s32 %s15, %s22
    %s29 = sor.u32 %s27, %s28
    %p30 = scmp.eq.s32.totalorder %s29, 0
    %s32 = sadd.s32 %s31, 1
    %s33 = scalar_select %p30, %s31, %s32
    %p36 = pneg %p30
    %p37 = scmp.eq.s32.totalorder %s7, 1
    %p38 = por %p36, %p37
    %p39 = scmp.ne.s32.totalorder %s31, %s34
    %p40 = scmp.eq.s32.totalorder %s7, 0
    %p41 = por %p39, %p40
    %p42 = scmp.ne.s32.totalorder %s31, %s34
    %p43 = scmp.eq.s32.totalorder %s12, 1
    %p44 = por %p42, %p43
    %p45 = scmp.ne.s32.totalorder %s34, %s35
    %p46 = scmp.eq.s32.totalorder %s12, 0
    %p47 = por %p45, %p46
    %p48 = scmp.ne.s32.totalorder %s34, %s35
    %p49 = scmp.eq.s32.totalorder %s13, 1
    %p50 = por %p48, %p49
    %p52 = scmp.ne.s32.totalorder %s35, %s51
    %p53 = scmp.eq.s32.totalorder %s13, 0
    %p54 = por %p52, %p53
    %s55 = ssub.s32 %s14, %s26
    %s56 = ssub.s32 %s15, %s22
    %s57 = sor.u32 %s55, %s56
    %p58 = scmp.eq.s32.totalorder %s57, 0
    %s60 = sadd.s32 %s59, 1
    %s61 = scalar_select %p58, %s59, %s60
    %p64 = pneg %p58
    %p65 = scmp.eq.s32.totalorder %s7, 1
    %p66 = por %p64, %p65
    %p67 = scmp.ne.s32.totalorder %s59, %s62
    %p68 = scmp.eq.s32.totalorder %s7, 0
    %p69 = por %p67, %p68
    %p70 = scmp.ne.s32.totalorder %s59, %s62
    %p71 = scmp.eq.s32.totalorder %s12, 1
    %p72 = por %p70, %p71
    %p73 = scmp.ne.s32.totalorder %s62, %s63
    %p74 = scmp.eq.s32.totalorder %s12, 0
    %p75 = por %p73, %p74
    %p76 = scmp.ne.s32.totalorder %s62, %s63
    %p77 = scmp.eq.s32.totalorder %s13, 1
    %p78 = por %p76, %p77
    %p80 = scmp.ne.s32.totalorder %s63, %s79
    %p81 = scmp.eq.s32.totalorder %s13, 0
    %p82 = por %p80, %p81
    %p83 = scmp.le.s32.totalorder 1, %s7
    %p84 = scmp.lt.s32.totalorder %s7, 3
    %p85 = pnand %p83, %p84
    %p86 = pneg %p85
    // Predicated region
    $region9: #{discriminator_forward.12} parent=5 // pred_check
      _
    $region10: #{discriminator_forward.12} parent=5 // pred_check_branch
      %88 = sbr.rel (%p85) target = $region12
    $region11: #{discriminator_forward.12} parent=5 // pred_region
      %s89 = ssub.s32 %s7, 1
    $region12: #{discriminator_forward.12} parent=5 // pred_fallthru
      _
    %p90 = scmp.lt.s32.totalorder %s7, 2
    // Predicated region
    $region13: #{discriminator_forward.12} parent=5 // pred_check
      %p91 = pneg %p90
    $region14: #{discriminator_forward.12} parent=5 // pred_check_branch
      %93 = sbr.rel (%p91) target = $region16
    $region15: #{discriminator_forward.12} parent=5 // pred_region
      // Predicated region
      $region17: #{discriminator_forward.12} parent=15 // pred_check
        %p94 = pneg %p41
      $region18: #{discriminator_forward.12} parent=15 // pred_check_branch
        %96 = sbr.rel (%p94) target = $region20
      $region19: #{discriminator_forward.12} parent=15 // pred_region
        %p97 = scmp.lt.s32.totalorder %s14, 1
        %s98 = scalar_select %p97, %s14, 1
        %p99 = scmp.lt.s32.totalorder %s15, 0
        %s100 = scalar_select %p99, %s15, 0
        %s101 = smul.addr %s98, 2
        %s102 = sadd.s32 %s100, %s101
        %s103 = smul.addr %s102, 8
        %s104 = scalar_lea.vmem %s0, %s103
      $region20: #{discriminator_forward.12} parent=15 // pred_fallthru
        _
    $region16: #{discriminator_forward.12} parent=5 // pred_fallthru
      _
    %p105 = scmp.le.s32.totalorder 1, %s7
    %p106 = scmp.lt.s32.totalorder %s7, 3
    %p107 = pnand %p105, %p106
    %p108 = pneg %p107
    // Predicated region
    $region21: #{discriminator_forward.12} parent=5 // pred_check
      _
    $region22: #{discriminator_forward.12} parent=5 // pred_check_branch
      %110 = sbr.rel (%p107) target = $region24
    $region23: #{discriminator_forward.12} parent=5 // pred_region
      %s111 = ssub.s32 %s7, 1
      %p112 = scmp.lt.s32.totalorder %s16, 1
      %s113 = scalar_select %p112, %s16, 1
      %p114 = scmp.lt.s32.totalorder %s17, 0
      %s115 = scalar_select %p114, %s17, 0
      %s116 = smul.addr %s113, 2
      %s117 = sadd.s32 %s115, %s116
      %s118 = smul.addr %s117, 8
      %s119 = scalar_lea.vmem %s0, %s118
      %p120 = pneg %p47
      %p121 = pneg %p44
      %p122 = pneg %p75
      %p123 = pneg %p72
      %p124 = scmp.lt.s32.totalorder %s16, 1
      %s125 = scalar_select %p124, %s16, 1
      %p126 = scmp.lt.s32.totalorder %s17, 0
      %s127 = scalar_select %p126, %s17, 0
      %s128 = smul.addr %s125, 2
      %s129 = sadd.s32 %s127, %s128
      %s130 = smul.addr %s129, 8
      %s131 = scalar_lea.vmem %s1, %s130
      %p132 = scmp.lt.s32.totalorder %s16, 1
      %s133 = scalar_select %p132, %s16, 1
      %p134 = scmp.lt.s32.totalorder %s17, 0
      %s135 = scalar_select %p134, %s17, 0
      %s136 = smul.addr %s133, 2
      %s137 = sadd.s32 %s135, %s136
      %s138 = smul.addr %s137, 8
      %s139 = scalar_lea.vmem %s0, %s138
      %p140 = scmp.lt.s32.totalorder %s16, 1
      %s141 = scalar_select %p140, %s16, 1
      %p142 = scmp.lt.s32.totalorder %s17, 0
      %s143 = scalar_select %p142, %s17, 0
      %s144 = smul.addr %s141, 2
      %s145 = sadd.s32 %s143, %s144
      %s146 = smul.addr %s145, 8
      %s147 = scalar_lea.vmem %s1, %s146
      %v148 = vld [vmem:[%s139] sm:$0xff]
      %v149 = vld [vmem:[%s139 + $0x8] sm:$0xff]
      %v150 = vadd.f32 %v148, %v149
      %v151 = vrot.slane %v150, 4
      %v152 = vadd.f32 %v150, %v151
      %v153 = vrot.slane %v152, 2
      %v154 = vadd.f32 %v152, %v153
      %v155 = vrot.slane %v154, 1
      %v156 = vadd.f32 %v154, %v155
      %v157 = vmul.f32 %v148, %v148
      %v158 = vmul.f32 %v149, %v149
      %v159 = vadd.f32 %v157, %v158
      %v160 = vrot.slane %v159, 4
      %v161 = vadd.f32 %v159, %v160
      %v162 = vrot.slane %v161, 2
      %v163 = vadd.f32 %v161, %v162
      %v164 = vrot.slane %v163, 1
      %v165 = vadd.f32 %v163, %v164
      %v166 = vmul.f32 %v156, 0.0625
      %v167 = vmul.f32 %v165, 0.0625
      %v168 = vmul.f32 %v166, %v166
      %v169 = vsub.f32 %v167, %v168
      %v170 = vsub.f32 %v148, %v166
      %v171 = vsub.f32 %v149, %v166
      %v172 = vadd.f32 %v169, 1e-05
      %v173 = vrsqrt.pop %v172
      %v174 = vmul.f32 %v173, %v172
      %v175 = vmul.f32 %v174, %v173
      %v176 = vmul.f32 0.5, %v175
      %v177 = vsub.f32 1.5, %v176
      %v178 = vmul.f32 %v173, %v177
      %vm179 = vweird.f32 %v172
      %vm180 = vweird.f32 %v173
      %vm181 = vmor %vm179, %vm180
      %v182 = vsel %vm181, %v173, %v178
      %v183 = vmul.f32 %v170, %v182
      %v184 = vmul.f32 %v171, %v182
      %vm185 = vcmp.ge.f32.partialorder %v183, 0.0
      %vm186 = vcmp.ge.f32.partialorder %v184, 0.0
      %v187 = vmul.f32 %v183, 0.01
      %v188 = vmul.f32 %v184, 0.01
      %v189 = vsel %vm185, %v183, %v187
      %v190 = vsel %vm186, %v184, %v188
      %191 = vst [vmem:[%s147] sm:$0xff] %v189
      %192 = vst [vmem:[%s147 + $0x8] sm:$0xff] %v190
      %p193 = scmp.lt.s32.totalorder %s16, 1
      %s194 = scalar_select %p193, %s16, 1
      %p195 = scmp.lt.s32.totalorder %s17, 0
      %s196 = scalar_select %p195, %s17, 0
      %s197 = smul.addr %s194, 2
      %s198 = sadd.s32 %s196, %s197
      %s199 = smul.addr %s198, 8
      %s200 = scalar_lea.vmem %s1, %s199
      // Predicated region
      $region25: #{discriminator_forward.12} parent=23 // pred_check
        %p201 = pneg %p72
      $region26: #{discriminator_forward.12} parent=23 // pred_check_branch
        %203 = sbr.rel (%p201) target = $region28
      $region27: #{discriminator_forward.12} parent=23 // pred_region
        _
      $region28: #{discriminator_forward.12} parent=23 // pred_fallthru
        _
    $region24: #{discriminator_forward.12} parent=5 // pred_fallthru
      _
    %p204 = scmp.le.s32.totalorder 2, %s7
    // Predicated region
    $region29: #{discriminator_forward.12} parent=5 // pred_check
      %p205 = pneg %p204
    $region30: #{discriminator_forward.12} parent=5 // pred_check_branch
      %207 = sbr.rel (%p205) target = $region32
    $region31: #{discriminator_forward.12} parent=5 // pred_region
      %s208 = ssub.s32 %s7, 2
      // Predicated region
      $region33: #{discriminator_forward.12} parent=31 // pred_check
        %p209 = pneg %p78
      $region34: #{discriminator_forward.12} parent=31 // pred_check_branch
        %211 = sbr.rel (%p209) target = $region36
      $region35: #{discriminator_forward.12} parent=31 // pred_region
        %p212 = scmp.lt.s32.totalorder %s18, 1
        %s213 = scalar_select %p212, %s18, 1
        %p214 = scmp.lt.s32.totalorder %s19, 0
        %s215 = scalar_select %p214, %s19, 0
        %s216 = smul.addr %s213, 2
        %s217 = sadd.s32 %s215, %s216
        %s218 = smul.addr %s217, 8
        %s219 = scalar_lea.vmem %s1, %s218
      $region36: #{discriminator_forward.12} parent=31 // pred_fallthru
        _
    $region32: #{discriminator_forward.12} parent=5 // pred_fallthru
      _
  $region6: #{discriminator_forward.12} parent=0 // loop_footer
    %s11 = sadd.s32 1, %s7
  $region7: #{discriminator_forward.12} parent=0 // loop_footer_branch
    %6 = sbr.rel target = $region3
  $region8: #{discriminator_forward.12} parent=0 // loop_exit
    _

// kernel: discriminator_forward.11
$region0: #{discriminator_forward.11}
  #allocation0 [shape = 'u32[]', space=smem, size = 0x4, offset = 0x4, fixed_abs, tag = 'smem constant byte address 0x4 - core index']
  #allocation1 [shape = 'u32[72,128]{1,0:T(1,128)}', space=vmem, size = 0x9000, scoped, tag = 'internal scratch']
  #allocation2 [shape = 'f32[32,128]{1,0:T(8,128)}', space=vmem, size = 0x4000, scoped, tag = 'scratch operand']
  %s0 = inlined_call_operand.vmem [shape: bf16[32,1024], index: 0, kind: input, shape index: {}]
  %s1 = inlined_call_operand.vmem [shape: bf16[1024,128], index: 1, kind: input, shape index: {}]
  %s2 = inlined_call_operand.vmem [shape: f32[1,128], index: 2, kind: input, shape index: {}]
  %s3 = inlined_call_operand.vmem [shape: f32[32,128], index: 3, kind: output, shape index: {}]
  %s4 = sld [smem:[#allocation0]]
  $region76: #{discriminator_forward.11} parent=0
    _
  %s6 = ssub.s32 1, %s4
  %s7 = scalar_select 0, %s6, %s4
  $region1: #{discriminator_forward.11} parent=0
    #allocation3 [shape = 'u8[65536]{0}', space=vmem, size = 0x10000, scoped, tag = 'input window, operand 0']
    loop: start=0, step=1, limit=4
    $region2: #{discriminator_forward.11} parent=1 // loop_pre_header
      _
    $region3: #{discriminator_forward.11} parent=1 // loop_header
      %s9 = sphi 0, %s13
      %p10 = scmp.ge.s32.totalorder %s9, 4
      %s16 = sphi 0, %s35
      %s17 = sphi 0, %s31
      %s18 = sphi 0, %s27
      %s19 = sphi 0, %s16
      %s20 = sphi 0, %s17
      %s21 = sphi 0, %s18
      %s22 = sphi 0, %s19
      %s23 = sphi 0, %s20
      %s24 = sphi 0, %s21
      %s40 = sphi 0, %s42
      %s43 = sphi 0, %s40
      %s44 = sphi 0, %s43
      %s60 = sphi 0, %s44
      %s68 = sphi 0, %s70
      %s71 = sphi 0, %s68
      %s72 = sphi 0, %s71
      %s88 = sphi 0, %s72
      %s94 = sphi 0, %s96
      %s97 = sphi 0, %s94
      %s98 = sphi 0, %s97
      %s114 = sphi 0, %s98
      %s122 = sphi 0, %s124
      %s125 = sphi 0, %s122
      %s126 = sphi 0, %s125
      %s142 = sphi 0, %s126
    $region4: #{discriminator_forward.11} parent=1 // loop_header_branch
      %12 = sbr.rel (%p10) target = $region8
    $region5: #{discriminator_forward.11} parent=1 // loop_body
      %s14 = ssub.s32 %s9, 1
      %s15 = ssub.s32 %s9, 2
      %s25 = sadd.s32 1, %s18
      %p26 = scmp.ge.s32.totalorder %s25, 2
      %s27 = scalar_select %p26, 0, %s25
      %s28 = sadd.s32 1, %s17
      %s29 = scalar_select %p26, %s28, %s17
      %p30 = scmp.ge.s32.totalorder %s29, 1
      %s31 = scalar_select %p30, 0, %s29
      %s32 = sadd.s32 1, %s16
      %s33 = scalar_select %p30, %s32, %s16
      %p34 = scmp.ge.s32.totalorder %s33, 1
      %s35 = scalar_select %p34, 0, %s33
      %s36 = ssub.s32 %s16, %s35
      %s37 = ssub.s32 %s18, %s27
      %s38 = sor.u32 %s36, %s37
      %p39 = scmp.eq.s32.totalorder %s38, 0
      %s41 = sadd.s32 %s40, 1
      %s42 = scalar_select %p39, %s40, %s41
      %p45 = pneg %p39
      %p46 = scmp.eq.s32.totalorder %s9, 1
      %p47 = por %p45, %p46
      %p48 = scmp.ne.s32.totalorder %s40, %s43
      %p49 = scmp.eq.s32.totalorder %s9, 0
      %p50 = por %p48, %p49
      %p51 = scmp.ne.s32.totalorder %s40, %s43
      %p52 = scmp.eq.s32.totalorder %s14, 1
      %p53 = por %p51, %p52
      %p54 = scmp.ne.s32.totalorder %s43, %s44
      %p55 = scmp.eq.s32.totalorder %s14, 0
      %p56 = por %p54, %p55
      %p57 = scmp.ne.s32.totalorder %s43, %s44
      %p58 = scmp.eq.s32.totalorder %s15, 1
      %p59 = por %p57, %p58
      %p61 = scmp.ne.s32.totalorder %s44, %s60
      %p62 = scmp.eq.s32.totalorder %s15, 0
      %p63 = por %p61, %p62
      %s64 = ssub.s32 %s18, %s27
      %s65 = ssub.s32 %s17, %s31
      %s66 = sor.u32 %s64, %s65
      %p67 = scmp.eq.s32.totalorder %s66, 0
      %s69 = sadd.s32 %s68, 1
      %s70 = scalar_select %p67, %s68, %s69
      %p73 = pneg %p67
      %p74 = scmp.eq.s32.totalorder %s9, 1
      %p75 = por %p73, %p74
      %p76 = scmp.ne.s32.totalorder %s68, %s71
      %p77 = scmp.eq.s32.totalorder %s9, 0
      %p78 = por %p76, %p77
      %p79 = scmp.ne.s32.totalorder %s68, %s71
      %p80 = scmp.eq.s32.totalorder %s14, 1
      %p81 = por %p79, %p80
      %p82 = scmp.ne.s32.totalorder %s71, %s72
      %p83 = scmp.eq.s32.totalorder %s14, 0
      %p84 = por %p82, %p83
      %p85 = scmp.ne.s32.totalorder %s71, %s72
      %p86 = scmp.eq.s32.totalorder %s15, 1
      %p87 = por %p85, %p86
      %p89 = scmp.ne.s32.totalorder %s72, %s88
      %p90 = scmp.eq.s32.totalorder %s15, 0
      %p91 = por %p89, %p90
      %s92 = ssub.s32 %s17, %s31
      %p93 = scmp.eq.s32.totalorder %s92, 0
      %s95 = sadd.s32 %s94, 1
      %s96 = scalar_select %p93, %s94, %s95
      %p99 = pneg %p93
      %p100 = scmp.eq.s32.totalorder %s9, 1
      %p101 = por %p99, %p100
      %p102 = scmp.ne.s32.totalorder %s94, %s97
      %p103 = scmp.eq.s32.totalorder %s9, 0
      %p104 = por %p102, %p103
      %p105 = scmp.ne.s32.totalorder %s94, %s97
      %p106 = scmp.eq.s32.totalorder %s14, 1
      %p107 = por %p105, %p106
      %p108 = scmp.ne.s32.totalorder %s97, %s98
      %p109 = scmp.eq.s32.totalorder %s14, 0
      %p110 = por %p108, %p109
      %p111 = scmp.ne.s32.totalorder %s97, %s98
      %p112 = scmp.eq.s32.totalorder %s15, 1
      %p113 = por %p111, %p112
      %p115 = scmp.ne.s32.totalorder %s98, %s114
      %p116 = scmp.eq.s32.totalorder %s15, 0
      %p117 = por %p115, %p116
      %s118 = ssub.s32 %s16, %s35
      %s119 = ssub.s32 %s17, %s31
      %s120 = sor.u32 %s118, %s119
      %p121 = scmp.eq.s32.totalorder %s120, 0
      %s123 = sadd.s32 %s122, 1
      %s124 = scalar_select %p121, %s122, %s123
      %p127 = pneg %p121
      %p128 = scmp.eq.s32.totalorder %s9, 1
      %p129 = por %p127, %p128
      %p130 = scmp.ne.s32.totalorder %s122, %s125
      %p131 = scmp.eq.s32.totalorder %s9, 0
      %p132 = por %p130, %p131
      %p133 = scmp.ne.s32.totalorder %s122, %s125
      %p134 = scmp.eq.s32.totalorder %s14, 1
      %p135 = por %p133, %p134
      %p136 = scmp.ne.s32.totalorder %s125, %s126
      %p137 = scmp.eq.s32.totalorder %s14, 0
      %p138 = por %p136, %p137
      %p139 = scmp.ne.s32.totalorder %s125, %s126
      %p140 = scmp.eq.s32.totalorder %s15, 1
      %p141 = por %p139, %p140
      %p143 = scmp.ne.s32.totalorder %s126, %s142
      %p144 = scmp.eq.s32.totalorder %s15, 0
      %p145 = por %p143, %p144
      %p146 = scmp.le.s32.totalorder 1, %s9
      %p147 = scmp.lt.s32.totalorder %s9, 3
      %p148 = pnand %p146, %p147
      %p149 = pneg %p148
      // Predicated region
      $region9: #{discriminator_forward.11} parent=5 // pred_check
        _
      $region10: #{discriminator_forward.11} parent=5 // pred_check_branch
        %151 = sbr.rel (%p148) target = $region12
      $region11: #{discriminator_forward.11} parent=5 // pred_region
        %s152 = ssub.s32 %s9, 1
        // Predicated region
        $region13: #{discriminator_forward.11} parent=11 // pred_check
          %p153 = pneg %p110
        $region14: #{discriminator_forward.11} parent=11 // pred_check_branch
          %155 = sbr.rel (%p153) target = $region16
        $region15: #{discriminator_forward.11} parent=11 // pred_region
          %p156 = scmp.lt.s32.totalorder %s20, 0
          %s157 = scalar_select %p156, %s20, 0
          %s158 = scalar_lea.vmem %s2, %s157
        $region16: #{discriminator_forward.11} parent=11 // pred_fallthru
          _
      $region12: #{discriminator_forward.11} parent=5 // pred_fallthru
        _
      %p159 = scmp.lt.s32.totalorder %s9, 2
      // Predicated region
      $region17: #{discriminator_forward.11} parent=5 // pred_check
        %p160 = pneg %p159
      $region18: #{discriminator_forward.11} parent=5 // pred_check_branch
        %162 = sbr.rel (%p160) target = $region20
      $region19: #{discriminator_forward.11} parent=5 // pred_region
        // Predicated region
        $region21: #{discriminator_forward.11} parent=19 // pred_check
          %p163 = pneg %p50
        $region22: #{discriminator_forward.11} parent=19 // pred_check_branch
          %165 = sbr.rel (%p163) target = $region24
        $region23: #{discriminator_forward.11} parent=19 // pred_region
          %s166 = sand.u32 %s40, 1
          %s167 = sand.u32 %s40, 1
          %s168 = smul.addr %s167, 64
          %s169 = scalar_lea.vmem [#allocation3], %s168
          %s170 = smul.u32 4, %s16
          %s171 = smul.u32 4, %s18
          %s172 = smul.addr %s170, 8
          %s173 = sadd.s32 %s171, %s172
          %s174 = smul.addr %s173, 4
          %s175 = scalar_lea.vmem %s0, %s174
          // Predicated region
          $region25: #{discriminator_forward.11} parent=23 // pred_check
            _
          $region26: #{discriminator_forward.11} parent=23 // pred_check_branch
            %177 = sbr.rel (0) target = $region28
          $region27: #{discriminator_forward.11} parent=23 // pred_region
            // Predicated region
            $region29: #{discriminator_forward.11} parent=27 // pred_check
              _
            $region30: #{discriminator_forward.11} parent=27 // pred_check_branch
              %179 = sbr.rel (0) target = $region32
            $region31: #{discriminator_forward.11} parent=27 // pred_region
              loop: start=0, step=1, limit=1
              $region33: #{discriminator_forward.11} parent=31 // loop_pre_header
                _
              $region34: #{discriminator_forward.11} parent=31 // loop_header
                %s181 = sphi 0, %s185
                %p182 = scmp.ge.s32.totalorder %s181, 1
                %s186 = sphi %s175, %s175
                %s187 = sphi %s169, %s169
              $region35: #{discriminator_forward.11} parent=31 // loop_header_branch
                %184 = sbr.rel (%p182) target = $region39
              $region36: #{discriminator_forward.11} parent=31 // loop_body
                %v188 = vld [vmem:[%s186] sm:$0xff]
                %189 = vst [vmem:[%s187] sm:$0xff] %v188
                %v190 = vld [vmem:[%s186 + $0x8] sm:$0xff]
                %191 = vst [vmem:[%s187 + $0x8] sm:$0xff] %v190
                %v192 = vld [vmem:[%s186 + $0x20] sm:$0xff]
                %193 = vst [vmem:[%s187 + $0x10] sm:$0xff] %v192
                %v194 = vld [vmem:[%s186 + $0x28] sm:$0xff]
                %195 = vst [vmem:[%s187 + $0x18] sm:$0xff] %v194
                %v196 = vld [vmem:[%s186 + $0x40] sm:$0xff]
                %197 = vst [vmem:[%s187 + $0x20] sm:$0xff] %v196
                %v198 = vld [vmem:[%s186 + $0x48] sm:$0xff]
                %199 = vst [vmem:[%s187 + $0x28] sm:$0xff] %v198
                %v200 = vld [vmem:[%s186 + $0x60] sm:$0xff]
                %201 = vst [vmem:[%s187 + $0x30] sm:$0xff] %v200
                %v202 = vld [vmem:[%s186 + $0x68] sm:$0xff]
                %203 = vst [vmem:[%s187 + $0x38] sm:$0xff] %v202
              $region37: #{discriminator_forward.11} parent=31 // loop_footer
                %s185 = sadd.s32 1, %s181
              $region38: #{discriminator_forward.11} parent=31 // loop_footer_branch
                %180 = sbr.rel target = $region34
              $region39: #{discriminator_forward.11} parent=31 // loop_exit
                _
            $region32: #{discriminator_forward.11} parent=27 // pred_fallthru
              _
            // Predicated region
            $region40: #{discriminator_forward.11} parent=27 // pred_check
              _
            $region41: #{discriminator_forward.11} parent=27 // pred_check_branch
              %205 = sbr.rel target = $region43
            $region42: #{discriminator_forward.11} parent=27 // pred_region
              _
            $region43: #{discriminator_forward.11} parent=27 // pred_fallthru
              _
          $region28: #{discriminator_forward.11} parent=23 // pred_fallthru
            _
          %206 = vnop
        $region24: #{discriminator_forward.11} parent=19 // pred_fallthru
          _
        // Predicated region
        $region44: #{discriminator_forward.11} parent=19 // pred_check
          %p207 = pneg %p78
        $region45: #{discriminator_forward.11} parent=19 // pred_check_branch
          %209 = sbr.rel (%p207) target = $region47
        $region46: #{discriminator_forward.11} parent=19 // pred_region
          %s210 = smul.u32 64, %s18
          %p211 = scmp.lt.s32.totalorder %s210, 127
          %s212 = scalar_select %p211, %s210, 127
          %p213 = scmp.lt.s32.totalorder %s17, 0
          %s214 = scalar_select %p213, %s17, 0
          %s215 = sadd.s32 %s214, %s212
          %s216 = smul.addr %s215, 4
          %s217 = scalar_lea.vmem %s1, %s216
          %s218 = smul.u32 64, %s18
        $region47: #{discriminator_forward.11} parent=19 // pred_fallthru
          _
      $region20: #{discriminator_forward.11} parent=5 // pred_fallthru
        _
      %p219 = scmp.le.s32.totalorder 1, %s9
      %p220 = scmp.lt.s32.totalorder %s9, 3
      %p221 = pnand %p219, %p220
      %p222 = pneg %p221
      // Predicated region
      $region48: #{discriminator_forward.11} parent=5 // pred_check
        _
      $region49: #{discriminator_forward.11} parent=5 // pred_check_branch
        %224 = sbr.rel (%p221) target = $region51
      $region50: #{discriminator_forward.11} parent=5 // pred_region
        %s225 = ssub.s32 %s9, 1
        %s226 = sand.u32 %s43, 1
        %s227 = sand.u32 %s43, 1
        %s228 = smul.addr %s227, 64
        %s229 = scalar_lea.vmem [#allocation3], %s228
        // Predicated region
        $region52: #{discriminator_forward.11} parent=50 // pred_check
          %p230 = pneg %p56
        $region53: #{discriminator_forward.11} parent=50 // pred_check_branch
          %232 = sbr.rel (%p230) target = $region55
        $region54: #{discriminator_forward.11} parent=50 // pred_region
          _
        $region55: #{discriminator_forward.11} parent=50 // pred_fallthru
          _
        %s233 = sand.u32 %s43, 1
        %s234 = sand.u32 %s43, 1
        %s235 = smul.addr %s234, 64
        %s236 = scalar_lea.vmem [#allocation3], %s235
        %p237 = pneg %p56
        %p238 = pneg %p53
        %s239 = smul.u32 64, %s21
        %p240 = scmp.lt.s32.totalorder %s239, 127
        %s241 = scalar_select %p240, %s239, 127
        %p242 = scmp.lt.s32.totalorder %s20, 0
        %s243 = scalar_select %p242, %s20, 0
        %s244 = sadd.s32 %s243, %s241
        %s245 = smul.addr %s244, 4
        %s246 = scalar_lea.vmem %s1, %s245
        %p247 = pneg %p84
        %p248 = pneg %p81
        %p249 = scmp.lt.s32.totalorder %s20, 0
        %s250 = scalar_select %p249, %s20, 0
        %s251 = scalar_lea.vmem %s2, %s250
        %p252 = pneg %p110
        %p253 = pneg %p107
        %p254 = pneg %p138
        %p255 = pneg %p135
        %s256 = smul.u32 4, %s19
        %p257 = scmp.lt.s32.totalorder %s256, 3
        %s258 = scalar_select %p257, %s256, 3
        %p259 = scmp.lt.s32.totalorder %s20, 0
        %s260 = scalar_select %p259, %s20, 0
        %s261 = sadd.s32 %s260, %s258
        %s262 = smul.addr %s261, 8
        %s263 = scalar_lea.vmem %s3, %s262
        %s264 = smul.u32 4, %s19
        %s265 = smul.u32 4, %s21
        %s266 = smul.u32 64, %s21
        %p267 = scmp.lt.s32.totalorder %s266, 127
        %s268 = scalar_select %p267, %s266, 127
        %p269 = scmp.lt.s32.totalorder %s20, 0
        %s270 = scalar_select %p269, %s20, 0
        %s271 = sadd.s32 %s270, %s268
        %s272 = smul.addr %s271, 4
        %s273 = scalar_lea.vmem %s1, %s272
        %s274 = smul.u32 64, %s21
        %p275 = scmp.lt.s32.totalorder %s20, 0
        %s276 = scalar_select %p275, %s20, 0
        %s277 = scalar_lea.vmem %s2, %s276
        %s278 = smul.u32 4, %s19
        %p279 = scmp.lt.s32.totalorder %s278, 3
        %s280 = scalar_select %p279, %s278, 3
        %p281 = scmp.lt.s32.totalorder %s20, 0
        %s282 = scalar_select %p281, %s20, 0
        %s283 = sadd.s32 %s282, %s280
        %s284 = smul.addr %s283, 8
        %s285 = scalar_lea.vmem %s3, %s284
        %s286 = smul.u32 4, %s19
        %p287 = scmp.eq.s32.totalorder %s21, 0
        // Predicated region
        $region56: #{discriminator_forward.11} parent=50 // pred_check
          %p288 = pneg %p287
        $region57: #{discriminator_forward.11} parent=50 // pred_check_branch
          %290 = sbr.rel (%p288) target = $region59
        $region58: #{discriminator_forward.11} parent=50 // pred_region
          %291 = vst [vmem:[#allocation2] sm:$0xff] 0.0
          %292 = vst [vmem:[#allocation2 + $0x8] sm:$0xff] 0.0
          %293 = vst [vmem:[#allocation2 + $0x10] sm:$0xff] 0.0
          %294 = vst [vmem:[#allocation2 + $0x18] sm:$0xff] 0.0
        $region59: #{discriminator_forward.11} parent=50 // pred_fallthru
          _
        %v295 = vld [vmem:[#allocation2] sm:$0xff]
        %v296 = vld [vmem:[#allocation2 + $0x8] sm:$0xff]
        %v297 = vld [vmem:[#allocation2 + $0x10] sm:$0xff]
        %v298 = vld [vmem:[#allocation2 + $0x18] sm:$0xff]
        %v299 = vld [vmem:[%s229] sm:$0xff]
        %v300 = vld [vmem:[%s229 + $0x8] sm:$0xff]
        %v301 = vld [vmem:[%s229 + $0x10] sm:$0xff]
        %v302 = vld [vmem:[%s229 + $0x18] sm:$0xff]
        %v303 = vld [vmem:[%s229 + $0x20] sm:$0xff]
        %v304 = vld [vmem:[%s229 + $0x28] sm:$0xff]
        %v305 = vld [vmem:[%s229 + $0x30] sm:$0xff]
        %v306 = vld [vmem:[%s229 + $0x38] sm:$0xff]
        %v307 = vld [vmem:[%s273] sm:$0xf]
        %v308 = vld [vmem:[%s273 + $0x4] sm:$0xf]
        %v309 = vld [vmem:[%s273 + $0x8] sm:$0xf]
        %v310 = vld [vmem:[%s273 + $0xc] sm:$0xf]
        %v311 = vld [vmem:[%s273 + $0x10] sm:$0xf]
        %v312 = vld [vmem:[%s273 + $0x14] sm:$0xf]
        %v313 = vld [vmem:[%s273 + $0x18] sm:$0xf]
        %v314 = vld [vmem:[%s273 + $0x1c] sm:$0xf]
        %v315 = vld [vmem:[%s273 + $0x20] sm:$0xf]
        %v316 = vld [vmem:[%s273 + $0x24] sm:$0xf]
        %v317 = vld [vmem:[%s273 + $0x28] sm:$0xf]
        %v318 = vld [vmem:[%s273 + $0x2c] sm:$0xf]
        %v319 = vld [vmem:[%s273 + $0x30] sm:$0xf]
        %v320 = vld [vmem:[%s273 + $0x34] sm:$0xf]
        %v321 = vld [vmem:[%s273 + $0x38] sm:$0xf]
        %v322 = vld [vmem:[%s273 + $0x3c] sm:$0xf]
        %v323 = vld [vmem:[%s273 + $0x40] sm:$0xf]
        %v324 = vld [vmem:[%s273 + $0x44] sm:$0xf]
        %v325 = vld [vmem:[%s273 + $0x48] sm:$0xf]
        %v326 = vld [vmem:[%s273 + $0x4c] sm:$0xf]
        %v327 = vld [vmem:[%s273 + $0x50] sm:$0xf]
        %v328 = vld [vmem:[%s273 + $0x54] sm:$0xf]
        %v329 = vld [vmem:[%s273 + $0x58] sm:$0xf]
        %v330 = vld [vmem:[%s273 + $0x5c] sm:$0xf]
        %v331 = vld [vmem:[%s273 + $0x60] sm:$0xf]
        %v332 = vld [vmem:[%s273 + $0x64] sm:$0xf]
        %v333 = vld [vmem:[%s273 + $0x68] sm:$0xf]
        %v334 = vld [vmem:[%s273 + $0x6c] sm:$0xf]
        %v335 = vld [vmem:[%s273 + $0x70] sm:$0xf]
        %v336 = vld [vmem:[%s273 + $0x74] sm:$0xf]
        %v337 = vld [vmem:[%s273 + $0x78] sm:$0xf]
        %v338 = vld [vmem:[%s273 + $0x7c] sm:$0xf]
        %v339 = vld [vmem:[%s273 + $0x80] sm:$0xf]
        %v340 = vld [vmem:[%s273 + $0x84] sm:$0xf]
        %v341 = vld [vmem:[%s273 + $0x88] sm:$0xf]
        %v342 = vld [vmem:[%s273 + $0x8c] sm:$0xf]
        %v343 = vld [vmem:[%s273 + $0x90] sm:$0xf]
        %v344 = vld [vmem:[%s273 + $0x94] sm:$0xf]
        %v345 = vld [vmem:[%s273 + $0x98] sm:$0xf]
        %v346 = vld [vmem:[%s273 + $0x9c] sm:$0xf]
        %v347 = vld [vmem:[%s273 + $0xa0] sm:$0xf]
        %v348 = vld [vmem:[%s273 + $0xa4] sm:$0xf]
        %v349 = vld [vmem:[%s273 + $0xa8] sm:$0xf]
        %v350 = vld [vmem:[%s273 + $0xac] sm:$0xf]
        %v351 = vld [vmem:[%s273 + $0xb0] sm:$0xf]
        %v352 = vld [vmem:[%s273 + $0xb4] sm:$0xf]
        %v353 = vld [vmem:[%s273 + $0xb8] sm:$0xf]
        %v354 = vld [vmem:[%s273 + $0xbc] sm:$0xf]
        %v355 = vld [vmem:[%s273 + $0xc0] sm:$0xf]
        %v356 = vld [vmem:[%s273 + $0xc4] sm:$0xf]
        %v357 = vld [vmem:[%s273 + $0xc8] sm:$0xf]
        %v358 = vld [vmem:[%s273 + $0xcc] sm:$0xf]
        %v359 = vld [vmem:[%s273 + $0xd0] sm:$0xf]
        %v360 = vld [vmem:[%s273 + $0xd4] sm:$0xf]
        %v361 = vld [vmem:[%s273 + $0xd8] sm:$0xf]
        %v362 = vld [vmem:[%s273 + $0xdc] sm:$0xf]
        %v363 = vld [vmem:[%s273 + $0xe0] sm:$0xf]
        %v364 = vld [vmem:[%s273 + $0xe4] sm:$0xf]
        %v365 = vld [vmem:[%s273 + $0xe8] sm:$0xf]
        %v366 = vld [vmem:[%s273 + $0xec] sm:$0xf]
        %v367 = vld [vmem:[%s273 + $0xf0] sm:$0xf]
        %v368 = vld [vmem:[%s273 + $0xf4] sm:$0xf]
        %v369 = vld [vmem:[%s273 + $0xf8] sm:$0xf]
        %v370 = vld [vmem:[%s273 + $0xfc] sm:$0xf]
        %v379 = vunpack.c.l.b16 %v299
        %v380 = vunpack.c.h.b16 %v299
        %v381 = vunpack.c.l.b16 %v300
        %v382 = vunpack.c.h.b16 %v300
        %v383 = vunpack.c.l.b16 %v301
        %v384 = vunpack.c.h.b16 %v301
        %v385 = vunpack.c.l.b16 %v302
        %v386 = vunpack.c.h.b16 %v302
        %v387 = vunpack.c.l.b16 %v303
        %v388 = vunpack.c.h.b16 %v303
        %v389 = vunpack.c.l.b16 %v304
        %v390 = vunpack.c.h.b16 %v304
        %v391 = vunpack.c.l.b16 %v305
        %v392 = vunpack.c.h.b16 %v305
        %v393 = vunpack.c.l.b16 %v306
        %v394 = vunpack.c.h.b16 %v306
        %v395 = vpack.c.b16 %v383, %v379
        %v396 = vpack.c.b16 %v384, %v380
        %v397 = vpack.c.b16 %v385, %v381
        %v398 = vpack.c.b16 %v386, %v382
        %v399 = vpack.c.b16 %v391, %v387
        %v400 = vpack.c.b16 %v392, %v388
        %v401 = vpack.c.b16 %v393, %v389
        %v402 = vpack.c.b16 %v394, %v390
        %v475 = vunpack.c.l.b16 %v307
        %v476 = vunpack.c.l.b16 %v308
        %v477 = vunpack.c.l.b16 %v309
        %v478 = vunpack.c.l.b16 %v310
        %v479 = vunpack.c.l.b16 %v311
        %v480 = vunpack.c.l.b16 %v312
        %v481 = vunpack.c.l.b16 %v313
        %v482 = vunpack.c.l.b16 %v314
        %v483 = vunpack.c.l.b16 %v315
        %v484 = vunpack.c.l.b16 %v316
        %v485 = vunpack.c.l.b16 %v317
        %v486 = vunpack.c.l.b16 %v318
        %v487 = vunpack.c.l.b16 %v319
        %v488 = vunpack.c.l.b16 %v320
        %v489 = vunpack.c.l.b16 %v321
        %v490 = vunpack.c.l.b16 %v322
        %v491 = vunpack.c.l.b16 %v323
        %v492 = vunpack.c.l.b16 %v324
        %v493 = vunpack.c.l.b16 %v325
        %v494 = vunpack.c.l.b16 %v326
        %v495 = vunpack.c.l.b16 %v327
        %v496 = vunpack.c.l.b16 %v328
        %v497 = vunpack.c.l.b16 %v329
        %v498 = vunpack.c.l.b16 %v330
        %v499 = vunpack.c.l.b16 %v331
        %v500 = vunpack.c.l.b16 %v332
        %v501 = vunpack.c.l.b16 %v333
        %v502 = vunpack.c.l.b16 %v334
        %v503 = vunpack.c.l.b16 %v335
        %v504 = vunpack.c.l.b16 %v336
        %v505 = vunpack.c.l.b16 %v337
        %v506 = vunpack.c.l.b16 %v338
        %v507 = vunpack.c.l.b16 %v339
        %v508 = vunpack.c.l.b16 %v340
        %v509 = vunpack.c.l.b16 %v341
        %v510 = vunpack.c.l.b16 %v342
        %v511 = vunpack.c.l.b16 %v343
        %v512 = vunpack.c.l.b16 %v344
        %v513 = vunpack.c.l.b16 %v345
        %v514 = vunpack.c.l.b16 %v346
        %v515 = vunpack.c.l.b16 %v347
        %v516 = vunpack.c.l.b16 %v348
        %v517 = vunpack.c.l.b16 %v349
        %v518 = vunpack.c.l.b16 %v350
        %v519 = vunpack.c.l.b16 %v351
        %v520 = vunpack.c.l.b16 %v352
        %v521 = vunpack.c.l.b16 %v353
        %v522 = vunpack.c.l.b16 %v354
        %v523 = vunpack.c.l.b16 %v355
        %v524 = vunpack.c.l.b16 %v356
        %v525 = vunpack.c.l.b16 %v357
        %v526 = vunpack.c.l.b16 %v358
        %v527 = vunpack.c.l.b16 %v359
        %v528 = vunpack.c.l.b16 %v360
        %v529 = vunpack.c.l.b16 %v361
        %v530 = vunpack.c.l.b16 %v362
        %v531 = vunpack.c.l.b16 %v363
        %v532 = vunpack.c.l.b16 %v364
        %v533 = vunpack.c.l.b16 %v365
        %v534 = vunpack.c.l.b16 %v366
        %v535 = vunpack.c.l.b16 %v367
        %v536 = vunpack.c.l.b16 %v368
        %v537 = vunpack.c.l.b16 %v369
        %v538 = vunpack.c.l.b16 %v370
        %v539 = vpack.c.b16 %v476, %v475
        %v540 = vpack.c.b16 %v478, %v477
        %v541 = vpack.c.b16 %v480, %v479
        %v542 = vpack.c.b16 %v482, %v481
        %v543 = vpack.c.b16 %v484, %v483
        %v544 = vpack.c.b16 %v486, %v485
        %v545 = vpack.c.b16 %v488, %v487
        %v546 = vpack.c.b16 %v490, %v489
        %v547 = vpack.c.b16 %v492, %v491
        %v548 = vpack.c.b16 %v494, %v493
        %v549 = vpack.c.b16 %v496, %v495
        %v550 = vpack.c.b16 %v498, %v497
        %v551 = vpack.c.b16 %v500, %v499
        %v552 = vpack.c.b16 %v502, %v501
        %v553 = vpack.c.b16 %v504, %v503
        %v554 = vpack.c.b16 %v506, %v505
        %v555 = vpack.c.b16 %v508, %v507
        %v556 = vpack.c.b16 %v510, %v509
        %v557 = vpack.c.b16 %v512, %v511
        %v558 = vpack.c.b16 %v514, %v513
        %v559 = vpack.c.b16 %v516, %v515
        %v560 = vpack.c.b16 %v518, %v517
        %v561 = vpack.c.b16 %v520, %v519
        %v562 = vpack.c.b16 %v522, %v521
        %v563 = vpack.c.b16 %v524, %v523
        %v564 = vpack.c.b16 %v526, %v525
        %v565 = vpack.c.b16 %v528, %v527
        %v566 = vpack.c.b16 %v530, %v529
        %v567 = vpack.c.b16 %v532, %v531
        %v568 = vpack.c.b16 %v534, %v533
        %v569 = vpack.c.b16 %v536, %v535
        %v570 = vpack.c.b16 %v538, %v537
        %603 = vmatpush.bf16.msra.mxu0 %v546
        %604 = vmatpush.bf16.msra.mxu0 %v545
        %605 = vmatpush.bf16.msra.mxu0 %v544
        %606 = vmatpush.bf16.msra.mxu0 %v543
        %607 = vmatpush.bf16.msra.mxu0 %v542
        %608 = vmatpush.bf16.msra.mxu0 %v541
        %609 = vmatpush.bf16.msra.mxu0 %v540
        %610 = vmatpush.bf16.msra.mxu0 %v539
        %611 = vmatmul.bf16.gmra.mxu0 %v395
        %v612 = vpop.f32.mrf.mxu0
        %v613 = vadd.f32 0.0, %v612
        %v614 = vpop.f32.mrf.mxu0
        %v615 = vadd.f32 0.0, %v614
        %616 = vmatmul.bf16.gmra.mxu0 %v399
        %v617 = vpop.f32.mrf.mxu0
        %v618 = vadd.f32 0.0, %v617
        %v619 = vpop.f32.mrf.mxu0
        %v620 = vadd.f32 0.0, %v619
        %621 = vdwg.mxu0
        %622 = vmatpush.bf16.msra.mxu0 %v554
        %623 = vmatpush.bf16.msra.mxu0 %v553
        %624 = vmatpush.bf16.msra.mxu0 %v552
        %625 = vmatpush.bf16.msra.mxu0 %v551
        %626 = vmatpush.bf16.msra.mxu0 %v550
        %627 = vmatpush.bf16.msra.mxu0 %v549
        %628 = vmatpush.bf16.msra.mxu0 %v548
        %629 = vmatpush.bf16.msra.mxu0 %v547
        %630 = vmatmul.bf16.gmra.mxu0 %v396
        %v631 = vpop.f32.mrf.mxu0
        %v632 = vadd.f32 %v613, %v631
        %v633 = vpop.f32.mrf.mxu0
        %v634 = vadd.f32 %v615, %v633
        %635 = vmatmul.bf16.gmra.mxu0 %v400
        %v636 = vpop.f32.mrf.mxu0
        %v637 = vadd.f32 %v618, %v636
        %v638 = vpop.f32.mrf.mxu0
        %v639 = vadd.f32 %v620, %v638
        %640 = vdwg.mxu0
        %641 = vmatpush.bf16.msra.mxu0 %v562
        %642 = vmatpush.bf16.msra.mxu0 %v561
        %643 = vmatpush.bf16.msra.mxu0 %v560
        %644 = vmatpush.bf16.msra.mxu0 %v559
        %645 = vmatpush.bf16.msra.mxu0 %v558
        %646 = vmatpush.bf16.msra.mxu0 %v557
        %647 = vmatpush.bf16.msra.mxu0 %v556
        %648 = vmatpush.bf16.msra.mxu0 %v555
        %649 = vmatmul.bf16.gmra.mxu0 %v397
        %v650 = vpop.f32.mrf.mxu0
        %v651 = vadd.f32 %v632, %v650
        %v652 = vpop.f32.mrf.mxu0
        %v653 = vadd.f32 %v634, %v652
        %654 = vmatmul.bf16.gmra.mxu0 %v401
        %v655 = vpop.f32.mrf.mxu0
        %v656 = vadd.f32 %v637, %v655
        %v657 = vpop.f32.mrf.mxu0
        %v658 = vadd.f32 %v639, %v657
        %659 = vdwg.mxu0
        %660 = vmatpush.bf16.msra.mxu0 %v570
        %661 = vmatpush.bf16.msra.mxu0 %v569
        %662 = vmatpush.bf16.msra.mxu0 %v568
        %663 = vmatpush.bf16.msra.mxu0 %v567
        %664 = vmatpush.bf16.msra.mxu0 %v566
        %665 = vmatpush.bf16.msra.mxu0 %v565
        %666 = vmatpush.bf16.msra.mxu0 %v564
        %667 = vmatpush.bf16.msra.mxu0 %v563
        %668 = vmatmul.bf16.gmra.mxu0 %v398
        %v669 = vpop.f32.mrf.mxu0
        %v670 = vadd.f32 %v651, %v669
        %v671 = vpop.f32.mrf.mxu0
        %v672 = vadd.f32 %v653, %v671
        %673 = vmatmul.bf16.gmra.mxu0 %v402
        %v674 = vpop.f32.mrf.mxu0
        %v675 = vadd.f32 %v656, %v674
        %v676 = vpop.f32.mrf.mxu0
        %v677 = vadd.f32 %v658, %v676
        %678 = vdwg.mxu0
        %v679 = vadd.f32 %v295, %v670
        %v680 = vadd.f32 %v296, %v672
        %v681 = vadd.f32 %v297, %v675
        %v682 = vadd.f32 %v298, %v677
        %683 = vst [vmem:[#allocation2] sm:$0xff] %v679
        %684 = vst [vmem:[#allocation2 + $0x8] sm:$0xff] %v680
        %685 = vst [vmem:[#allocation2 + $0x10] sm:$0xff] %v681
        %686 = vst [vmem:[#allocation2 + $0x18] sm:$0xff] %v682
        %p687 = scmp.eq.s32.totalorder %s21, 1
        // Predicated region
        $region60: #{discriminator_forward.11} parent=50 // pred_check
          %p688 = pneg %p687
        $region61: #{discriminator_forward.11} parent=50 // pred_check_branch
          %690 = sbr.rel (%p688) target = $region63
        $region62: #{discriminator_forward.11} parent=50 // pred_region
          %v691 = vld [vmem:[#allocation2] sm:$0xff]
          %v692 = vld [vmem:[#allocation2 + $0x8] sm:$0xff]
          %v693 = vld [vmem:[#allocation2 + $0x10] sm:$0xff]
          %v694 = vld [vmem:[#allocation2 + $0x18] sm:$0xff]
          %v695 = vld [vmem:[%s277] sm:$0x1]
          %v697 = vperm.slane %v695, 0
          %v699 = vadd.f32 %v691, %v697
          %v700 = vadd.f32 %v692, %v697
          %v701 = vadd.f32 %v693, %v697
          %v702 = vadd.f32 %v694, %v697
          %703 = vst [vmem:[%s285] sm:$0xff] %v699
          %704 = vst [vmem:[%s285 + $0x8] sm:$0xff] %v700
          %705 = vst [vmem:[%s285 + $0x10] sm:$0xff] %v701
          %706 = vst [vmem:[%s285 + $0x18] sm:$0xff] %v702
        $region63: #{discriminator_forward.11} parent=50 // pred_fallthru
          _
        %s707 = smul.u32 4, %s19
        %p708 = scmp.lt.s32.totalorder %s707, 3
        %s709 = scalar_select %p708, %s707, 3
        %p710 = scmp.lt.s32.totalorder %s20, 0
        %s711 = scalar_select %p710, %s20, 0
        %s712 = sadd.s32 %s711, %s709
        %s713 = smul.addr %s712, 8
        %s714 = scalar_lea.vmem %s3, %s713
        // Predicated region
        $region64: #{discriminator_forward.11} parent=50 // pred_check
          %p715 = pneg %p135
        $region65: #{discriminator_forward.11} parent=50 // pred_check_branch
          %717 = sbr.rel (%p715) target = $region67
        $region66: #{discriminator_forward.11} parent=50 // pred_region
          %s718 = smul.u32 4, %s19
        $region67: #{discriminator_forward.11} parent=50 // pred_fallthru
          _
        // Predicated region
        $region68: #{discriminator_forward.11} parent=50 // pred_check
          %p719 = pneg %p135
        $region69: #{discriminator_forward.11} parent=50 // pred_check_branch
          %721 = sbr.rel (%p719) target = $region71
        $region70: #{discriminator_forward.11} parent=50 // pred_region
          %s722 = smul.u32 4, %s19
          %p723 = scmp.lt.s32.totalorder %s722, 3
          %s724 = scalar_select %p723, %s722, 3
          %p725 = scmp.lt.s32.totalorder %s20, 0
          %s726 = scalar_select %p725, %s20, 0
          %s727 = sadd.s32 %s726, %s724
          %s728 = smul.addr %s727, 8
          %s729 = scalar_lea.vmem %s3, %s728
        $region71: #{discriminator_forward.11} parent=50 // pred_fallthru
          _
      $region51: #{discriminator_forward.11} parent=5 // pred_fallthru
        _
      %p730 = scmp.le.s32.totalorder 2, %s9
      // Predicated region
      $region72: #{discriminator_forward.11} parent=5 // pred_check
        %p731 = pneg %p730
      $region73: #{discriminator_forward.11} parent=5 // pred_check_branch
        %733 = sbr.rel (%p731) target = $region75
      $region74: #{discriminator_forward.11} parent=5 // pred_region
        %s734 = ssub.s32 %s9, 2
      $region75: #{discriminator_forward.11} parent=5 // pred_fallthru
        _
    $region6: #{discriminator_forward.11} parent=1 // loop_footer
      %s13 = sadd.s32 1, %s9
    $region7: #{discriminator_forward.11} parent=1 // loop_footer_branch
      %8 = sbr.rel target = $region3
    $region8: #{discriminator_forward.11} parent=1 // loop_exit
      _

// kernel: discriminator_forward.14
$region0: #{discriminator_forward.14}
  #allocation0 [shape = 'u32[]', space=smem, size = 0x4, offset = 0x4, fixed_abs, tag = 'smem constant byte address 0x4 - core index']
  #allocation1 [shape = 'u32[72,128]{1,0:T(1,128)}', space=vmem, size = 0x9000, scoped, tag = 'internal scratch']
  %s0 = inlined_call_operand.vmem [shape: f32[2,9,256], index: 0, kind: input, shape index: {}]
  %s1 = inlined_call_operand.vmem [shape: f32[2,9,256], index: 1, kind: output, shape index: {}]
  %s2 = sld [smem:[#allocation0]]
  $region109: #{discriminator_forward.14} parent=0
    _
  %s4 = ssub.s32 1, %s2
  %s5 = scalar_select 0, %s4, %s2
  $region1: #{discriminator_forward.14} parent=0
    #allocation2 [shape = 'u8[16384]{0}', space=vmem, size = 0x4000, scoped, tag = 'input window, operand 0']
    #allocation3 [shape = 'u8[16384]{0}', space=vmem, size = 0x4000, scoped, tag = 'output window, operand 0']
    loop: start=0, step=1, limit=6
    $region2: #{discriminator_forward.14} parent=1 // loop_pre_header
      _
    $region3: #{discriminator_forward.14} parent=1 // loop_header
      %s7 = sphi 0, %s11
      %p8 = scmp.ge.s32.totalorder %s7, 6
      %s14 = sphi 0, %s26
      %s15 = sphi 0, %s22
      %s16 = sphi 0, %s14
      %s17 = sphi 0, %s15
      %s18 = sphi 0, %s16
      %s19 = sphi 0, %s17
      %s31 = sphi 0, %s33
      %s34 = sphi 0, %s31
      %s35 = sphi 0, %s34
      %s51 = sphi 0, %s35
      %s59 = sphi 0, %s61
      %s62 = sphi 0, %s59
      %s63 = sphi 0, %s62
      %s79 = sphi 0, %s63
    $region4: #{discriminator_forward.14} parent=1 // loop_header_branch
      %10 = sbr.rel (%p8) target = $region8
    $region5: #{discriminator_forward.14} parent=1 // loop_body
      %s12 = ssub.s32 %s7, 1
      %s13 = ssub.s32 %s7, 2
      %s20 = sadd.s32 1, %s15
      %p21 = scmp.ge.s32.totalorder %s20, 2
      %s22 = scalar_select %p21, 0, %s20
      %s23 = sadd.s32 1, %s14
      %s24 = scalar_select %p21, %s23, %s14
      %p25 = scmp.ge.s32.totalorder %s24, 2
      %s26 = scalar_select %p25, 0, %s24
      %s27 = ssub.s32 %s14, %s26
      %s28 = ssub.s32 %s15, %s22
      %s29 = sor.u32 %s27, %s28
      %p30 = scmp.eq.s32.totalorder %s29, 0
      %s32 = sadd.s32 %s31, 1
      %s33 = scalar_select %p30, %s31, %s32
      %p36 = pneg %p30
      %p37 = scmp.eq.s32.totalorder %s7, 3
      %p38 = por %p36, %p37
      %p39 = scmp.ne.s32.totalorder %s31, %s34
      %p40 = scmp.eq.s32.totalorder %s7, 0
      %p41 = por %p39, %p40
      %p42 = scmp.ne.s32.totalorder %s31, %s34
      %p43 = scmp.eq.s32.totalorder %s12, 3
      %p44 = por %p42, %p43
      %p45 = scmp.ne.s32.totalorder %s34, %s35
      %p46 = scmp.eq.s32.totalorder %s12, 0
      %p47 = por %p45, %p46
      %p48 = scmp.ne.s32.totalorder %s34, %s35
      %p49 = scmp.eq.s32.totalorder %s13, 3
      %p50 = por %p48, %p49
      %p52 = scmp.ne.s32.totalorder %s35, %s51
      %p53 = scmp.eq.s32.totalorder %s13, 0
      %p54 = por %p52, %p53
      %s55 = ssub.s32 %s14, %s26
      %s56 = ssub.s32 %s15, %s22
      %s57 = sor.u32 %s55, %s56
      %p58 = scmp.eq.s32.totalorder %s57, 0
      %s60 = sadd.s32 %s59, 1
      %s61 = scalar_select %p58, %s59, %s60
      %p64 = pneg %p58
      %p65 = scmp.eq.s32.totalorder %s7, 3
      %p66 = por %p64, %p65
      %p67 = scmp.ne.s32.totalorder %s59, %s62
      %p68 = scmp.eq.s32.totalorder %s7, 0
      %p69 = por %p67, %p68
      %p70 = scmp.ne.s32.totalorder %s59, %s62
      %p71 = scmp.eq.s32.totalorder %s12, 3
      %p72 = por %p70, %p71
      %p73 = scmp.ne.s32.totalorder %s62, %s63
      %p74 = scmp.eq.s32.totalorder %s12, 0
      %p75 = por %p73, %p74
      %p76 = scmp.ne.s32.totalorder %s62, %s63
      %p77 = scmp.eq.s32.totalorder %s13, 3
      %p78 = por %p76, %p77
      %p80 = scmp.ne.s32.totalorder %s63, %s79
      %p81 = scmp.eq.s32.totalorder %s13, 0
      %p82 = por %p80, %p81
      %p83 = scmp.le.s32.totalorder 1, %s7
      %p84 = scmp.lt.s32.totalorder %s7, 5
      %p85 = pnand %p83, %p84
      %p86 = pneg %p85
      // Predicated region
      $region9: #{discriminator_forward.14} parent=5 // pred_check
        _
      $region10: #{discriminator_forward.14} parent=5 // pred_check_branch
        %88 = sbr.rel (%p85) target = $region12
      $region11: #{discriminator_forward.14} parent=5 // pred_region
        %s89 = ssub.s32 %s7, 1
      $region12: #{discriminator_forward.14} parent=5 // pred_fallthru
        _
      %p90 = scmp.lt.s32.totalorder %s7, 4
      // Predicated region
      $region13: #{discriminator_forward.14} parent=5 // pred_check
        %p91 = pneg %p90
      $region14: #{discriminator_forward.14} parent=5 // pred_check_branch
        %93 = sbr.rel (%p91) target = $region16
      $region15: #{discriminator_forward.14} parent=5 // pred_region
        // Predicated region
        $region17: #{discriminator_forward.14} parent=15 // pred_check
          %p94 = pneg %p41
        $region18: #{discriminator_forward.14} parent=15 // pred_check_branch
          %96 = sbr.rel (%p94) target = $region20
        $region19: #{discriminator_forward.14} parent=15 // pred_region
          %s97 = sand.u32 %s31, 1
          %s98 = sand.u32 %s31, 1
          %s99 = smul.addr %s98, 16
          %s100 = scalar_lea.vmem [#allocation2], %s99
          %s101 = smul.addr %s14, 4
          %s102 = sadd.s32 %s15, %s101
          %s103 = smul.addr %s102, 8
          %s104 = scalar_lea.vmem %s0, %s103
          // Predicated region
          $region21: #{discriminator_forward.14} parent=19 // pred_check
            _
          $region22: #{discriminator_forward.14} parent=19 // pred_check_branch
            %106 = sbr.rel (0) target = $region24
          $region23: #{discriminator_forward.14} parent=19 // pred_region
            // Predicated region
            $region25: #{discriminator_forward.14} parent=23 // pred_check
              _
            $region26: #{discriminator_forward.14} parent=23 // pred_check_branch
              %108 = sbr.rel (0) target = $region28
            $region27: #{discriminator_forward.14} parent=23 // pred_region
              // Predicated region
              $region40: #{discriminator_forward.14} parent=27 // pred_check
                _
              $region41: #{discriminator_forward.14} parent=27 // pred_check_branch
                %126 = sbr.rel (0) target = $region43
              $region42: #{discriminator_forward.14} parent=27 // pred_region
                loop: start=0, step=1, limit=1
                $region44: #{discriminator_forward.14} parent=42 // loop_pre_header
                  _
                $region45: #{discriminator_forward.14} parent=42 // loop_header
                  %s128 = sphi 0, %s132
                  %p129 = scmp.ge.s32.totalorder %s128, 1
                  %s133 = sphi %s104, %s104
                  %s134 = sphi %s100, %s100
                $region46: #{discriminator_forward.14} parent=42 // loop_header_branch
                  %131 = sbr.rel (%p129) target = $region50
                $region47: #{discriminator_forward.14} parent=42 // loop_body
                  %v135 = vld [vmem:[%s133] sm:$0xff]
                  %136 = vst [vmem:[%s134] sm:$0xff] %v135
                  %v137 = vld [vmem:[%s133 + $0x10] sm:$0xff]
                  %138 = vst [vmem:[%s134 + $0x8] sm:$0xff] %v137
                $region48: #{discriminator_forward.14} parent=42 // loop_footer
                  %s132 = sadd.s32 1, %s128
                $region49: #{discriminator_forward.14} parent=42 // loop_footer_branch
                  %127 = sbr.rel target = $region45
                $region50: #{discriminator_forward.14} parent=42 // loop_exit
                  _
              $region43: #{discriminator_forward.14} parent=27 // pred_fallthru
                _
              // Predicated region
              $region51: #{discriminator_forward.14} parent=27 // pred_check
                _
              $region52: #{discriminator_forward.14} parent=27 // pred_check_branch
                %140 = sbr.rel target = $region54
              $region53: #{discriminator_forward.14} parent=27 // pred_region
                _
              $region54: #{discriminator_forward.14} parent=27 // pred_fallthru
                _
            $region28: #{discriminator_forward.14} parent=23 // pred_fallthru
              _
            // Predicated region
            $region29: #{discriminator_forward.14} parent=23 // pred_check
              _
            $region30: #{discriminator_forward.14} parent=23 // pred_check_branch
              %110 = sbr.rel target = $region32
            $region31: #{discriminator_forward.14} parent=23 // pred_region
              %s112 = ssub.s32 256, 1
              loop: start=0, step=1, limit=1
              $region33: #{discriminator_forward.14} parent=31 // loop_pre_header
                _
              $region34: #{discriminator_forward.14} parent=31 // loop_header
                %s114 = sphi 0, %s118
                %p115 = scmp.ge.s32.totalorder %s114, 1
                %s119 = sphi %s104, %s104
                %s120 = sphi %s100, %s100
              $region35: #{discriminator_forward.14} parent=31 // loop_header_branch
                %117 = sbr.rel (%p115) target = $region39
              $region36: #{discriminator_forward.14} parent=31 // loop_body
                %v121 = vld [vmem:[%s119] sm:%s112]
                %122 = vst [vmem:[%s120] sm:%s112] %v121
                %v123 = vld [vmem:[%s119 + $0x10] sm:%s112]
                %124 = vst [vmem:[%s120 + $0x8] sm:%s112] %v123
              $region37: #{discriminator_forward.14} parent=31 // loop_footer
                %s118 = sadd.s32 1, %s114
              $region38: #{discriminator_forward.14} parent=31 // loop_footer_branch
                %113 = sbr.rel target = $region34
              $region39: #{discriminator_forward.14} parent=31 // loop_exit
                _
            $region32: #{discriminator_forward.14} parent=23 // pred_fallthru
              _
          $region24: #{discriminator_forward.14} parent=19 // pred_fallthru
            _
          %141 = vnop
        $region20: #{discriminator_forward.14} parent=15 // pred_fallthru
          _
      $region16: #{discriminator_forward.14} parent=5 // pred_fallthru
        _
      %p142 = scmp.le.s32.totalorder 1, %s7
      %p143 = scmp.lt.s32.totalorder %s7, 5
      %p144 = pnand %p142, %p143
      %p145 = pneg %p144
      // Predicated region
      $region55: #{discriminator_forward.14} parent=5 // pred_check
        _
      $region56: #{discriminator_forward.14} parent=5 // pred_check_branch
        %147 = sbr.rel (%p144) target = $region58
      $region57: #{discriminator_forward.14} parent=5 // pred_region
        %s148 = ssub.s32 %s7, 1
        %s149 = sand.u32 %s34, 1
        %s150 = sand.u32 %s34, 1
        %s151 = smul.addr %s150, 16
        %s152 = scalar_lea.vmem [#allocation2], %s151
        // Predicated region
        $region59: #{discriminator_forward.14} parent=57 // pred_check
          %p153 = pneg %p47
        $region60: #{discriminator_forward.14} parent=57 // pred_check_branch
          %155 = sbr.rel (%p153) target = $region62
        $region61: #{discriminator_forward.14} parent=57 // pred_region
          _
        $region62: #{discriminator_forward.14} parent=57 // pred_fallthru
          _
        %s156 = sand.u32 %s34, 1
        %s157 = sand.u32 %s34, 1
        %s158 = smul.addr %s157, 16
        %s159 = scalar_lea.vmem [#allocation2], %s158
        %p160 = pneg %p47
        %p161 = pneg %p44
        %p162 = pneg %p75
        %p163 = pneg %p72
        %s164 = sand.u32 %s62, 1
        %s165 = sand.u32 %s62, 1
        %s166 = smul.addr %s165, 16
        %s167 = scalar_lea.vmem [#allocation3], %s166
        %v168 = vld [vmem:[%s152] sm:$0xff]
        %v169 = vld [vmem:[%s152 + $0x8] sm:$0x1]
        %vm170 = vcmask 1040384
        %v171 = vsel %vm170, %v169, 0.0
        %v172 = vadd.f32 %v168, %v171
        %v173 = vrot.slane %v172, 4
        %v174 = vadd.f32 %v172, %v173
        %v175 = vrot.slane %v174, 2
        %v176 = vadd.f32 %v174, %v175
        %v177 = vrot.slane %v176, 1
        %v178 = vadd.f32 %v176, %v177
        %v179 = vmul.f32 %v168, %v168
        %v180 = vmul.f32 %v169, %v169
        %v181 = vsel %vm170, %v180, 0.0
        %v182 = vadd.f32 %v179, %v181
        %v183 = vrot.slane %v182, 4
        %v184 = vadd.f32 %v182, %v183
        %v185 = vrot.slane %v184, 2
        %v186 = vadd.f32 %v184, %v185
        %v187 = vrot.slane %v186, 1
        %v188 = vadd.f32 %v186, %v187
        %v189 = vmul.f32 %v178, 0.11111111
        %v190 = vmul.f32 %v188, 0.11111111
        %v191 = vmul.f32 %v189, %v189
        %v192 = vsub.f32 %v190, %v191
        %v193 = vsub.f32 %v168, %v189
        %v194 = vsub.f32 %v169, %v189
        %v195 = vadd.f32 %v192, 1e-05
        %v196 = vrsqrt.pop %v195
        %v197 = vmul.f32 %v196, %v195
        %v198 = vmul.f32 %v197, %v196
        %v199 = vmul.f32 0.5, %v198
        %v200 = vsub.f32 1.5, %v199
        %v201 = vmul.f32 %v196, %v200
        %vm202 = vweird.f32 %v195
        %vm203 = vweird.f32 %v196
        %vm204 = vmor %vm202, %vm203
        %v205 = vsel %vm204, %v196, %v201
        %v206 = vmul.f32 %v193, %v205
        %v207 = vmul.f32 %v194, %v205
        %vm208 = vcmp.ge.f32.partialorder %v206, 0.0
        %vm209 = vcmp.ge.f32.partialorder %v207, 0.0
        %v210 = vmul.f32 %v206, 0.01
        %v211 = vmul.f32 %v207, 0.01
        %v212 = vsel %vm208, %v206, %v210
        %v213 = vsel %vm209, %v207, %v211
        %214 = vst [vmem:[%s167] sm:$0xff] %v212
        %215 = vst [vmem:[%s167 + $0x8] sm:$0x1] %v213
        %s216 = sand.u32 %s62, 1
        %s217 = sand.u32 %s62, 1
        %s218 = smul.addr %s217, 16
        %s219 = scalar_lea.vmem [#allocation3], %s218
        // Predicated region
        $region63: #{discriminator_forward.14} parent=57 // pred_check
          %p220 = pneg %p72
        $region64: #{discriminator_forward.14} parent=57 // pred_check_branch
          %222 = sbr.rel (%p220) target = $region66
        $region65: #{discriminator_forward.14} parent=57 // pred_region
          %s223 = smul.addr %s16, 4
          %s224 = sadd.s32 %s17, %s223
          %s225 = smul.addr %s224, 8
          %s226 = scalar_lea.vmem %s1, %s225
          // Predicated region
          $region67: #{discriminator_forward.14} parent=65 // pred_check
            _
          $region68: #{discriminator_forward.14} parent=65 // pred_check_branch
            %228 = sbr.rel (0) target = $region70
          $region69: #{discriminator_forward.14} parent=65 // pred_region
            // Predicated region
            $region71: #{discriminator_forward.14} parent=69 // pred_check
              _
            $region72: #{discriminator_forward.14} parent=69 // pred_check_branch
              %230 = sbr.rel (0) target = $region74
            $region73: #{discriminator_forward.14} parent=69 // pred_region
              // Predicated region
              $region86: #{discriminator_forward.14} parent=73 // pred_check
                _
              $region87: #{discriminator_forward.14} parent=73 // pred_check_branch
                %248 = sbr.rel (0) target = $region89
              $region88: #{discriminator_forward.14} parent=73 // pred_region
                loop: start=0, step=1, limit=1
                $region90: #{discriminator_forward.14} parent=88 // loop_pre_header
                  _
                $region91: #{discriminator_forward.14} parent=88 // loop_header
                  %s250 = sphi 0, %s254
                  %p251 = scmp.ge.s32.totalorder %s250, 1
                  %s255 = sphi %s219, %s219
                  %s256 = sphi %s226, %s226
                $region92: #{discriminator_forward.14} parent=88 // loop_header_branch
                  %253 = sbr.rel (%p251) target = $region96
                $region93: #{discriminator_forward.14} parent=88 // loop_body
                  %v257 = vld [vmem:[%s255] sm:$0xff]
                  %258 = vst [vmem:[%s256] sm:$0xff] %v257
                  %v259 = vld [vmem:[%s255 + $0x8] sm:$0xff]
                  %260 = vst [vmem:[%s256 + $0x10] sm:$0xff] %v259
                $region94: #{discriminator_forward.14} parent=88 // loop_footer
                  %s254 = sadd.s32 1, %s250
                $region95: #{discriminator_forward.14} parent=88 // loop_footer_branch
                  %249 = sbr.rel target = $region91
                $region96: #{discriminator_forward.14} parent=88 // loop_exit
                  _
              $region89: #{discriminator_forward.14} parent=73 // pred_fallthru
                _
              // Predicated region
              $region97: #{discriminator_forward.14} parent=73 // pred_check
                _
              $region98: #{discriminator_forward.14} parent=73 // pred_check_branch
                %262 = sbr.rel target = $region100
              $region99: #{discriminator_forward.14} parent=73 // pred_region
                _
              $region100: #{discriminator_forward.14} parent=73 // pred_fallthru
                _
            $region74: #{discriminator_forward.14} parent=69 // pred_fallthru
              _
            // Predicated region
            $region75: #{discriminator_forward.14} parent=69 // pred_check
              _
            $region76: #{discriminator_forward.14} parent=69 // pred_check_branch
              %232 = sbr.rel target = $region78
            $region77: #{discriminator_forward.14} parent=69 // pred_region
              %s234 = ssub.s32 256, 1
              loop: start=0, step=1, limit=1
              $region79: #{discriminator_forward.14} parent=77 // loop_pre_header
                _
              $region80: #{discriminator_forward.14} parent=77 // loop_header
                %s236 = sphi 0, %s240
                %p237 = scmp.ge.s32.totalorder %s236, 1
                %s241 = sphi %s219, %s219
                %s242 = sphi %s226, %s226
              $region81: #{discriminator_forward.14} parent=77 // loop_header_branch
                %239 = sbr.rel (%p237) target = $region85
              $region82: #{discriminator_forward.14} parent=77 // loop_body
                %v243 = vld [vmem:[%s241] sm:%s234]
                %244 = vst [vmem:[%s242] sm:%s234] %v243
                %v245 = vld [vmem:[%s241 + $0x8] sm:%s234]
                %246 = vst [vmem:[%s242 + $0x10] sm:%s234] %v245
              $region83: #{discriminator_forward.14} parent=77 // loop_footer
                %s240 = sadd.s32 1, %s236
              $region84: #{discriminator_forward.14} parent=77 // loop_footer_branch
                %235 = sbr.rel target = $region80
              $region85: #{discriminator_forward.14} parent=77 // loop_exit
                _
            $region78: #{discriminator_forward.14} parent=69 // pred_fallthru
              _
          $region70: #{discriminator_forward.14} parent=65 // pred_fallthru
            _
          %263 = vnop
        $region66: #{discriminator_forward.14} parent=57 // pred_fallthru
          _
      $region58: #{discriminator_forward.14} parent=5 // pred_fallthru
        _
      %p264 = scmp.le.s32.totalorder 2, %s7
      // Predicated region
      $region101: #{discriminator_forward.14} parent=5 // pred_check
        %p265 = pneg %p264
      $region102: #{discriminator_forward.14} parent=5 // pred_check_branch
        %267 = sbr.rel (%p265) target = $region104
      $region103: #{discriminator_forward.14} parent=5 // pred_region
        %s268 = ssub.s32 %s7, 2
        // Predicated region
        $region105: #{discriminator_forward.14} parent=103 // pred_check
          %p269 = pneg %p78
        $region106: #{discriminator_forward.14} parent=103 // pred_check_branch
          %271 = sbr.rel (%p269) target = $region108
        $region107: #{discriminator_forward.14} parent=103 // pred_region
          %s272 = sand.u32 %s63, 1
          %s273 = sand.u32 %s63, 1
          %s274 = smul.addr %s273, 16
          %s275 = scalar_lea.vmem [#allocation3], %s274
        $region108: #{discriminator_forward.14} parent=103 // pred_fallthru
          _
      $region104: #{discriminator_forward.14} parent=5 // pred_fallthru
        _
    $region6: #{discriminator_forward.14} parent=1 // loop_footer
      %s11 = sadd.s32 1, %s7
    $region7: #{discriminator_forward.14} parent=1 // loop_footer_branch
      %6 = sbr.rel target = $region3
    $region8: #{discriminator_forward.14} parent=1 // loop_exit
      _

// kernel: discriminator_forward.13
$region0: #{discriminator_forward.13}
  #allocation0 [shape = 'u32[]', space=smem, size = 0x4, offset = 0x4, fixed_abs, tag = 'smem constant byte address 0x4 - core index']
  #allocation1 [shape = 'u32[72,128]{1,0:T(1,128)}', space=vmem, size = 0x9000, scoped, tag = 'internal scratch']
  #allocation2 [shape = 'f32[24,256]{1,0:T(8,128)}', space=vmem, size = 0x6000, scoped, tag = 'scratch operand']
  %s0 = inlined_call_operand.vmem [shape: bf16[24,2048], index: 0, kind: input, shape index: {}]
  %s1 = inlined_call_operand.vmem [shape: bf16[2048,256], index: 1, kind: input, shape index: {}]
  %s2 = inlined_call_operand.vmem [shape: f32[1,256], index: 2, kind: input, shape index: {}]
  %s3 = inlined_call_operand.vmem [shape: f32[24,256], index: 3, kind: output, shape index: {}]
  %s4 = sld [smem:[#allocation0]]
  $region76: #{discriminator_forward.13} parent=0
    _
  %s6 = ssub.s32 1, %s4
  %s7 = scalar_select 0, %s6, %s4
  $region1: #{discriminator_forward.13} parent=0
    #allocation3 [shape = 'u8[49152]{0}', space=vmem, size = 0xc000, scoped, tag = 'input window, operand 0']
    loop: start=0, step=1, limit=6
    $region2: #{discriminator_forward.13} parent=1 // loop_pre_header
      _
    $region3: #{discriminator_forward.13} parent=1 // loop_header
      %s9 = sphi 0, %s13
      %p10 = scmp.ge.s32.totalorder %s9, 6
      %s16 = sphi 0, %s35
      %s17 = sphi 0, %s31
      %s18 = sphi 0, %s27
      %s19 = sphi 0, %s16
      %s20 = sphi 0, %s17
      %s21 = sphi 0, %s18
      %s22 = sphi 0, %s19
      %s23 = sphi 0, %s20
      %s24 = sphi 0, %s21
      %s40 = sphi 0, %s42
      %s43 = sphi 0, %s40
      %s44 = sphi 0, %s43
      %s60 = sphi 0, %s44
      %s68 = sphi 0, %s70
      %s71 = sphi 0, %s68
      %s72 = sphi 0, %s71
      %s88 = sphi 0, %s72
      %s94 = sphi 0, %s96
      %s97 = sphi 0, %s94
      %s98 = sphi 0, %s97
      %s114 = sphi 0, %s98
      %s122 = sphi 0, %s124
      %s125 = sphi 0, %s122
      %s126 = sphi 0, %s125
      %s142 = sphi 0, %s126
    $region4: #{discriminator_forward.13} parent=1 // loop_header_branch
      %12 = sbr.rel (%p10) target = $region8
    $region5: #{discriminator_forward.13} parent=1 // loop_body
      %s14 = ssub.s32 %s9, 1
      %s15 = ssub.s32 %s9, 2
      %s25 = sadd.s32 1, %s18
      %p26 = scmp.ge.s32.totalorder %s25, 4
      %s27 = scalar_select %p26, 0, %s25
      %s28 = sadd.s32 1, %s17
      %s29 = scalar_select %p26, %s28, %s17
      %p30 = scmp.ge.s32.totalorder %s29, 1
      %s31 = scalar_select %p30, 0, %s29
      %s32 = sadd.s32 1, %s16
      %s33 = scalar_select %p30, %s32, %s16
      %p34 = scmp.ge.s32.totalorder %s33, 1
      %s35 = scalar_select %p34, 0, %s33
      %s36 = ssub.s32 %s16, %s35
      %s37 = ssub.s32 %s18, %s27
      %s38 = sor.u32 %s36, %s37
      %p39 = scmp.eq.s32.totalorder %s38, 0
      %s41 = sadd.s32 %s40, 1
      %s42 = scalar_select %p39, %s40, %s41
      %p45 = pneg %p39
      %p46 = scmp.eq.s32.totalorder %s9, 3
      %p47 = por %p45, %p46
      %p48 = scmp.ne.s32.totalorder %s40, %s43
      %p49 = scmp.eq.s32.totalorder %s9, 0
      %p50 = por %p48, %p49
      %p51 = scmp.ne.s32.totalorder %s40, %s43
      %p52 = scmp.eq.s32.totalorder %s14, 3
      %p53 = por %p51, %p52
      %p54 = scmp.ne.s32.totalorder %s43, %s44
      %p55 = scmp.eq.s32.totalorder %s14, 0
      %p56 = por %p54, %p55
      %p57 = scmp.ne.s32.totalorder %s43, %s44
      %p58 = scmp.eq.s32.totalorder %s15, 3
      %p59 = por %p57, %p58
      %p61 = scmp.ne.s32.totalorder %s44, %s60
      %p62 = scmp.eq.s32.totalorder %s15, 0
      %p63 = por %p61, %p62
      %s64 = ssub.s32 %s18, %s27
      %s65 = ssub.s32 %s17, %s31
      %s66 = sor.u32 %s64, %s65
      %p67 = scmp.eq.s32.totalorder %s66, 0
      %s69 = sadd.s32 %s68, 1
      %s70 = scalar_select %p67, %s68, %s69
      %p73 = pneg %p67
      %p74 = scmp.eq.s32.totalorder %s9, 3
      %p75 = por %p73, %p74
      %p76 = scmp.ne.s32.totalorder %s68, %s71
      %p77 = scmp.eq.s32.totalorder %s9, 0
      %p78 = por %p76, %p77
      %p79 = scmp.ne.s32.totalorder %s68, %s71
      %p80 = scmp.eq.s32.totalorder %s14, 3
      %p81 = por %p79, %p80
      %p82 = scmp.ne.s32.totalorder %s71, %s72
      %p83 = scmp.eq.s32.totalorder %s14, 0
      %p84 = por %p82, %p83
      %p85 = scmp.ne.s32.totalorder %s71, %s72
      %p86 = scmp.eq.s32.totalorder %s15, 3
      %p87 = por %p85, %p86
      %p89 = scmp.ne.s32.totalorder %s72, %s88
      %p90 = scmp.eq.s32.totalorder %s15, 0
      %p91 = por %p89, %p90
      %s92 = ssub.s32 %s17, %s31
      %p93 = scmp.eq.s32.totalorder %s92, 0
      %s95 = sadd.s32 %s94, 1
      %s96 = scalar_select %p93, %s94, %s95
      %p99 = pneg %p93
      %p100 = scmp.eq.s32.totalorder %s9, 3
      %p101 = por %p99, %p100
      %p102 = scmp.ne.s32.totalorder %s94, %s97
      %p103 = scmp.eq.s32.totalorder %s9, 0
      %p104 = por %p102, %p103
      %p105 = scmp.ne.s32.totalorder %s94, %s97
      %p106 = scmp.eq.s32.totalorder %s14, 3
      %p107 = por %p105, %p106
      %p108 = scmp.ne.s32.totalorder %s97, %s98
      %p109 = scmp.eq.s32.totalorder %s14, 0
      %p110 = por %p108, %p109
      %p111 = scmp.ne.s32.totalorder %s97, %s98
      %p112 = scmp.eq.s32.totalorder %s15, 3
      %p113 = por %p111, %p112
      %p115 = scmp.ne.s32.totalorder %s98, %s114
      %p116 = scmp.eq.s32.totalorder %s15, 0
      %p117 = por %p115, %p116
      %s118 = ssub.s32 %s16, %s35
      %s119 = ssub.s32 %s17, %s31
      %s120 = sor.u32 %s118, %s119
      %p121 = scmp.eq.s32.totalorder %s120, 0
      %s123 = sadd.s32 %s122, 1
      %s124 = scalar_select %p121, %s122, %s123
      %p127 = pneg %p121
      %p128 = scmp.eq.s32.totalorder %s9, 3
      %p129 = por %p127, %p128
      %p130 = scmp.ne.s32.totalorder %s122, %s125
      %p131 = scmp.eq.s32.totalorder %s9, 0
      %p132 = por %p130, %p131
      %p133 = scmp.ne.s32.totalorder %s122, %s125
      %p134 = scmp.eq.s32.totalorder %s14, 3
      %p135 = por %p133, %p134
      %p136 = scmp.ne.s32.totalorder %s125, %s126
      %p137 = scmp.eq.s32.totalorder %s14, 0
      %p138 = por %p136, %p137
      %p139 = scmp.ne.s32.totalorder %s125, %s126
      %p140 = scmp.eq.s32.totalorder %s15, 3
      %p141 = por %p139, %p140
      %p143 = scmp.ne.s32.totalorder %s126, %s142
      %p144 = scmp.eq.s32.totalorder %s15, 0
      %p145 = por %p143, %p144
      %p146 = scmp.le.s32.totalorder 1, %s9
      %p147 = scmp.lt.s32.totalorder %s9, 5
      %p148 = pnand %p146, %p147
      %p149 = pneg %p148
      // Predicated region
      $region9: #{discriminator_forward.13} parent=5 // pred_check
        _
      $region10: #{discriminator_forward.13} parent=5 // pred_check_branch
        %151 = sbr.rel (%p148) target = $region12
      $region11: #{discriminator_forward.13} parent=5 // pred_region
        %s152 = ssub.s32 %s9, 1
        // Predicated region
        $region13: #{discriminator_forward.13} parent=11 // pred_check
          %p153 = pneg %p110
        $region14: #{discriminator_forward.13} parent=11 // pred_check_branch
          %155 = sbr.rel (%p153) target = $region16
        $region15: #{discriminator_forward.13} parent=11 // pred_region
          %s156 = smul.u32 2, %s20
          %p157 = scmp.lt.s32.totalorder %s156, 1
          %s158 = scalar_select %p157, %s156, 1
          %s159 = scalar_lea.vmem %s2, %s158
          %s160 = smul.u32 2, %s20
        $region16: #{discriminator_forward.13} parent=11 // pred_fallthru
          _
      $region12: #{discriminator_forward.13} parent=5 // pred_fallthru
        _
      %p161 = scmp.lt.s32.totalorder %s9, 4
      // Predicated region
      $region17: #{discriminator_forward.13} parent=5 // pred_check
        %p162 = pneg %p161
      $region18: #{discriminator_forward.13} parent=5 // pred_check_branch
        %164 = sbr.rel (%p162) target = $region20
      $region19: #{discriminator_forward.13} parent=5 // pred_region
        // Predicated region
        $region21: #{discriminator_forward.13} parent=19 // pred_check
          %p165 = pneg %p50
        $region22: #{discriminator_forward.13} parent=19 // pred_check_branch
          %167 = sbr.rel (%p165) target = $region24
        $region23: #{discriminator_forward.13} parent=19 // pred_region
          %s168 = sand.u32 %s40, 1
          %s169 = sand.u32 %s40, 1
          %s170 = smul.addr %s169, 48
          %s171 = scalar_lea.vmem [#allocation3], %s170
          %s172 = smul.u32 3, %s16
          %s173 = smul.u32 4, %s18
          %s174 = smul.addr %s172, 16
          %s175 = sadd.s32 %s173, %s174
          %s176 = smul.addr %s175, 4
          %s177 = scalar_lea.vmem %s0, %s176
          // Predicated region
          $region25: #{discriminator_forward.13} parent=23 // pred_check
            _
          $region26: #{discriminator_forward.13} parent=23 // pred_check_branch
            %179 = sbr.rel (0) target = $region28
          $region27: #{discriminator_forward.13} parent=23 // pred_region
            // Predicated region
            $region29: #{discriminator_forward.13} parent=27 // pred_check
              _
            $region30: #{discriminator_forward.13} parent=27 // pred_check_branch
              %181 = sbr.rel (0) target = $region32
            $region31: #{discriminator_forward.13} parent=27 // pred_region
              loop: start=0, step=1, limit=1
              $region33: #{discriminator_forward.13} parent=31 // loop_pre_header
                _
              $region34: #{discriminator_forward.13} parent=31 // loop_header
                %s183 = sphi 0, %s187
                %p184 = scmp.ge.s32.totalorder %s183, 1
                %s188 = sphi %s177, %s177
                %s189 = sphi %s171, %s171
              $region35: #{discriminator_forward.13} parent=31 // loop_header_branch
                %186 = sbr.rel (%p184) target = $region39
              $region36: #{discriminator_forward.13} parent=31 // loop_body
                %v190 = vld [vmem:[%s188] sm:$0xff]
                %191 = vst [vmem:[%s189] sm:$0xff] %v190
                %v192 = vld [vmem:[%s188 + $0x8] sm:$0xff]
                %193 = vst [vmem:[%s189 + $0x8] sm:$0xff] %v192
                %v194 = vld [vmem:[%s188 + $0x40] sm:$0xff]
                %195 = vst [vmem:[%s189 + $0x10] sm:$0xff] %v194
                %v196 = vld [vmem:[%s188 + $0x48] sm:$0xff]
                %197 = vst [vmem:[%s189 + $0x18] sm:$0xff] %v196
                %v198 = vld [vmem:[%s188 + $0x80] sm:$0xff]
                %199 = vst [vmem:[%s189 + $0x20] sm:$0xff] %v198
                %v200 = vld [vmem:[%s188 + $0x88] sm:$0xff]
                %201 = vst [vmem:[%s189 + $0x28] sm:$0xff] %v200
              $region37: #{discriminator_forward.13} parent=31 // loop_footer
                %s187 = sadd.s32 1, %s183
              $region38: #{discriminator_forward.13} parent=31 // loop_footer_branch
                %182 = sbr.rel target = $region34
              $region39: #{discriminator_forward.13} parent=31 // loop_exit
                _
            $region32: #{discriminator_forward.13} parent=27 // pred_fallthru
              _
            // Predicated region
            $region40: #{discriminator_forward.13} parent=27 // pred_check
              _
            $region41: #{discriminator_forward.13} parent=27 // pred_check_branch
              %203 = sbr.rel target = $region43
            $region42: #{discriminator_forward.13} parent=27 // pred_region
              _
            $region43: #{discriminator_forward.13} parent=27 // pred_fallthru
              _
          $region28: #{discriminator_forward.13} parent=23 // pred_fallthru
            _
          %204 = vnop
        $region24: #{discriminator_forward.13} parent=19 // pred_fallthru
          _
        // Predicated region
        $region44: #{discriminator_forward.13} parent=19 // pred_check
          %p205 = pneg %p78
        $region45: #{discriminator_forward.13} parent=19 // pred_check_branch
          %207 = sbr.rel (%p205) target = $region47
        $region46: #{discriminator_forward.13} parent=19 // pred_region
          %s208 = smul.u32 64, %s18
          %s209 = smul.u32 2, %s17
          %p210 = scmp.lt.s32.totalorder %s208, 255
          %s211 = scalar_select %p210, %s208, 255
          %p212 = scmp.lt.s32.totalorder %s209, 1
          %s213 = scalar_select %p212, %s209, 1
          %s214 = smul.addr %s211, 2
          %s215 = sadd.s32 %s213, %s214
          %s216 = smul.addr %s215, 4
          %s217 = scalar_lea.vmem %s1, %s216
          %s218 = smul.u32 64, %s18
          %s219 = smul.u32 2, %s17
        $region47: #{discriminator_forward.13} parent=19 // pred_fallthru
          _
      $region20: #{discriminator_forward.13} parent=5 // pred_fallthru
        _
      %p220 = scmp.le.s32.totalorder 1, %s9
      %p221 = scmp.lt.s32.totalorder %s9, 5
      %p222 = pnand %p220, %p221
      %p223 = pneg %p222
      // Predicated region
      $region48: #{discriminator_forward.13} parent=5 // pred_check
        _
      $region49: #{discriminator_forward.13} parent=5 // pred_check_branch
        %225 = sbr.rel (%p222) target = $region51
      $region50: #{discriminator_forward.13} parent=5 // pred_region
        %s226 = ssub.s32 %s9, 1
        %s227 = sand.u32 %s43, 1
        %s228 = sand.u32 %s43, 1
        %s229 = smul.addr %s228, 48
        %s230 = scalar_lea.vmem [#allocation3], %s229
        // Predicated region
        $region52: #{discriminator_forward.13} parent=50 // pred_check
          %p231 = pneg %p56
        $region53: #{discriminator_forward.13} parent=50 // pred_check_branch
          %233 = sbr.rel (%p231) target = $region55
        $region54: #{discriminator_forward.13} parent=50 // pred_region
          _
        $region55: #{discriminator_forward.13} parent=50 // pred_fallthru
          _
        %s234 = sand.u32 %s43, 1
        %s235 = sand.u32 %s43, 1
        %s236 = smul.addr %s235, 48
        %s237 = scalar_lea.vmem [#allocation3], %s236
        %p238 = pneg %p56
        %p239 = pneg %p53
        %s240 = smul.u32 64, %s21
        %s241 = smul.u32 2, %s20
        %p242 = scmp.lt.s32.totalorder %s240, 255
        %s243 = scalar_select %p242, %s240, 255
        %p244 = scmp.lt.s32.totalorder %s241, 1
        %s245 = scalar_select %p244, %s241, 1
        %s246 = smul.addr %s243, 2
        %s247 = sadd.s32 %s245, %s246
        %s248 = smul.addr %s247, 4
        %s249 = scalar_lea.vmem %s1, %s248
        %p250 = pneg %p84
        %p251 = pneg %p81
        %s252 = smul.u32 2, %s20
        %p253 = scmp.lt.s32.totalorder %s252, 1
        %s254 = scalar_select %p253, %s252, 1
        %s255 = scalar_lea.vmem %s2, %s254
        %p256 = pneg %p110
        %p257 = pneg %p107
        %p258 = pneg %p138
        %p259 = pneg %p135
        %s260 = smul.u32 3, %s19
        %s261 = smul.u32 2, %s20
        %p262 = scmp.lt.s32.totalorder %s260, 2
        %s263 = scalar_select %p262, %s260, 2
        %p264 = scmp.lt.s32.totalorder %s261, 1
        %s265 = scalar_select %p264, %s261, 1
        %s266 = smul.addr %s263, 2
        %s267 = sadd.s32 %s265, %s266
        %s268 = smul.addr %s267, 8
        %s269 = scalar_lea.vmem %s3, %s268
        %s270 = smul.u32 3, %s19
        %s271 = smul.u32 4, %s21
        %s272 = smul.u32 64, %s21
        %s273 = smul.u32 2, %s20
        %p274 = scmp.lt.s32.totalorder %s272, 255
        %s275 = scalar_select %p274, %s272, 255
        %p276 = scmp.lt.s32.totalorder %s273, 1
        %s277 = scalar_select %p276, %s273, 1
        %s278 = smul.addr %s275, 2
        %s279 = sadd.s32 %s277, %s278
        %s280 = smul.addr %s279, 4
        %s281 = scalar_lea.vmem %s1, %s280
        %s282 = smul.u32 64, %s21
        %s283 = smul.u32 2, %s20
        %s284 = smul.u32 2, %s20
        %p285 = scmp.lt.s32.totalorder %s284, 1
        %s286 = scalar_select %p285, %s284, 1
        %s287 = scalar_lea.vmem %s2, %s286
        %s288 = smul.u32 2, %s20
        %s289 = smul.u32 3, %s19
        %s290 = smul.u32 2, %s20
        %p291 = scmp.lt.s32.totalorder %s289, 2
        %s292 = scalar_select %p291, %s289, 2
        %p293 = scmp.lt.s32.totalorder %s290, 1
        %s294 = scalar_select %p293, %s290, 1
        %s295 = smul.addr %s292, 2
        %s296 = sadd.s32 %s294, %s295
        %s297 = smul.addr %s296, 8
        %s298 = scalar_lea.vmem %s3, %s297
        %s299 = smul.u32 3, %s19
        %s300 = smul.u32 2, %s20
        %p301 = scmp.eq.s32.totalorder %s21, 0
        // Predicated region
        $region56: #{discriminator_forward.13} parent=50 // pred_check
          %p302 = pneg %p301
        $region57: #{discriminator_forward.13} parent=50 // pred_check_branch
          %304 = sbr.rel (%p302) target = $region59
        $region58: #{discriminator_forward.13} parent=50 // pred_region
          %305 = vst [vmem:[#allocation2] sm:$0xff] 0.0
          %306 = vst [vmem:[#allocation2 + $0x8] sm:$0xff] 0.0
          %307 = vst [vmem:[#allocation2 + $0x10] sm:$0xff] 0.0
          %308 = vst [vmem:[#allocation2 + $0x18] sm:$0xff] 0.0
          %309 = vst [vmem:[#allocation2 + $0x20] sm:$0xff] 0.0
          %310 = vst [vmem:[#allocation2 + $0x28] sm:$0xff] 0.0
        $region59: #{discriminator_forward.13} parent=50 // pred_fallthru
          _
        %v311 = vld [vmem:[#allocation2] sm:$0xff]
        %v312 = vld [vmem:[#allocation2 + $0x8] sm:$0xff]
        %v313 = vld [vmem:[#allocation2 + $0x10] sm:$0xff]
        %v314 = vld [vmem:[#allocation2 + $0x18] sm:$0xff]
        %v315 = vld [vmem:[#allocation2 + $0x20] sm:$0xff]
        %v316 = vld [vmem:[#allocation2 + $0x28] sm:$0xff]
        %v317 = vld [vmem:[%s230] sm:$0xff]
        %v318 = vld [vmem:[%s230 + $0x8] sm:$0xff]
        %v319 = vld [vmem:[%s230 + $0x10] sm:$0xff]
        %v320 = vld [vmem:[%s230 + $0x18] sm:$0xff]
        %v321 = vld [vmem:[%s230 + $0x20] sm:$0xff]
        %v322 = vld [vmem:[%s230 + $0x28] sm:$0xff]
        %v323 = vld [vmem:[%s281] sm:$0xff]
        %v324 = vld [vmem:[%s281 + $0x8] sm:$0xff]
        %v325 = vld [vmem:[%s281 + $0x10] sm:$0xff]
        %v326 = vld [vmem:[%s281 + $0x18] sm:$0xff]
        %v327 = vld [vmem:[%s281 + $0x20] sm:$0xff]
        %v328 = vld [vmem:[%s281 + $0x28] sm:$0xff]
        %v329 = vld [vmem:[%s281 + $0x30] sm:$0xff]
        %v330 = vld [vmem:[%s281 + $0x38] sm:$0xff]
        %v331 = vld [vmem:[%s281 + $0x40] sm:$0xff]
        %v332 = vld [vmem:[%s281 + $0x48] sm:$0xff]
        %v333 = vld [vmem:[%s281 + $0x50] sm:$0xff]
        %v334 = vld [vmem:[%s281 + $0x58] sm:$0xff]
        %v335 = vld [vmem:[%s281 + $0x60] sm:$0xff]
        %v336 = vld [vmem:[%s281 + $0x68] sm:$0xff]
        %v337 = vld [vmem:[%s281 + $0x70] sm:$0xff]
        %v338 = vld [vmem:[%s281 + $0x78] sm:$0xff]
        %v339 = vld [vmem:[%s281 + $0x80] sm:$0xff]
        %v340 = vld [vmem:[%s281 + $0x88] sm:$0xff]
        %v341 = vld [vmem:[%s281 + $0x90] sm:$0xff]
        %v342 = vld [vmem:[%s281 + $0x98] sm:$0xff]
        %v343 = vld [vmem:[%s281 + $0xa0] sm:$0xff]
        %v344 = vld [vmem:[%s281 + $0xa8] sm:$0xff]
        %v345 = vld [vmem:[%s281 + $0xb0] sm:$0xff]
        %v346 = vld [vmem:[%s281 + $0xb8] sm:$0xff]
        %v347 = vld [vmem:[%s281 + $0xc0] sm:$0xff]
        %v348 = vld [vmem:[%s281 + $0xc8] sm:$0xff]
        %v349 = vld [vmem:[%s281 + $0xd0] sm:$0xff]
        %v350 = vld [vmem:[%s281 + $0xd8] sm:$0xff]
        %v351 = vld [vmem:[%s281 + $0xe0] sm:$0xff]
        %v352 = vld [vmem:[%s281 + $0xe8] sm:$0xff]
        %v353 = vld [vmem:[%s281 + $0xf0] sm:$0xff]
        %v354 = vld [vmem:[%s281 + $0xf8] sm:$0xff]
        %v355 = vld [vmem:[%s281 + $0x100] sm:$0xff]
        %v356 = vld [vmem:[%s281 + $0x108] sm:$0xff]
        %v357 = vld [vmem:[%s281 + $0x110] sm:$0xff]
        %v358 = vld [vmem:[%s281 + $0x118] sm:$0xff]
        %v359 = vld [vmem:[%s281 + $0x120] sm:$0xff]
        %v360 = vld [vmem:[%s281 + $0x128] sm:$0xff]
        %v361 = vld [vmem:[%s281 + $0x130] sm:$0xff]
        %v362 = vld [vmem:[%s281 + $0x138] sm:$0xff]
        %v363 = vld [vmem:[%s281 + $0x140] sm:$0xff]
        %v364 = vld [vmem:[%s281 + $0x148] sm:$0xff]
        %v365 = vld [vmem:[%s281 + $0x150] sm:$0xff]
        %v366 = vld [vmem:[%s281 + $0x158] sm:$0xff]
        %v367 = vld [vmem:[%s281 + $0x160] sm:$0xff]
        %v368 = vld [vmem:[%s281 + $0x168] sm:$0xff]
        %v369 = vld [vmem:[%s281 + $0x170] sm:$0xff]
        %v370 = vld [vmem:[%s281 + $0x178] sm:$0xff]
        %v371 = vld [vmem:[%s281 + $0x180] sm:$0xff]
        %v372 = vld [vmem:[%s281 + $0x188] sm:$0xff]
        %v373 = vld [vmem:[%s281 + $0x190] sm:$0xff]
        %v374 = vld [vmem:[%s281 + $0x198] sm:$0xff]
        %v375 = vld [vmem:[%s281 + $0x1a0] sm:$0xff]
        %v376 = vld [vmem:[%s281 + $0x1a8] sm:$0xff]
        %v377 = vld [vmem:[%s281 + $0x1b0] sm:$0xff]
        %v378 = vld [vmem:[%s281 + $0x1b8] sm:$0xff]
        %v379 = vld [vmem:[%s281 + $0x1c0] sm:$0xff]
        %v380 = vld [vmem:[%s281 + $0x1c8] sm:$0xff]
        %v381 = vld [vmem:[%s281 + $0x1d0] sm:$0xff]
        %v382 = vld [vmem:[%s281 + $0x1d8] sm:$0xff]
        %v383 = vld [vmem:[%s281 + $0x1e0] sm:$0xff]
        %v384 = vld [vmem:[%s281 + $0x1e8] sm:$0xff]
        %v385 = vld [vmem:[%s281 + $0x1f0] sm:$0xff]
        %v386 = vld [vmem:[%s281 + $0x1f8] sm:$0xff]
        %v393 = vunpack.c.l.b16 %v317
        %v394 = vunpack.c.h.b16 %v317
        %v395 = vunpack.c.l.b16 %v318
        %v396 = vunpack.c.h.b16 %v318
        %v397 = vunpack.c.l.b16 %v319
        %v398 = vunpack.c.h.b16 %v319
        %v399 = vunpack.c.l.b16 %v320
        %v400 = vunpack.c.h.b16 %v320
        %v401 = vunpack.c.l.b16 %v321
        %v402 = vunpack.c.h.b16 %v321
        %v403 = vunpack.c.l.b16 %v322
        %v404 = vunpack.c.h.b16 %v322
        %v405 = vpack.c.b16 %v397, %v393
        %v406 = vpack.c.b16 %v398, %v394
        %v407 = vpack.c.b16 %v399, %v395
        %v408 = vpack.c.b16 %v400, %v396
        %v409 = vpack.c.b16 %v401, %v401
        %v410 = vpack.c.b16 %v402, %v402
        %v411 = vpack.c.b16 %v403, %v403
        %v412 = vpack.c.b16 %v404, %v404
        %v485 = vunpack.c.l.b16 %v323
        %v486 = vunpack.c.h.b16 %v323
        %v487 = vunpack.c.l.b16 %v324
        %v488 = vunpack.c.h.b16 %v324
        %v489 = vunpack.c.l.b16 %v325
        %v490 = vunpack.c.h.b16 %v325
        %v491 = vunpack.c.l.b16 %v326
        %v492 = vunpack.c.h.b16 %v326
        %v493 = vunpack.c.l.b16 %v327
        %v494 = vunpack.c.h.b16 %v327
        %v495 = vunpack.c.l.b16 %v328
        %v496 = vunpack.c.h.b16 %v328
        %v497 = vunpack.c.l.b16 %v329
        %v498 = vunpack.c.h.b16 %v329
        %v499 = vunpack.c.l.b16 %v330
        %v500 = vunpack.c.h.b16 %v330
        %v501 = vunpack.c.l.b16 %v331
        %v502 = vunpack.c.h.b16 %v331
        %v503 = vunpack.c.l.b16 %v332
        %v504 = vunpack.c.h.b16 %v332
        %v505 = vunpack.c.l.b16 %v333
        %v506 = vunpack.c.h.b16 %v333
        %v507 = vunpack.c.l.b16 %v334
        %v508 = vunpack.c.h.b16 %v334
        %v509 = vunpack.c.l.b16 %v335
        %v510 = vunpack.c.h.b16 %v335
        %v511 = vunpack.c.l.b16 %v336
        %v512 = vunpack.c.h.b16 %v336
        %v513 = vunpack.c.l.b16 %v337
        %v514 = vunpack.c.h.b16 %v337
        %v515 = vunpack.c.l.b16 %v338
        %v516 = vunpack.c.h.b16 %v338
        %v517 = vunpack.c.l.b16 %v339
        %v518 = vunpack.c.h.b16 %v339
        %v519 = vunpack.c.l.b16 %v340
        %v520 = vunpack.c.h.b16 %v340
        %v521 = vunpack.c.l.b16 %v341
        %v522 = vunpack.c.h.b16 %v341
        %v523 = vunpack.c.l.b16 %v342
        %v524 = vunpack.c.h.b16 %v342
        %v525 = vunpack.c.l.b16 %v343
        %v526 = vunpack.c.h.b16 %v343
        %v527 = vunpack.c.l.b16 %v344
        %v528 = vunpack.c.h.b16 %v344
        %v529 = vunpack.c.l.b16 %v345
        %v530 = vunpack.c.h.b16 %v345
        %v531 = vunpack.c.l.b16 %v346
        %v532 = vunpack.c.h.b16 %v346
        %v533 = vunpack.c.l.b16 %v347
        %v534 = vunpack.c.h.b16 %v347
        %v535 = vunpack.c.l.b16 %v348
        %v536 = vunpack.c.h.b16 %v348
        %v537 = vunpack.c.l.b16 %v349
        %v538 = vunpack.c.h.b16 %v349
        %v539 = vunpack.c.l.b16 %v350
        %v540 = vunpack.c.h.b16 %v350
        %v541 = vunpack.c.l.b16 %v351
        %v542 = vunpack.c.h.b16 %v351
        %v543 = vunpack.c.l.b16 %v352
        %v544 = vunpack.c.h.b16 %v352
        %v545 = vunpack.c.l.b16 %v353
        %v546 = vunpack.c.h.b16 %v353
        %v547 = vunpack.c.l.b16 %v354
        %v548 = vunpack.c.h.b16 %v354
        %v549 = vunpack.c.l.b16 %v355
        %v550 = vunpack.c.h.b16 %v355
        %v551 = vunpack.c.l.b16 %v356
        %v552 = vunpack.c.h.b16 %v356
        %v553 = vunpack.c.l.b16 %v357
        %v554 = vunpack.c.h.b16 %v357
        %v555 = vunpack.c.l.b16 %v358
        %v556 = vunpack.c.h.b16 %v358
        %v557 = vunpack.c.l.b16 %v359
        %v558 = vunpack.c.h.b16 %v359
        %v559 = vunpack.c.l.b16 %v360
        %v560 = vunpack.c.h.b16 %v360
        %v561 = vunpack.c.l.b16 %v361
        %v562 = vunpack.c.h.b16 %v361
        %v563 = vunpack.c.l.b16 %v362
        %v564 = vunpack.c.h.b16 %v362
        %v565 = vunpack.c.l.b16 %v363
        %v566 = vunpack.c.h.b16 %v363
        %v567 = vunpack.c.l.b16 %v364
        %v568 = vunpack.c.h.b16 %v364
        %v569 = vunpack.c.l.b16 %v365
        %v570 = vunpack.c.h.b16 %v365
        %v571 = vunpack.c.l.b16 %v366
        %v572 = vunpack.c.h.b16 %v366
        %v573 = vunpack.c.l.b16 %v367
        %v574 = vunpack.c.h.b16 %v367
        %v575 = vunpack.c.l.b16 %v368
        %v576 = vunpack.c.h.b16 %v368
        %v577 = vunpack.c.l.b16 %v369
        %v578 = vunpack.c.h.b16 %v369
        %v579 = vunpack.c.l.b16 %v370
        %v580 = vunpack.c.h.b16 %v370
        %v581 = vunpack.c.l.b16 %v371
        %v582 = vunpack.c.h.b16 %v371
        %v583 = vunpack.c.l.b16 %v372
        %v584 = vunpack.c.h.b16 %v372
        %v585 = vunpack.c.l.b16 %v373
        %v586 = vunpack.c.h.b16 %v373
        %v587 = vunpack.c.l.b16 %v374
        %v588 = vunpack.c.h.b16 %v374
        %v589 = vunpack.c.l.b16 %v375
        %v590 = vunpack.c.h.b16 %v375
        %v591 = vunpack.c.l.b16 %v376
        %v592 = vunpack.c.h.b16 %v376
        %v593 = vunpack.c.l.b16 %v377
        %v594 = vunpack.c.h.b16 %v377
        %v595 = vunpack.c.l.b16 %v378
        %v596 = vunpack.c.h.b16 %v378
        %v597 = vunpack.c.l.b16 %v379
        %v598 = vunpack.c.h.b16 %v379
        %v599 = vunpack.c.l.b16 %v380
        %v600 = vunpack.c.h.b16 %v380
        %v601 = vunpack.c.l.b16 %v381
        %v602 = vunpack.c.h.b16 %v381
        %v603 = vunpack.c.l.b16 %v382
        %v604 = vunpack.c.h.b16 %v382
        %v605 = vunpack.c.l.b16 %v383
        %v606 = vunpack.c.h.b16 %v383
        %v607 = vunpack.c.l.b16 %v384
        %v608 = vunpack.c.h.b16 %v384
        %v609 = vunpack.c.l.b16 %v385
        %v610 = vunpack.c.h.b16 %v385
        %v611 = vunpack.c.l.b16 %v386
        %v612 = vunpack.c.h.b16 %v386
        %v613 = vpack.c.b16 %v487, %v485
        %v614 = vpack.c.b16 %v488, %v486
        %v615 = vpack.c.b16 %v491, %v489
        %v616 = vpack.c.b16 %v492, %v490
        %v617 = vpack.c.b16 %v495, %v493
        %v618 = vpack.c.b16 %v496, %v494
        %v619 = vpack.c.b16 %v499, %v497
        %v620 = vpack.c.b16 %v500, %v498
        %v621 = vpack.c.b16 %v503, %v501
        %v622 = vpack.c.b16 %v504, %v502
        %v623 = vpack.c.b16 %v507, %v505
        %v624 = vpack.c.b16 %v508, %v506
        %v625 = vpack.c.b16 %v511, %v509
        %v626 = vpack.c.b16 %v512, %v510
        %v627 = vpack.c.b16 %v515, %v513
        %v628 = vpack.c.b16 %v516, %v514
        %v629 = vpack.c.b16 %v519, %v517
        %v630 = vpack.c.b16 %v520, %v518
        %v631 = vpack.c.b16 %v523, %v521
        %v632 = vpack.c.b16 %v524, %v522
        %v633 = vpack.c.b16 %v527, %v525
        %v634 = vpack.c.b16 %v528, %v526
        %v635 = vpack.c.b16 %v531, %v529
        %v636 = vpack.c.b16 %v532, %v530
        %v637 = vpack.c.b16 %v535, %v533
        %v638 = vpack.c.b16 %v536, %v534
        %v639 = vpack.c.b16 %v539, %v537
        %v640 = vpack.c.b16 %v540, %v538
        %v641 = vpack.c.b16 %v543, %v541
        %v642 = vpack.c.b16 %v544, %v542
        %v643 = vpack.c.b16 %v547, %v545
        %v644 = vpack.c.b16 %v548, %v546
        %v645 = vpack.c.b16 %v551, %v549
        %v646 = vpack.c.b16 %v552, %v550
        %v647 = vpack.c.b16 %v555, %v553
        %v648 = vpack.c.b16 %v556, %v554
        %v649 = vpack.c.b16 %v559, %v557
        %v650 = vpack.c.b16 %v560, %v558
        %v651 = vpack.c.b16 %v563, %v561
        %v652 = vpack.c.b16 %v564, %v562
        %v653 = vpack.c.b16 %v567, %v565
        %v654 = vpack.c.b16 %v568, %v566
        %v655 = vpack.c.b16 %v571, %v569
        %v656 = vpack.c.b16 %v572, %v570
        %v657 = vpack.c.b16 %v575, %v573
        %v658 = vpack.c.b16 %v576, %v574
        %v659 = vpack.c.b16 %v579, %v577
        %v660 = vpack.c.b16 %v580, %v578
        %v661 = vpack.c.b16 %v583, %v581
        %v662 = vpack.c.b16 %v584, %v582
        %v663 = vpack.c.b16 %v587, %v585
        %v664 = vpack.c.b16 %v588, %v586
        %v665 = vpack.c.b16 %v591, %v589
        %v666 = vpack.c.b16 %v592, %v590
        %v667 = vpack.c.b16 %v595, %v593
        %v668 = vpack.c.b16 %v596, %v594
        %v669 = vpack.c.b16 %v599, %v597
        %v670 = vpack.c.b16 %v600, %v598
        %v671 = vpack.c.b16 %v603, %v601
        %v672 = vpack.c.b16 %v604, %v602
        %v673 = vpack.c.b16 %v607, %v605
        %v674 = vpack.c.b16 %v608, %v606
        %v675 = vpack.c.b16 %v611, %v609
        %v676 = vpack.c.b16 %v612, %v610
        %741 = vmatpush.bf16.msra.mxu0 %v627
        %742 = vmatpush.bf16.msra.mxu0 %v625
        %743 = vmatpush.bf16.msra.mxu0 %v623
        %744 = vmatpush.bf16.msra.mxu0 %v621
        %745 = vmatpush.bf16.msra.mxu0 %v619
        %746 = vmatpush.bf16.msra.mxu0 %v617
        %747 = vmatpush.bf16.msra.mxu0 %v615
        %748 = vmatpush.bf16.msra.mxu0 %v613
        %749 = vmatmul.bf16.gmra.mxu0 %v405
        %v750 = vpop.f32.mrf.mxu0
        %v751 = vadd.f32 0.0, %v750
        %v752 = vpop.f32.mrf.mxu0
        %v753 = vadd.f32 0.0, %v752
        %754 = vmatmul.bf16.gmra.mxu0 %v409
        %v755 = vpop.f32.mrf.mxu0
        %v756 = vadd.f32 0.0, %v755
        %v757 = vpop.f32.mrf.mxu0
        %758 = vdwg.mxu0
        %759 = vmatpush.bf16.msra.mxu0 %v643
        %760 = vmatpush.bf16.msra.mxu0 %v641
        %761 = vmatpush.bf16.msra.mxu0 %v639
        %762 = vmatpush.bf16.msra.mxu0 %v637
        %763 = vmatpush.bf16.msra.mxu0 %v635
        %764 = vmatpush.bf16.msra.mxu0 %v633
        %765 = vmatpush.bf16.msra.mxu0 %v631
        %766 = vmatpush.bf16.msra.mxu0 %v629
        %767 = vmatmul.bf16.gmra.mxu0 %v406
        %v768 = vpop.f32.mrf.mxu0
        %v769 = vadd.f32 %v751, %v768
        %v770 = vpop.f32.mrf.mxu0
        %v771 = vadd.f32 %v753, %v770
        %772 = vmatmul.bf16.gmra.mxu0 %v410
        %v773 = vpop.f32.mrf.mxu0
        %v774 = vadd.f32 %v756, %v773
        %v775 = vpop.f32.mrf.mxu0
        %776 = vdwg.mxu0
        %777 = vmatpush.bf16.msra.mxu0 %v659
        %778 = vmatpush.bf16.msra.mxu0 %v657
        %779 = vmatpush.bf16.msra.mxu0 %v655
        %780 = vmatpush.bf16.msra.mxu0 %v653
        %781 = vmatpush.bf16.msra.mxu0 %v651
        %782 = vmatpush.bf16.msra.mxu0 %v649
        %783 = vmatpush.bf16.msra.mxu0 %v647
        %784 = vmatpush.bf16.msra.mxu0 %v645
        %785 = vmatmul.bf16.gmra.mxu0 %v407
        %v786 = vpop.f32.mrf.mxu0
        %v787 = vadd.f32 %v769, %v786
        %v788 = vpop.f32.mrf.mxu0
        %v789 = vadd.f32 %v771, %v788
        %790 = vmatmul.bf16.gmra.mxu0 %v411
        %v791 = vpop.f32.mrf.mxu0
        %v792 = vadd.f32 %v774, %v791
        %v793 = vpop.f32.mrf.mxu0
        %794 = vdwg.mxu0
        %795 = vmatpush.bf16.msra.mxu0 %v675
        %796 = vmatpush.bf16.msra.mxu0 %v673
        %797 = vmatpush.bf16.msra.mxu0 %v671
        %798 = vmatpush.bf16.msra.mxu0 %v669
        %799 = vmatpush.bf16.msra.mxu0 %v667
        %800 = vmatpush.bf16.msra.mxu0 %v665
        %801 = vmatpush.bf16.msra.mxu0 %v663
        %802 = vmatpush.bf16.msra.mxu0 %v661
        %803 = vmatmul.bf16.gmra.mxu0 %v408
        %v804 = vpop.f32.mrf.mxu0
        %v805 = vadd.f32 %v787, %v804
        %v806 = vpop.f32.mrf.mxu0
        %v807 = vadd.f32 %v789, %v806
        %808 = vmatmul.bf16.gmra.mxu0 %v412
        %v809 = vpop.f32.mrf.mxu0
        %v810 = vadd.f32 %v792, %v809
        %v811 = vpop.f32.mrf.mxu0
        %812 = vdwg.mxu0
        %813 = vmatpush.bf16.msra.mxu0 %v628
        %814 = vmatpush.bf16.msra.mxu0 %v626
        %815 = vmatpush.bf16.msra.mxu0 %v624
        %816 = vmatpush.bf16.msra.mxu0 %v622
        %817 = vmatpush.bf16.msra.mxu0 %v620
        %818 = vmatpush.bf16.msra.mxu0 %v618
        %819 = vmatpush.bf16.msra.mxu0 %v616
        %820 = vmatpush.bf16.msra.mxu0 %v614
        %821 = vmatmul.bf16.gmra.mxu0 %v405
        %v822 = vpop.f32.mrf.mxu0
        %v823 = vadd.f32 0.0, %v822
        %v824 = vpop.f32.mrf.mxu0
        %v825 = vadd.f32 0.0, %v824
        %826 = vmatmul.bf16.gmra.mxu0 %v409
        %v827 = vpop.f32.mrf.mxu0
        %v828 = vadd.f32 0.0, %v827
        %v829 = vpop.f32.mrf.mxu0
        %830 = vdwg.mxu0
        %831 = vmatpush.bf16.msra.mxu0 %v644
        %832 = vmatpush.bf16.msra.mxu0 %v642
        %833 = vmatpush.bf16.msra.mxu0 %v640
        %834 = vmatpush.bf16.msra.mxu0 %v638
        %835 = vmatpush.bf16.msra.mxu0 %v636
        %836 = vmatpush.bf16.msra.mxu0 %v634
        %837 = vmatpush.bf16.msra.mxu0 %v632
        %838 = vmatpush.bf16.msra.mxu0 %v630
        %839 = vmatmul.bf16.gmra.mxu0 %v406
        %v840 = vpop.f32.mrf.mxu0
        %v841 = vadd.f32 %v823, %v840
        %v842 = vpop.f32.mrf.mxu0
        %v843 = vadd.f32 %v825, %v842
        %844 = vmatmul.bf16.gmra.mxu0 %v410
        %v845 = vpop.f32.mrf.mxu0
        %v846 = vadd.f32 %v828, %v845
        %v847 = vpop.f32.mrf.mxu0
        %848 = vdwg.mxu0
        %849 = vmatpush.bf16.msra.mxu0 %v660
        %850 = vmatpush.bf16.msra.mxu0 %v658
        %851 = vmatpush.bf16.msra.mxu0 %v656
        %852 = vmatpush.bf16.msra.mxu0 %v654
        %853 = vmatpush.bf16.msra.mxu0 %v652
        %854 = vmatpush.bf16.msra.mxu0 %v650
        %855 = vmatpush.bf16.msra.mxu0 %v648
        %856 = vmatpush.bf16.msra.mxu0 %v646
        %857 = vmatmul.bf16.gmra.mxu0 %v407
        %v858 = vpop.f32.mrf.mxu0
        %v859 = vadd.f32 %v841, %v858
        %v860 = vpop.f32.mrf.mxu0
        %v861 = vadd.f32 %v843, %v860
        %862 = vmatmul.bf16.gmra.mxu0 %v411
        %v863 = vpop.f32.mrf.mxu0
        %v864 = vadd.f32 %v846, %v863
        %v865 = vpop.f32.mrf.mxu0
        %866 = vdwg.mxu0
        %867 = vmatpush.bf16.msra.mxu0 %v676
        %868 = vmatpush.bf16.msra.mxu0 %v674
        %869 = vmatpush.bf16.msra.mxu0 %v672
        %870 = vmatpush.bf16.msra.mxu0 %v670
        %871 = vmatpush.bf16.msra.mxu0 %v668
        %872 = vmatpush.bf16.msra.mxu0 %v666
        %873 = vmatpush.bf16.msra.mxu0 %v664
        %874 = vmatpush.bf16.msra.mxu0 %v662
        %875 = vmatmul.bf16.gmra.mxu0 %v408
        %v876 = vpop.f32.mrf.mxu0
        %v877 = vadd.f32 %v859, %v876
        %v878 = vpop.f32.mrf.mxu0
        %v879 = vadd.f32 %v861, %v878
        %880 = vmatmul.bf16.gmra.mxu0 %v412
        %v881 = vpop.f32.mrf.mxu0
        %v882 = vadd.f32 %v864, %v881
        %v883 = vpop.f32.mrf.mxu0
        %884 = vdwg.mxu0
        %v885 = vadd.f32 %v311, %v805
        %v886 = vadd.f32 %v312, %v877
        %v887 = vadd.f32 %v313, %v807
        %v888 = vadd.f32 %v314, %v879
        %v889 = vadd.f32 %v315, %v810
        %v890 = vadd.f32 %v316, %v882
        %891 = vst [vmem:[#allocation2] sm:$0xff] %v885
        %892 = vst [vmem:[#allocation2 + $0x8] sm:$0xff] %v886
        %893 = vst [vmem:[#allocation2 + $0x10] sm:$0xff] %v887
        %894 = vst [vmem:[#allocation2 + $0x18] sm:$0xff] %v888
        %895 = vst [vmem:[#allocation2 + $0x20] sm:$0xff] %v889
        %896 = vst [vmem:[#allocation2 + $0x28] sm:$0xff] %v890
        %p897 = scmp.eq.s32.totalorder %s21, 3
        // Predicated region
        $region60: #{discriminator_forward.13} parent=50 // pred_check
          %p898 = pneg %p897
        $region61: #{discriminator_forward.13} parent=50 // pred_check_branch
          %900 = sbr.rel (%p898) target = $region63
        $region62: #{discriminator_forward.13} parent=50 // pred_region
          %v901 = vld [vmem:[#allocation2] sm:$0xff]
          %v902 = vld [vmem:[#allocation2 + $0x8] sm:$0xff]
          %v903 = vld [vmem:[#allocation2 + $0x10] sm:$0xff]
          %v904 = vld [vmem:[#allocation2 + $0x18] sm:$0xff]
          %v905 = vld [vmem:[#allocation2 + $0x20] sm:$0xff]
          %v906 = vld [vmem:[#allocation2 + $0x28] sm:$0xff]
          %v907 = vld [vmem:[%s287] sm:$0x3]
          %v909 = vperm.slane %v907, 0
          %v910 = vperm.slane %v907, 1
          %v913 = vadd.f32 %v901, %v909
          %v914 = vadd.f32 %v902, %v910
          %v915 = vadd.f32 %v903, %v909
          %v916 = vadd.f32 %v904, %v910
          %v917 = vadd.f32 %v905, %v909
          %v918 = vadd.f32 %v906, %v910
          %919 = vst [vmem:[%s298] sm:$0xff] %v913
          %920 = vst [vmem:[%s298 + $0x8] sm:$0xff] %v914
          %921 = vst [vmem:[%s298 + $0x10] sm:$0xff] %v915
          %922 = vst [vmem:[%s298 + $0x18] sm:$0xff] %v916
          %923 = vst [vmem:[%s298 + $0x20] sm:$0xff] %v917
          %924 = vst [vmem:[%s298 + $0x28] sm:$0xff] %v918
        $region63: #{discriminator_forward.13} parent=50 // pred_fallthru
          _
        %s925 = smul.u32 3, %s19
        %s926 = smul.u32 2, %s20
        %p927 = scmp.lt.s32.totalorder %s925, 2
        %s928 = scalar_select %p927, %s925, 2
        %p929 = scmp.lt.s32.totalorder %s926, 1
        %s930 = scalar_select %p929, %s926, 1
        %s931 = smul.addr %s928, 2
        %s932 = sadd.s32 %s930, %s931
        %s933 = smul.addr %s932, 8
        %s934 = scalar_lea.vmem %s3, %s933
        // Predicated region
        $region64: #{discriminator_forward.13} parent=50 // pred_check
          %p935 = pneg %p135
        $region65: #{discriminator_forward.13} parent=50 // pred_check_branch
          %937 = sbr.rel (%p935) target = $region67
        $region66: #{discriminator_forward.13} parent=50 // pred_region
          %s938 = smul.u32 3, %s19
          %s939 = smul.u32 2, %s20
        $region67: #{discriminator_forward.13} parent=50 // pred_fallthru
          _
        // Predicated region
        $region68: #{discriminator_forward.13} parent=50 // pred_check
          %p940 = pneg %p135
        $region69: #{discriminator_forward.13} parent=50 // pred_check_branch
          %942 = sbr.rel (%p940) target = $region71
        $region70: #{discriminator_forward.13} parent=50 // pred_region
          %s943 = smul.u32 3, %s19
          %s944 = smul.u32 2, %s20
          %p945 = scmp.lt.s32.totalorder %s943, 2
          %s946 = scalar_select %p945, %s943, 2
          %p947 = scmp.lt.s32.totalorder %s944, 1
          %s948 = scalar_select %p947, %s944, 1
          %s949 = smul.addr %s946, 2
          %s950 = sadd.s32 %s948, %s949
          %s951 = smul.addr %s950, 8
          %s952 = scalar_lea.vmem %s3, %s951
        $region71: #{discriminator_forward.13} parent=50 // pred_fallthru
          _
      $region51: #{discriminator_forward.13} parent=5 // pred_fallthru
        _
      %p953 = scmp.le.s32.totalorder 2, %s9
      // Predicated region
      $region72: #{discriminator_forward.13} parent=5 // pred_check
        %p954 = pneg %p953
      $region73: #{discriminator_forward.13} parent=5 // pred_check_branch
        %956 = sbr.rel (%p954) target = $region75
      $region74: #{discriminator_forward.13} parent=5 // pred_region
        %s957 = ssub.s32 %s9, 2
      $region75: #{discriminator_forward.13} parent=5 // pred_fallthru
        _
    $region6: #{discriminator_forward.13} parent=1 // loop_footer
      %s13 = sadd.s32 1, %s9
    $region7: #{discriminator_forward.13} parent=1 // loop_footer_branch
      %8 = sbr.rel target = $region3
    $region8: #{discriminator_forward.13} parent=1 // loop_exit
      _

// kernel: discriminator_forward.15
$region0: #{discriminator_forward.15}
  #allocation0 [shape = 'u32[]', space=smem, size = 0x4, offset = 0x4, fixed_abs, tag = 'smem constant byte address 0x4 - core index']
  #allocation1 [shape = 'u32[72,128]{1,0:T(1,128)}', space=vmem, size = 0x9000, scoped, tag = 'internal scratch']
  #allocation2 [shape = 'f32[8,128]{1,0:T(8,128)}', space=vmem, size = 0x1000, scoped, tag = 'scratch operand']
  %s0 = inlined_call_operand.vmem [shape: bf16[8,4096], index: 0, kind: input, shape index: {}]
  %s1 = inlined_call_operand.vmem [shape: bf16[4096,128], index: 1, kind: input, shape index: {}]
  %s2 = inlined_call_operand.vmem [shape: f32[1,128], index: 2, kind: input, shape index: {}]
  %s3 = inlined_call_operand.vmem [shape: f32[8,128], index: 3, kind: output, shape index: {}]
  %s4 = sld [smem:[#allocation0]]
  $region53: #{discriminator_forward.15} parent=0
    _
  %s6 = ssub.s32 1, %s4
  %s7 = scalar_select 0, %s6, %s4
  loop: start=0, step=1, limit=10
  $region2: #{discriminator_forward.15} parent=0 // loop_pre_header
    _
  $region3: #{discriminator_forward.15} parent=0 // loop_header
    %s9 = sphi 0, %s13
    %p10 = scmp.ge.s32.totalorder %s9, 10
    %s16 = sphi 0, %s35
    %s17 = sphi 0, %s31
    %s18 = sphi 0, %s27
    %s19 = sphi 0, %s16
    %s20 = sphi 0, %s17
    %s21 = sphi 0, %s18
    %s22 = sphi 0, %s19
    %s23 = sphi 0, %s20
    %s24 = sphi 0, %s21
    %s40 = sphi 0, %s42
    %s43 = sphi 0, %s40
    %s44 = sphi 0, %s43
    %s60 = sphi 0, %s44
    %s68 = sphi 0, %s70
    %s71 = sphi 0, %s68
    %s72 = sphi 0, %s71
    %s88 = sphi 0, %s72
    %s94 = sphi 0, %s96
    %s97 = sphi 0, %s94
    %s98 = sphi 0, %s97
    %s114 = sphi 0, %s98
    %s122 = sphi 0, %s124
    %s125 = sphi 0, %s122
    %s126 = sphi 0, %s125
    %s142 = sphi 0, %s126
  $region4: #{discriminator_forward.15} parent=0 // loop_header_branch
    %12 = sbr.rel (%p10) target = $region8
  $region5: #{discriminator_forward.15} parent=0 // loop_body
    %s14 = ssub.s32 %s9, 1
    %s15 = ssub.s32 %s9, 2
    %s25 = sadd.s32 1, %s18
    %p26 = scmp.ge.s32.totalorder %s25, 8
    %s27 = scalar_select %p26, 0, %s25
    %s28 = sadd.s32 1, %s17
    %s29 = scalar_select %p26, %s28, %s17
    %p30 = scmp.ge.s32.totalorder %s29, 1
    %s31 = scalar_select %p30, 0, %s29
    %s32 = sadd.s32 1, %s16
    %s33 = scalar_select %p30, %s32, %s16
    %p34 = scmp.ge.s32.totalorder %s33, 1
    %s35 = scalar_select %p34, 0, %s33
    %s36 = ssub.s32 %s16, %s35
    %s37 = ssub.s32 %s18, %s27
    %s38 = sor.u32 %s36, %s37
    %p39 = scmp.eq.s32.totalorder %s38, 0
    %s41 = sadd.s32 %s40, 1
    %s42 = scalar_select %p39, %s40, %s41
    %p45 = pneg %p39
    %p46 = scmp.eq.s32.totalorder %s9, 7
    %p47 = por %p45, %p46
    %p48 = scmp.ne.s32.totalorder %s40, %s43
    %p49 = scmp.eq.s32.totalorder %s9, 0
    %p50 = por %p48, %p49
    %p51 = scmp.ne.s32.totalorder %s40, %s43
    %p52 = scmp.eq.s32.totalorder %s14, 7
    %p53 = por %p51, %p52
    %p54 = scmp.ne.s32.totalorder %s43, %s44
    %p55 = scmp.eq.s32.totalorder %s14, 0
    %p56 = por %p54, %p55
    %p57 = scmp.ne.s32.totalorder %s43, %s44
    %p58 = scmp.eq.s32.totalorder %s15, 7
    %p59 = por %p57, %p58
    %p61 = scmp.ne.s32.totalorder %s44, %s60
    %p62 = scmp.eq.s32.totalorder %s15, 0
    %p63 = por %p61, %p62
    %s64 = ssub.s32 %s18, %s27
    %s65 = ssub.s32 %s17, %s31
    %s66 = sor.u32 %s64, %s65
    %p67 = scmp.eq.s32.totalorder %s66, 0
    %s69 = sadd.s32 %s68, 1
    %s70 = scalar_select %p67, %s68, %s69
    %p73 = pneg %p67
    %p74 = scmp.eq.s32.totalorder %s9, 7
    %p75 = por %p73, %p74
    %p76 = scmp.ne.s32.totalorder %s68, %s71
    %p77 = scmp.eq.s32.totalorder %s9, 0
    %p78 = por %p76, %p77
    %p79 = scmp.ne.s32.totalorder %s68, %s71
    %p80 = scmp.eq.s32.totalorder %s14, 7
    %p81 = por %p79, %p80
    %p82 = scmp.ne.s32.totalorder %s71, %s72
    %p83 = scmp.eq.s32.totalorder %s14, 0
    %p84 = por %p82, %p83
    %p85 = scmp.ne.s32.totalorder %s71, %s72
    %p86 = scmp.eq.s32.totalorder %s15, 7
    %p87 = por %p85, %p86
    %p89 = scmp.ne.s32.totalorder %s72, %s88
    %p90 = scmp.eq.s32.totalorder %s15, 0
    %p91 = por %p89, %p90
    %s92 = ssub.s32 %s17, %s31
    %p93 = scmp.eq.s32.totalorder %s92, 0
    %s95 = sadd.s32 %s94, 1
    %s96 = scalar_select %p93, %s94, %s95
    %p99 = pneg %p93
    %p100 = scmp.eq.s32.totalorder %s9, 7
    %p101 = por %p99, %p100
    %p102 = scmp.ne.s32.totalorder %s94, %s97
    %p103 = scmp.eq.s32.totalorder %s9, 0
    %p104 = por %p102, %p103
    %p105 = scmp.ne.s32.totalorder %s94, %s97
    %p106 = scmp.eq.s32.totalorder %s14, 7
    %p107 = por %p105, %p106
    %p108 = scmp.ne.s32.totalorder %s97, %s98
    %p109 = scmp.eq.s32.totalorder %s14, 0
    %p110 = por %p108, %p109
    %p111 = scmp.ne.s32.totalorder %s97, %s98
    %p112 = scmp.eq.s32.totalorder %s15, 7
    %p113 = por %p111, %p112
    %p115 = scmp.ne.s32.totalorder %s98, %s114
    %p116 = scmp.eq.s32.totalorder %s15, 0
    %p117 = por %p115, %p116
    %s118 = ssub.s32 %s16, %s35
    %s119 = ssub.s32 %s17, %s31
    %s120 = sor.u32 %s118, %s119
    %p121 = scmp.eq.s32.totalorder %s120, 0
    %s123 = sadd.s32 %s122, 1
    %s124 = scalar_select %p121, %s122, %s123
    %p127 = pneg %p121
    %p128 = scmp.eq.s32.totalorder %s9, 7
    %p129 = por %p127, %p128
    %p130 = scmp.ne.s32.totalorder %s122, %s125
    %p131 = scmp.eq.s32.totalorder %s9, 0
    %p132 = por %p130, %p131
    %p133 = scmp.ne.s32.totalorder %s122, %s125
    %p134 = scmp.eq.s32.totalorder %s14, 7
    %p135 = por %p133, %p134
    %p136 = scmp.ne.s32.totalorder %s125, %s126
    %p137 = scmp.eq.s32.totalorder %s14, 0
    %p138 = por %p136, %p137
    %p139 = scmp.ne.s32.totalorder %s125, %s126
    %p140 = scmp.eq.s32.totalorder %s15, 7
    %p141 = por %p139, %p140
    %p143 = scmp.ne.s32.totalorder %s126, %s142
    %p144 = scmp.eq.s32.totalorder %s15, 0
    %p145 = por %p143, %p144
    %p146 = scmp.le.s32.totalorder 1, %s9
    %p147 = scmp.lt.s32.totalorder %s9, 9
    %p148 = pnand %p146, %p147
    %p149 = pneg %p148
    // Predicated region
    $region9: #{discriminator_forward.15} parent=5 // pred_check
      _
    $region10: #{discriminator_forward.15} parent=5 // pred_check_branch
      %151 = sbr.rel (%p148) target = $region12
    $region11: #{discriminator_forward.15} parent=5 // pred_region
      %s152 = ssub.s32 %s9, 1
      // Predicated region
      $region13: #{discriminator_forward.15} parent=11 // pred_check
        %p153 = pneg %p110
      $region14: #{discriminator_forward.15} parent=11 // pred_check_branch
        %155 = sbr.rel (%p153) target = $region16
      $region15: #{discriminator_forward.15} parent=11 // pred_region
        %p156 = scmp.lt.s32.totalorder %s20, 0
        %s157 = scalar_select %p156, %s20, 0
        %s158 = scalar_lea.vmem %s2, %s157
      $region16: #{discriminator_forward.15} parent=11 // pred_fallthru
        _
    $region12: #{discriminator_forward.15} parent=5 // pred_fallthru
      _
    %p159 = scmp.lt.s32.totalorder %s9, 8
    // Predicated region
    $region17: #{discriminator_forward.15} parent=5 // pred_check
      %p160 = pneg %p159
    $region18: #{discriminator_forward.15} parent=5 // pred_check_branch
      %162 = sbr.rel (%p160) target = $region20
    $region19: #{discriminator_forward.15} parent=5 // pred_region
      // Predicated region
      $region21: #{discriminator_forward.15} parent=19 // pred_check
        %p163 = pneg %p50
      $region22: #{discriminator_forward.15} parent=19 // pred_check_branch
        %165 = sbr.rel (%p163) target = $region24
      $region23: #{discriminator_forward.15} parent=19 // pred_region
        %s166 = smul.u32 4, %s18
        %p167 = scmp.lt.s32.totalorder %s16, 0
        %s168 = scalar_select %p167, %s16, 0
        %p169 = scmp.lt.s32.totalorder %s166, 31
        %s170 = scalar_select %p169, %s166, 31
        %s171 = smul.addr %s168, 32
        %s172 = sadd.s32 %s170, %s171
        %s173 = smul.addr %s172, 4
        %s174 = scalar_lea.vmem %s0, %s173
        %s175 = smul.u32 4, %s18
      $region24: #{discriminator_forward.15} parent=19 // pred_fallthru
        _
      // Predicated region
      $region25: #{discriminator_forward.15} parent=19 // pred_check
        %p176 = pneg %p78
      $region26: #{discriminator_forward.15} parent=19 // pred_check_branch
        %178 = sbr.rel (%p176) target = $region28
      $region27: #{discriminator_forward.15} parent=19 // pred_region
        %s179 = smul.u32 64, %s18
        %p180 = scmp.lt.s32.totalorder %s179, 511
        %s181 = scalar_select %p180, %s179, 511
        %p182 = scmp.lt.s32.totalorder %s17, 0
        %s183 = scalar_select %p182, %s17, 0
        %s184 = sadd.s32 %s183, %s181
        %s185 = smul.addr %s184, 4
        %s186 = scalar_lea.vmem %s1, %s185
        %s187 = smul.u32 64, %s18
      $region28: #{discriminator_forward.15} parent=19 // pred_fallthru
        _
    $region20: #{discriminator_forward.15} parent=5 // pred_fallthru
      _
    %p188 = scmp.le.s32.totalorder 1, %s9
    %p189 = scmp.lt.s32.totalorder %s9, 9
    %p190 = pnand %p188, %p189
    %p191 = pneg %p190
    // Predicated region
    $region29: #{discriminator_forward.15} parent=5 // pred_check
      _
    $region30: #{discriminator_forward.15} parent=5 // pred_check_branch
      %193 = sbr.rel (%p190) target = $region32
    $region31: #{discriminator_forward.15} parent=5 // pred_region
      %s194 = ssub.s32 %s9, 1
      %s195 = smul.u32 4, %s21
      %p196 = scmp.lt.s32.totalorder %s19, 0
      %s197 = scalar_select %p196, %s19, 0
      %p198 = scmp.lt.s32.totalorder %s195, 31
      %s199 = scalar_select %p198, %s195, 31
      %s200 = smul.addr %s197, 32
      %s201 = sadd.s32 %s199, %s200
      %s202 = smul.addr %s201, 4
      %s203 = scalar_lea.vmem %s0, %s202
      %p204 = pneg %p56
      %p205 = pneg %p53
      %s206 = smul.u32 64, %s21
      %p207 = scmp.lt.s32.totalorder %s206, 511
      %s208 = scalar_select %p207, %s206, 511
      %p209 = scmp.lt.s32.totalorder %s20, 0
      %s210 = scalar_select %p209, %s20, 0
      %s211 = sadd.s32 %s210, %s208
      %s212 = smul.addr %s211, 4
      %s213 = scalar_lea.vmem %s1, %s212
      %p214 = pneg %p84
      %p215 = pneg %p81
      %p216 = scmp.lt.s32.totalorder %s20, 0
      %s217 = scalar_select %p216, %s20, 0
      %s218 = scalar_lea.vmem %s2, %s217
      %p219 = pneg %p110
      %p220 = pneg %p107
      %p221 = pneg %p138
      %p222 = pneg %p135
      %p223 = scmp.lt.s32.totalorder %s19, 0
      %s224 = scalar_select %p223, %s19, 0
      %p225 = scmp.lt.s32.totalorder %s20, 0
      %s226 = scalar_select %p225, %s20, 0
      %s227 = sadd.s32 %s226, %s224
      %s228 = smul.addr %s227, 8
      %s229 = scalar_lea.vmem %s3, %s228
      %s230 = smul.u32 4, %s21
      %p231 = scmp.lt.s32.totalorder %s19, 0
      %s232 = scalar_select %p231, %s19, 0
      %p233 = scmp.lt.s32.totalorder %s230, 31
      %s234 = scalar_select %p233, %s230, 31
      %s235 = smul.addr %s232, 32
      %s236 = sadd.s32 %s234, %s235
      %s237 = smul.addr %s236, 4
      %s238 = scalar_lea.vmem %s0, %s237
      %s239 = smul.u32 4, %s21
      %s240 = smul.u32 64, %s21
      %p241 = scmp.lt.s32.totalorder %s240, 511
      %s242 = scalar_select %p241, %s240, 511
      %p243 = scmp.lt.s32.totalorder %s20, 0
      %s244 = scalar_select %p243, %s20, 0
      %s245 = sadd.s32 %s244, %s242
      %s246 = smul.addr %s245, 4
      %s247 = scalar_lea.vmem %s1, %s246
      %s248 = smul.u32 64, %s21
      %p249 = scmp.lt.s32.totalorder %s20, 0
      %s250 = scalar_select %p249, %s20, 0
      %s251 = scalar_lea.vmem %s2, %s250
      %p252 = scmp.lt.s32.totalorder %s19, 0
      %s253 = scalar_select %p252, %s19, 0
      %p254 = scmp.lt.s32.totalorder %s20, 0
      %s255 = scalar_select %p254, %s20, 0
      %s256 = sadd.s32 %s255, %s253
      %s257 = smul.addr %s256, 8
      %s258 = scalar_lea.vmem %s3, %s257
      %p259 = scmp.eq.s32.totalorder %s21, 0
      // Predicated region
      $region33: #{discriminator_forward.15} parent=31 // pred_check
        %p260 = pneg %p259
      $region34: #{discriminator_forward.15} parent=31 // pred_check_branch
        %262 = sbr.rel (%p260) target = $region36
      $region35: #{discriminator_forward.15} parent=31 // pred_region
        %263 = vst [vmem:[#allocation2] sm:$0xff] 0.0
      $region36: #{discriminator_forward.15} parent=31 // pred_fallthru
        _
      %v264 = vld [vmem:[#allocation2] sm:$0xff]
      %v265 = vld [vmem:[%s238] sm:$0xff]
      %v266 = vld [vmem:[%s238 + $0x8] sm:$0xff]
      %v267 = vld [vmem:[%s247] sm:$0xf]
      %v268 = vld [vmem:[%s247 + $0x4] sm:$0xf]
      %v269 = vld [vmem:[%s247 + $0x8] sm:$0xf]
      %v270 = vld [vmem:[%s247 + $0xc] sm:$0xf]
      %v271 = vld [vmem:[%s247 + $0x10] sm:$0xf]
      %v272 = vld [vmem:[%s247 + $0x14] sm:$0xf]
      %v273 = vld [vmem:[%s247 + $0x18] sm:$0xf]
      %v274 = vld [vmem:[%s247 + $0x1c] sm:$0xf]
      %v275 = vld [vmem:[%s247 + $0x20] sm:$0xf]
      %v276 = vld [vmem:[%s247 + $0x24] sm:$0xf]
      %v277 = vld [vmem:[%s247 + $0x28] sm:$0xf]
      %v278 = vld [vmem:[%s247 + $0x2c] sm:$0xf]
      %v279 = vld [vmem:[%s247 + $0x30] sm:$0xf]
      %v280 = vld [vmem:[%s247 + $0x34] sm:$0xf]
      %v281 = vld [vmem:[%s247 + $0x38] sm:$0xf]
      %v282 = vld [vmem:[%s247 + $0x3c] sm:$0xf]
      %v283 = vld [vmem:[%s247 + $0x40] sm:$0xf]
      %v284 = vld [vmem:[%s247 + $0x44] sm:$0xf]
      %v285 = vld [vmem:[%s247 + $0x48] sm:$0xf]
      %v286 = vld [vmem:[%s247 + $0x4c] sm:$0xf]
      %v287 = vld [vmem:[%s247 + $0x50] sm:$0xf]
      %v288 = vld [vmem:[%s247 + $0x54] sm:$0xf]
      %v289 = vld [vmem:[%s247 + $0x58] sm:$0xf]
      %v290 = vld [vmem:[%s247 + $0x5c] sm:$0xf]
      %v291 = vld [vmem:[%s247 + $0x60] sm:$0xf]
      %v292 = vld [vmem:[%s247 + $0x64] sm:$0xf]
      %v293 = vld [vmem:[%s247 + $0x68] sm:$0xf]
      %v294 = vld [vmem:[%s247 + $0x6c] sm:$0xf]
      %v295 = vld [vmem:[%s247 + $0x70] sm:$0xf]
      %v296 = vld [vmem:[%s247 + $0x74] sm:$0xf]
      %v297 = vld [vmem:[%s247 + $0x78] sm:$0xf]
      %v298 = vld [vmem:[%s247 + $0x7c] sm:$0xf]
      %v299 = vld [vmem:[%s247 + $0x80] sm:$0xf]
      %v300 = vld [vmem:[%s247 + $0x84] sm:$0xf]
      %v301 = vld [vmem:[%s247 + $0x88] sm:$0xf]
      %v302 = vld [vmem:[%s247 + $0x8c] sm:$0xf]
      %v303 = vld [vmem:[%s247 + $0x90] sm:$0xf]
      %v304 = vld [vmem:[%s247 + $0x94] sm:$0xf]
      %v305 = vld [vmem:[%s247 + $0x98] sm:$0xf]
      %v306 = vld [vmem:[%s247 + $0x9c] sm:$0xf]
      %v307 = vld [vmem:[%s247 + $0xa0] sm:$0xf]
      %v308 = vld [vmem:[%s247 + $0xa4] sm:$0xf]
      %v309 = vld [vmem:[%s247 + $0xa8] sm:$0xf]
      %v310 = vld [vmem:[%s247 + $0xac] sm:$0xf]
      %v311 = vld [vmem:[%s247 + $0xb0] sm:$0xf]
      %v312 = vld [vmem:[%s247 + $0xb4] sm:$0xf]
      %v313 = vld [vmem:[%s247 + $0xb8] sm:$0xf]
      %v314 = vld [vmem:[%s247 + $0xbc] sm:$0xf]
      %v315 = vld [vmem:[%s247 + $0xc0] sm:$0xf]
      %v316 = vld [vmem:[%s247 + $0xc4] sm:$0xf]
      %v317 = vld [vmem:[%s247 + $0xc8] sm:$0xf]
      %v318 = vld [vmem:[%s247 + $0xcc] sm:$0xf]
      %v319 = vld [vmem:[%s247 + $0xd0] sm:$0xf]
      %v320 = vld [vmem:[%s247 + $0xd4] sm:$0xf]
      %v321 = vld [vmem:[%s247 + $0xd8] sm:$0xf]
      %v322 = vld [vmem:[%s247 + $0xdc] sm:$0xf]
      %v323 = vld [vmem:[%s247 + $0xe0] sm:$0xf]
      %v324 = vld [vmem:[%s247 + $0xe4] sm:$0xf]
      %v325 = vld [vmem:[%s247 + $0xe8] sm:$0xf]
      %v326 = vld [vmem:[%s247 + $0xec] sm:$0xf]
      %v327 = vld [vmem:[%s247 + $0xf0] sm:$0xf]
      %v328 = vld [vmem:[%s247 + $0xf4] sm:$0xf]
      %v329 = vld [vmem:[%s247 + $0xf8] sm:$0xf]
      %v330 = vld [vmem:[%s247 + $0xfc] sm:$0xf]
      %v333 = vunpack.c.l.b16 %v265
      %v334 = vunpack.c.h.b16 %v265
      %v335 = vunpack.c.l.b16 %v266
      %v336 = vunpack.c.h.b16 %v266
      %v337 = vpack.c.b16 %v333, %v333
      %v338 = vpack.c.b16 %v334, %v334
      %v339 = vpack.c.b16 %v335, %v335
      %v340 = vpack.c.b16 %v336, %v336
      %v409 = vunpack.c.l.b16 %v267
      %v410 = vunpack.c.l.b16 %v268
      %v411 = vunpack.c.l.b16 %v269
      %v412 = vunpack.c.l.b16 %v270
      %v413 = vunpack.c.l.b16 %v271
      %v414 = vunpack.c.l.b16 %v272
      %v415 = vunpack.c.l.b16 %v273
      %v416 = vunpack.c.l.b16 %v274
      %v417 = vunpack.c.l.b16 %v275
      %v418 = vunpack.c.l.b16 %v276
      %v419 = vunpack.c.l.b16 %v277
      %v420 = vunpack.c.l.b16 %v278
      %v421 = vunpack.c.l.b16 %v279
      %v422 = vunpack.c.l.b16 %v280
      %v423 = vunpack.c.l.b16 %v281
      %v424 = vunpack.c.l.b16 %v282
      %v425 = vunpack.c.l.b16 %v283
      %v426 = vunpack.c.l.b16 %v284
      %v427 = vunpack.c.l.b16 %v285
      %v428 = vunpack.c.l.b16 %v286
      %v429 = vunpack.c.l.b16 %v287
      %v430 = vunpack.c.l.b16 %v288
      %v431 = vunpack.c.l.b16 %v289
      %v432 = vunpack.c.l.b16 %v290
      %v433 = vunpack.c.l.b16 %v291
      %v434 = vunpack.c.l.b16 %v292
      %v435 = vunpack.c.l.b16 %v293
      %v436 = vunpack.c.l.b16 %v294
      %v437 = vunpack.c.l.b16 %v295
      %v438 = vunpack.c.l.b16 %v296
      %v439 = vunpack.c.l.b16 %v297
      %v440 = vunpack.c.l.b16 %v298
      %v441 = vunpack.c.l.b16 %v299
      %v442 = vunpack.c.l.b16 %v300
      %v443 = vunpack.c.l.b16 %v301
      %v444 = vunpack.c.l.b16 %v302
      %v445 = vunpack.c.l.b16 %v303
      %v446 = vunpack.c.l.b16 %v304
      %v447 = vunpack.c.l.b16 %v305
      %v448 = vunpack.c.l.b16 %v306
      %v449 = vunpack.c.l.b16 %v307
      %v450 = vunpack.c.l.b16 %v308
      %v451 = vunpack.c.l.b16 %v309
      %v452 = vunpack.c.l.b16 %v310
      %v453 = vunpack.c.l.b16 %v311
      %v454 = vunpack.c.l.b16 %v312
      %v455 = vunpack.c.l.b16 %v313
      %v456 = vunpack.c.l.b16 %v314
      %v457 = vunpack.c.l.b16 %v315
      %v458 = vunpack.c.l.b16 %v316
      %v459 = vunpack.c.l.b16 %v317
      %v460 = vunpack.c.l.b16 %v318
      %v461 = vunpack.c.l.b16 %v319
      %v462 = vunpack.c.l.b16 %v320
      %v463 = vunpack.c.l.b16 %v321
      %v464 = vunpack.c.l.b16 %v322
      %v465 = vunpack.c.l.b16 %v323
      %v466 = vunpack.c.l.b16 %v324
      %v467 = vunpack.c.l.b16 %v325
      %v468 = vunpack.c.l.b16 %v326
      %v469 = vunpack.c.l.b16 %v327
      %v470 = vunpack.c.l.b16 %v328
      %v471 = vunpack.c.l.b16 %v329
      %v472 = vunpack.c.l.b16 %v330
      %v473 = vpack.c.b16 %v410, %v409
      %v474 = vpack.c.b16 %v412, %v411
      %v475 = vpack.c.b16 %v414, %v413
      %v476 = vpack.c.b16 %v416, %v415
      %v477 = vpack.c.b16 %v418, %v417
      %v478 = vpack.c.b16 %v420, %v419
      %v479 = vpack.c.b16 %v422, %v421
      %v480 = vpack.c.b16 %v424, %v423
      %v481 = vpack.c.b16 %v426, %v425
      %v482 = vpack.c.b16 %v428, %v427
      %v483 = vpack.c.b16 %v430, %v429
      %v484 = vpack.c.b16 %v432, %v431
      %v485 = vpack.c.b16 %v434, %v433
      %v486 = vpack.c.b16 %v436, %v435
      %v487 = vpack.c.b16 %v438, %v437
      %v488 = vpack.c.b16 %v440, %v439
      %v489 = vpack.c.b16 %v442, %v441
      %v490 = vpack.c.b16 %v444, %v443
      %v491 = vpack.c.b16 %v446, %v445
      %v492 = vpack.c.b16 %v448, %v447
      %v493 = vpack.c.b16 %v450, %v449
      %v494 = vpack.c.b16 %v452, %v451
      %v495 = vpack.c.b16 %v454, %v453
      %v496 = vpack.c.b16 %v456, %v455
      %v497 = vpack.c.b16 %v458, %v457
      %v498 = vpack.c.b16 %v460, %v459
      %v499 = vpack.c.b16 %v462, %v461
      %v500 = vpack.c.b16 %v464, %v463
      %v501 = vpack.c.b16 %v466, %v465
      %v502 = vpack.c.b16 %v468, %v467
      %v503 = vpack.c.b16 %v470, %v469
      %v504 = vpack.c.b16 %v472, %v471
      %537 = vmatpush.bf16.msra.mxu0 %v480
      %538 = vmatpush.bf16.msra.mxu0 %v479
      %539 = vmatpush.bf16.msra.mxu0 %v478
      %540 = vmatpush.bf16.msra.mxu0 %v477
      %541 = vmatpush.bf16.msra.mxu0 %v476
      %542 = vmatpush.bf16.msra.mxu0 %v475
      %543 = vmatpush.bf16.msra.mxu0 %v474
      %544 = vmatpush.bf16.msra.mxu0 %v473
      %545 = vmatmul.bf16.gmra.mxu0 %v337
      %v546 = vpop.f32.mrf.mxu0
      %v547 = vadd.f32 0.0, %v546
      %v548 = vpop.f32.mrf.mxu0
      %549 = vdwg.mxu0
      %550 = vmatpush.bf16.msra.mxu0 %v488
      %551 = vmatpush.bf16.msra.mxu0 %v487
      %552 = vmatpush.bf16.msra.mxu0 %v486
      %553 = vmatpush.bf16.msra.mxu0 %v485
      %554 = vmatpush.bf16.msra.mxu0 %v484
      %555 = vmatpush.bf16.msra.mxu0 %v483
      %556 = vmatpush.bf16.msra.mxu0 %v482
      %557 = vmatpush.bf16.msra.mxu0 %v481
      %558 = vmatmul.bf16.gmra.mxu0 %v338
      %v559 = vpop.f32.mrf.mxu0
      %v560 = vadd.f32 %v547, %v559
      %v561 = vpop.f32.mrf.mxu0
      %562 = vdwg.mxu0
      %563 = vmatpush.bf16.msra.mxu0 %v496
      %564 = vmatpush.bf16.msra.mxu0 %v495
      %565 = vmatpush.bf16.msra.mxu0 %v494
      %566 = vmatpush.bf16.msra.mxu0 %v493
      %567 = vmatpush.bf16.msra.mxu0 %v492
      %568 = vmatpush.bf16.msra.mxu0 %v491
      %569 = vmatpush.bf16.msra.mxu0 %v490
      %570 = vmatpush.bf16.msra.mxu0 %v489
      %571 = vmatmul.bf16.gmra.mxu0 %v339
      %v572 = vpop.f32.mrf.mxu0
      %v573 = vadd.f32 %v560, %v572
      %v574 = vpop.f32.mrf.mxu0
      %575 = vdwg.mxu0
      %576 = vmatpush.bf16.msra.mxu0 %v504
      %577 = vmatpush.bf16.msra.mxu0 %v503
      %578 = vmatpush.bf16.msra.mxu0 %v502
      %579 = vmatpush.bf16.msra.mxu0 %v501
      %580 = vmatpush.bf16.msra.mxu0 %v500
      %581 = vmatpush.bf16.msra.mxu0 %v499
      %582 = vmatpush.bf16.msra.mxu0 %v498
      %583 = vmatpush.bf16.msra.mxu0 %v497
      %584 = vmatmul.bf16.gmra.mxu0 %v340
      %v585 = vpop.f32.mrf.mxu0
      %v586 = vadd.f32 %v573, %v585
      %v587 = vpop.f32.mrf.mxu0
      %588 = vdwg.mxu0
      %v589 = vadd.f32 %v264, %v586
      %590 = vst [vmem:[#allocation2] sm:$0xff] %v589
      %p591 = scmp.eq.s32.totalorder %s21, 7
      // Predicated region
      $region37: #{discriminator_forward.15} parent=31 // pred_check
        %p592 = pneg %p591
      $region38: #{discriminator_forward.15} parent=31 // pred_check_branch
        %594 = sbr.rel (%p592) target = $region40
      $region39: #{discriminator_forward.15} parent=31 // pred_region
        %v595 = vld [vmem:[#allocation2] sm:$0xff]
        %v596 = vld [vmem:[%s251] sm:$0x1]
        %v598 = vperm.slane %v596, 0
        %v600 = vadd.f32 %v595, %v598
        %601 = vst [vmem:[%s258] sm:$0xff] %v600
      $region40: #{discriminator_forward.15} parent=31 // pred_fallthru
        _
      %p602 = scmp.lt.s32.totalorder %s19, 0
      %s603 = scalar_select %p602, %s19, 0
      %p604 = scmp.lt.s32.totalorder %s20, 0
      %s605 = scalar_select %p604, %s20, 0
      %s606 = sadd.s32 %s605, %s603
      %s607 = smul.addr %s606, 8
      %s608 = scalar_lea.vmem %s3, %s607
      // Predicated region
      $region41: #{discriminator_forward.15} parent=31 // pred_check
        %p609 = pneg %p135
      $region42: #{discriminator_forward.15} parent=31 // pred_check_branch
        %611 = sbr.rel (%p609) target = $region44
      $region43: #{discriminator_forward.15} parent=31 // pred_region
        _
      $region44: #{discriminator_forward.15} parent=31 // pred_fallthru
        _
      // Predicated region
      $region45: #{discriminator_forward.15} parent=31 // pred_check
        %p612 = pneg %p135
      $region46: #{discriminator_forward.15} parent=31 // pred_check_branch
        %614 = sbr.rel (%p612) target = $region48
      $region47: #{discriminator_forward.15} parent=31 // pred_region
        %p615 = scmp.lt.s32.totalorder %s19, 0
        %s616 = scalar_select %p615, %s19, 0
        %p617 = scmp.lt.s32.totalorder %s20, 0
        %s618 = scalar_select %p617, %s20, 0
        %s619 = sadd.s32 %s618, %s616
        %s620 = smul.addr %s619, 8
        %s621 = scalar_lea.vmem %s3, %s620
      $region48: #{discriminator_forward.15} parent=31 // pred_fallthru
        _
    $region32: #{discriminator_forward.15} parent=5 // pred_fallthru
      _
    %p622 = scmp.le.s32.totalorder 2, %s9
    // Predicated region
    $region49: #{discriminator_forward.15} parent=5 // pred_check
      %p623 = pneg %p622
    $region50: #{discriminator_forward.15} parent=5 // pred_check_branch
      %625 = sbr.rel (%p623) target = $region52
    $region51: #{discriminator_forward.15} parent=5 // pred_region
      %s626 = ssub.s32 %s9, 2
    $region52: #{discriminator_forward.15} parent=5 // pred_fallthru
      _
  $region6: #{discriminator_forward.15} parent=0 // loop_footer
    %s13 = sadd.s32 1, %s9
  $region7: #{discriminator_forward.15} parent=0 // loop_footer_branch
    %8 = sbr.rel target = $region3
  $region8: #{discriminator_forward.15} parent=0 // loop_exit
    _

</llo_original>
